<compile_context>
chip_gen: v7x
topology: tpu7x:2x2x1
jax: 0.10.0
libtpu: 0.0.40
codegen_flags: <defaults>
</compile_context>

<pallas_src>
import functools

import jax
import jax.numpy as jnp
from jax.experimental import pallas as pl
from jax.experimental.pallas import tpu as pltpu


# ---------------------------------------------------------------------------
# Fused EmmaSAGELayer kernel:
#   mean-aggregate (blocked K reduction) -> concat-linear -> (LN + ReLU)
# ---------------------------------------------------------------------------
def _sage_layer_kernel(adj_ref, xk_ref, xi_ref, inv_ref, wa_ref, ws_ref,
                       b_ref, g_ref, be_ref, out_ref, acc_ref, *,
                       apply_ln_relu):
    """Grid = (node-row tiles i  ["parallel"],
               adjacency contraction tiles k  ["arbitrary"])."""
    k = pl.program_id(1)

    @pl.when(k == 0)
    def _():
        acc_ref[...] = jnp.zeros_like(acc_ref)

    # Accumulate raw neighbor sum on the MXU:
    #   acc[i-tile, :] += adj[i-tile, k-tile] @ x[k-tile, :]
    # bf16 operands (0/1 adjacency is exact in bf16), float32 accumulation.
    acc_ref[...] += jnp.dot(adj_ref[...], xk_ref[...],
                            preferred_element_type=jnp.float32)

    @pl.when(k == pl.num_programs(1) - 1)
    def _():
        # Degree normalization in f32 (exact 1/deg scale), then the
        # concat-linear:  cat([mean, x], -1) @ W.T + b
        #             ==  mean @ W_agg + x @ W_self + b
        mean = (acc_ref[...] * inv_ref[...]).astype(jnp.bfloat16)
        h = (jnp.dot(mean, wa_ref[...], preferred_element_type=jnp.float32)
             + jnp.dot(xi_ref[...], ws_ref[...],
                       preferred_element_type=jnp.float32)
             + b_ref[...])
        if apply_ln_relu:  # fused LayerNorm (eps=1e-5) + ReLU epilogue (f32)
            mu = jnp.mean(h, axis=-1, keepdims=True)
            var = jnp.mean((h - mu) * (h - mu), axis=-1, keepdims=True)
            h = (h - mu) * jax.lax.rsqrt(var + 1e-5)
            h = h * g_ref[...] + be_ref[...]
            h = jnp.maximum(h, 0.0)
        out_ref[...] = h.astype(out_ref.dtype)  # bf16 for hidden, f32 last


def _choose_tiles(n, max_tile=512):
    """Pick (tm, tk): as large as N allows (HBM-roofline tiles), but keep at
    least two row tiles so v7x's two TensorCores share the 'parallel' axis."""
    assert n % 128 == 0, f"N must be a multiple of 128 (got {n})"

    def largest_divisor(limit):
        t = min(limit, n)
        while n % t:
            t -= 128
        return t

    tk = largest_divisor(max_tile)
    tm = largest_divisor(max_tile)
    if n // tm < 2 and tm > 128:
        tm = largest_divisor(tm // 2)
    return tm, tk


def sage_layer(adj_bf16, inv_deg, x, w_agg, w_self, bias, gamma, beta, *,
               apply_ln_relu, tm, tk, out_dtype):
    """One EmmaSAGELayer (+ fused LayerNorm/ReLU for hidden layers)."""
    n = adj_bf16.shape[0]
    cin = x.shape[1]
    cout = w_agg.shape[1]
    assert n % tm == 0 and n % tk == 0, (n, tm, tk)

    kernel = functools.partial(_sage_layer_kernel, apply_ln_relu=apply_ln_relu)
    return pl.pallas_call(
        kernel,
        out_shape=jax.ShapeDtypeStruct((n, cout), out_dtype),
        grid_spec=pltpu.PrefetchScalarGridSpec(
            num_scalar_prefetch=0,
            grid=(n // tm, n // tk),
            in_specs=[
                pl.BlockSpec((tm, tk), lambda i, k: (i, k)),      # adjacency tile
                pl.BlockSpec((tk, cin), lambda i, k: (k, 0)),     # x, contraction
                pl.BlockSpec((tm, cin), lambda i, k: (i, 0)),     # x, self path
                pl.BlockSpec((tm, 1), lambda i, k: (i, 0)),       # 1/deg (f32)
                pl.BlockSpec((cin, cout), lambda i, k: (0, 0)),   # W_agg
                pl.BlockSpec((cin, cout), lambda i, k: (0, 0)),   # W_self
                pl.BlockSpec((1, cout), lambda i, k: (0, 0)),     # bias
                pl.BlockSpec((1, cout), lambda i, k: (0, 0)),     # LN gamma
                pl.BlockSpec((1, cout), lambda i, k: (0, 0)),     # LN beta
            ],
            out_specs=pl.BlockSpec((tm, cout), lambda i, k: (i, 0)),
            # FIX: accumulator holds adj @ x, i.e. (tm, cin) -- not (tm, cout).
            scratch_shapes=[pltpu.VMEM((tm, cin), jnp.float32)],
        ),
        compiler_params=pltpu.CompilerParams(
            dimension_semantics=("parallel", "arbitrary"),
            vmem_limit_bytes=32 * 1024 * 1024,
        ),
    )(adj_bf16, x, x, inv_deg, w_agg, w_self, bias, gamma, beta)


# ---------------------------------------------------------------------------
# Forward (dropout=0, num_linears=0, act='relu', norm='layer')
# ---------------------------------------------------------------------------
def prepare_adjacency(adj):
    """One-time prep, hoisted out of the jitted forward (adjacency is reused
    across forward calls).  bf16 is exact for a 0/1 adjacency; the inverse
    degree stays f32 and is applied post-accumulation inside the kernel."""
    deg = jnp.sum(adj, axis=1, keepdims=True)
    inv_deg = jnp.where(deg == 0.0, 0.0, 1.0 / deg).astype(jnp.float32)
    return adj.astype(jnp.bfloat16), inv_deg


def emma_sage_forward(x, adj_bf16, inv_deg, params, *, max_tile=512):
    """EmmaSAGE.forward. Route.apply == identity (single partition); EMA
    history buffers are zero => EmmaSum 'mean' == degree-normalized mean."""
    n = adj_bf16.shape[0]
    tm, tk = _choose_tiles(n, max_tile)
    num_layers = len(params["layers"])
    h = x.astype(jnp.bfloat16)
    for i in range(num_layers):
        w_agg, w_self, b = params["layers"][i]
        last = i == num_layers - 1
        if last:
            cout = b.shape[-1]
            gamma = jnp.ones((1, cout), jnp.float32)   # unused (no LN on last)
            beta = jnp.zeros((1, cout), jnp.float32)
        else:
            gamma, beta = params["norms"][i]
        h = sage_layer(adj_bf16, inv_deg, h, w_agg, w_self, b, gamma, beta,
                       apply_ln_relu=not last, tm=tm, tk=tk,
                       out_dtype=jnp.float32 if last else jnp.bfloat16)
    return h


# ---------------------------------------------------------------------------
# Parameters (nn.Linear-style init) + one-time kernel-layout prep
# ---------------------------------------------------------------------------
def init_params(key, in_channels, hidden_channels, num_layers,
                out_channels=None):
    if out_channels is None:
        out_channels = hidden_channels
    layers, norms = [], []
    last_ch = in_channels
    for i in range(num_layers):
        o = out_channels if i == num_layers - 1 else hidden_channels
        fan_in = last_ch * 2
        bound = 1.0 / (fan_in ** 0.5)
        key, kw, kb = jax.random.split(key, 3)
        w = jax.random.uniform(kw, (o, fan_in), jnp.float32, -bound, bound)
        b = jax.random.uniform(kb, (o,), jnp.float32, -bound, bound)
        layers.append((w, b))
        if i != num_layers - 1:
            norms.append((jnp.ones((o,), jnp.float32),
                          jnp.zeros((o,), jnp.float32)))
        last_ch = o
    return {"layers": layers, "norms": norms}


def prepare_params(raw_params):
    """Split/transpose the concat-linear weight once and cast MXU operands to
    bf16.  torch.cat order is [aggregated_mean, x_self]."""
    layers, norms = [], []
    for w, b in raw_params["layers"]:
        cin = w.shape[1] // 2
        w_agg = w[:, :cin].T.astype(jnp.bfloat16)    # applies to aggregated mean
        w_self = w[:, cin:].T.astype(jnp.bfloat16)   # applies to self features
        layers.append((w_agg, w_self, b.reshape(1, -1).astype(jnp.float32)))
    for g, be in raw_params["norms"]:
        norms.append((g.reshape(1, -1).astype(jnp.float32),
                      be.reshape(1, -1).astype(jnp.float32)))
    return {"layers": layers, "norms": norms}


# ---------------------------------------------------------------------------
# Pure-JAX references for correctness checks
# ---------------------------------------------------------------------------
def reference_forward_f32(x, adj, raw_params):
    """Full-f32 reference of the PyTorch forward."""
    num_layers = len(raw_params["layers"])
    h = x
    for i in range(num_layers):
        w, b = raw_params["layers"][i]
        agg = adj @ h
        deg = adj.sum(axis=1, keepdims=True)
        inv = jnp.where(deg == 0.0, 0.0, 1.0 / deg)
        h = jnp.concatenate([agg * inv, h], axis=-1) @ w.T + b
        if i == num_layers - 1:
            break
        g, be = raw_params["norms"][i]
        mu = h.mean(-1, keepdims=True)
        var = ((h - mu) ** 2).mean(-1, keepdims=True)
        h = (h - mu) / jnp.sqrt(var + 1e-5) * g + be
        h = jnp.maximum(h, 0.0)
    return h


def reference_forward_matched(x, adj, raw_params):
    """Reference using the kernel's exact dtype policy (bf16 MXU operands,
    f32 accumulation / inv-degree / elementwise, bf16 hidden activations)."""
    adj_bf16, inv_deg = prepare_adjacency(adj)
    num_layers = len(raw_params["layers"])
    h = x.astype(jnp.bfloat16)
    out = None
    for i in range(num_layers):
        w, b = raw_params["layers"][i]
        cin = h.shape[1]
        wa = w[:, :cin].T.astype(jnp.bfloat16)
        ws = w[:, cin:].T.astype(jnp.bfloat16)
        agg = jnp.dot(adj_bf16, h, preferred_element_type=jnp.float32) * inv_deg
        out = (jnp.dot(agg.astype(jnp.bfloat16), wa,
                       preferred_element_type=jnp.float32)
               + jnp.dot(h, ws, preferred_element_type=jnp.float32)
               + b.reshape(1, -1))
        if i == num_layers - 1:
            break
        g, be = raw_params["norms"][i]
        mu = out.mean(-1, keepdims=True)
        var = ((out - mu) ** 2).mean(-1, keepdims=True)
        out = (out - mu) * jax.lax.rsqrt(var + 1e-5) * g + be
        out = jnp.maximum(out, 0.0)
        h = out.astype(jnp.bfloat16)
    return out


if __name__ == "__main__":
    # Small but TPU-friendly (lane-dense) shapes.  in_channels != hidden
    # exercises the (tm, cin) accumulator fix.
    N, IN_CH, HID, NUM_LAYERS = 256, 256, 128, 3

    key = jax.random.PRNGKey(0)
    k_x, k_adj, k_p = jax.random.split(key, 3)

    x = jax.random.normal(k_x, (N, IN_CH), jnp.float32)
    # Random sparse-ish 0/1 adjacency stored densely (may include zero-degree rows).
    adj = (jax.random.uniform(k_adj, (N, N)) < 0.3).astype(jnp.float32)

    raw_params = init_params(k_p, IN_CH, HID, NUM_LAYERS)
    params = prepare_params(raw_params)
    adj_bf16, inv_deg = prepare_adjacency(adj)   # hoisted out of the jit

    fwd = jax.jit(emma_sage_forward)
    out = jax.block_until_ready(fwd(x, adj_bf16, inv_deg, params))
    assert out.shape == (N, HID), out.shape
    assert out.dtype == jnp.float32, out.dtype

    # Tight check vs a precision-matched pure-JAX reference.
    ref_matched = reference_forward_matched(x, adj, raw_params)
    err_m = float(jnp.max(jnp.abs(out - ref_matched)))
    assert jnp.allclose(out, ref_matched, atol=5e-3, rtol=5e-3), err_m

    # Looser check vs the full-f32 reference (bf16 MXU operand budget).
    ref_f32 = reference_forward_f32(x, adj, raw_params)
    err_f = float(jnp.max(jnp.abs(out - ref_f32)))
    assert jnp.allclose(out, ref_f32, atol=7e-2, rtol=7e-2), err_f

    print("KERNEL_OK")
</pallas_src>

<mosaic_0001>
module attributes {stable_mosaic.version = 11 : i64} {
  func.func @_sage_layer_kernel(%arg0: i32, %arg1: i32, %arg2: memref<128x256xbf16, #tpu.memory_space<vmem>>, %arg3: memref<256x256xbf16, #tpu.memory_space<vmem>>, %arg4: memref<128x256xbf16, #tpu.memory_space<vmem>>, %arg5: memref<128x1xf32, #tpu.memory_space<vmem>>, %arg6: memref<256x128xbf16, #tpu.memory_space<vmem>>, %arg7: memref<256x128xbf16, #tpu.memory_space<vmem>>, %arg8: memref<1x128xf32, #tpu.memory_space<vmem>>, %arg9: memref<1x128xf32, #tpu.memory_space<vmem>>, %arg10: memref<1x128xf32, #tpu.memory_space<vmem>>, %arg11: memref<128x128xbf16, #tpu.memory_space<vmem>>, %arg12: memref<128x256xf32, #tpu.memory_space<vmem>>) attributes {dimension_semantics = [#tpu.dimension_semantics<parallel>, #tpu.dimension_semantics<arbitrary>], iteration_bounds = array<i64: 2, 1>, scalar_prefetch = 0 : i64, scratch_operands = 1 : i64, tpu.core_type = #tpu.core_type<tc>, window_params = [{transform_indices = @transform_0, window_bounds = array<i64: 128, 256>}, {transform_indices = @transform_1, window_bounds = array<i64: 256, 256>}, {transform_indices = @transform_2, window_bounds = array<i64: 128, 256>}, {transform_indices = @transform_3, window_bounds = array<i64: 128, 1>}, {pipeline_mode = #tpu.pipeline_mode<synchronous>, transform_indices = @transform_4, window_bounds = array<i64: 256, 128>}, {pipeline_mode = #tpu.pipeline_mode<synchronous>, transform_indices = @transform_5, window_bounds = array<i64: 256, 128>}, {pipeline_mode = #tpu.pipeline_mode<synchronous>, transform_indices = @transform_6, window_bounds = array<i64: 1, 128>}, {pipeline_mode = #tpu.pipeline_mode<synchronous>, transform_indices = @transform_7, window_bounds = array<i64: 1, 128>}, {pipeline_mode = #tpu.pipeline_mode<synchronous>, transform_indices = @transform_8, window_bounds = array<i64: 1, 128>}, {transform_indices = @transform_9, window_bounds = array<i64: 128, 128>}]} {
    %c0_i32 = arith.constant 0 : i32
    %0 = arith.cmpi eq, %arg1, %c0_i32 : i32
    %1 = arith.extui %0 : i1 to i32
    %c0_i32_0 = arith.constant 0 : i32
    %2 = arith.cmpi ne, %1, %c0_i32_0 : i32
    scf.if %2 {
      %cst_10 = arith.constant 0.000000e+00 : f32
      %12 = vector.broadcast %cst_10 : f32 to vector<128x256xf32>
      %c0_11 = arith.constant 0 : index
      %c0_12 = arith.constant 0 : index
      %13 = vector.load %arg12[%c0_11, %c0_12] : memref<128x256xf32, #tpu.memory_space<vmem>>, vector<128x256xf32>
      tpu.vector_store %arg12[%c0_11, %c0_12], %12 {strides = array<i32>} : memref<128x256xf32, #tpu.memory_space<vmem>>, vector<128x256xf32>,
    } else {
    }
    %c0 = arith.constant 0 : index
    %c0_1 = arith.constant 0 : index
    %3 = vector.load %arg12[%c0, %c0_1] : memref<128x256xf32, #tpu.memory_space<vmem>>, vector<128x256xf32>
    %c0_2 = arith.constant 0 : index
    %c0_3 = arith.constant 0 : index
    %4 = vector.load %arg2[%c0_2, %c0_3] : memref<128x256xbf16, #tpu.memory_space<vmem>>, vector<128x256xbf16>
    %c0_4 = arith.constant 0 : index
    %c0_5 = arith.constant 0 : index
    %5 = vector.load %arg3[%c0_4, %c0_5] : memref<256x256xbf16, #tpu.memory_space<vmem>>, vector<256x256xbf16>
    %cst = arith.constant dense<0.000000e+00> : vector<128x256xf32>
    %6 = tpu.matmul %4, %5, %cst {dimension_numbers = #tpu.dot_dimension_numbers<[1], [0], [0], [1], [0, 0, 1, 1], [], []>} : vector<128x256xbf16>, vector<256x256xbf16>, vector<128x256xf32> -> vector<128x256xf32>
    %7 = arith.addf %3, %6 : vector<128x256xf32>
    %c0_6 = arith.constant 0 : index
    %c0_7 = arith.constant 0 : index
    %8 = vector.load %arg12[%c0_6, %c0_7] : memref<128x256xf32, #tpu.memory_space<vmem>>, vector<128x256xf32>
    tpu.vector_store %arg12[%c0_6, %c0_7], %7 {strides = array<i32>} : memref<128x256xf32, #tpu.memory_space<vmem>>, vector<128x256xf32>,
    %c0_i32_8 = arith.constant 0 : i32
    %9 = arith.cmpi eq, %arg1, %c0_i32_8 : i32
    %10 = arith.extui %9 : i1 to i32
    %c0_i32_9 = arith.constant 0 : i32
    %11 = arith.cmpi ne, %10, %c0_i32_9 : i32
    scf.if %11 {
      %c0_10 = arith.constant 0 : index
      %c0_11 = arith.constant 0 : index
      %12 = vector.load %arg12[%c0_10, %c0_11] : memref<128x256xf32, #tpu.memory_space<vmem>>, vector<128x256xf32>
      %c0_12 = arith.constant 0 : index
      %c0_13 = arith.constant 0 : index
      %13 = vector.load %arg5[%c0_12, %c0_13] : memref<128x1xf32, #tpu.memory_space<vmem>>, vector<128x1xf32>
      %14 = vector.broadcast %13 : vector<128x1xf32> to vector<128x256xf32>
      %15 = arith.mulf %12, %14 : vector<128x256xf32>
      %16 = arith.truncf %15 : vector<128x256xf32> to vector<128x256xbf16>
      %c0_14 = arith.constant 0 : index
      %c0_15 = arith.constant 0 : index
      %17 = vector.load %arg6[%c0_14, %c0_15] : memref<256x128xbf16, #tpu.memory_space<vmem>>, vector<256x128xbf16>
      %cst_16 = arith.constant dense<0.000000e+00> : vector<128x128xf32>
      %18 = tpu.matmul %16, %17, %cst_16 {dimension_numbers = #tpu.dot_dimension_numbers<[1], [0], [0], [1], [0, 0, 1, 1], [], []>} : vector<128x256xbf16>, vector<256x128xbf16>, vector<128x128xf32> -> vector<128x128xf32>
      %c0_17 = arith.constant 0 : index
      %c0_18 = arith.constant 0 : index
      %19 = vector.load %arg4[%c0_17, %c0_18] : memref<128x256xbf16, #tpu.memory_space<vmem>>, vector<128x256xbf16>
      %c0_19 = arith.constant 0 : index
      %c0_20 = arith.constant 0 : index
      %20 = vector.load %arg7[%c0_19, %c0_20] : memref<256x128xbf16, #tpu.memory_space<vmem>>, vector<256x128xbf16>
      %cst_21 = arith.constant dense<0.000000e+00> : vector<128x128xf32>
      %21 = tpu.matmul %19, %20, %cst_21 {dimension_numbers = #tpu.dot_dimension_numbers<[1], [0], [0], [1], [0, 0, 1, 1], [], []>} : vector<128x256xbf16>, vector<256x128xbf16>, vector<128x128xf32> -> vector<128x128xf32>
      %22 = arith.addf %18, %21 : vector<128x128xf32>
      %c0_22 = arith.constant 0 : index
      %c0_23 = arith.constant 0 : index
      %23 = vector.load %arg8[%c0_22, %c0_23] : memref<1x128xf32, #tpu.memory_space<vmem>>, vector<1x128xf32>
      %24 = vector.broadcast %23 : vector<1x128xf32> to vector<128x128xf32>
      %25 = arith.addf %22, %24 : vector<128x128xf32>
      %cst_24 = arith.constant dense<0.000000e+00> : vector<128xf32>
      %26 = vector.multi_reduction <add>, %25, %cst_24 [1] : vector<128x128xf32> to vector<128xf32>
      %27 = vector.shape_cast %26 : vector<128xf32> to vector<128x1xf32>
      %cst_25 = arith.constant 1.280000e+02 : f32
      %28 = vector.broadcast %cst_25 : f32 to vector<128x1xf32>
      %29 = arith.divf %27, %28 : vector<128x1xf32>
      %30 = vector.broadcast %29 : vector<128x1xf32> to vector<128x128xf32>
      %31 = arith.subf %25, %30 : vector<128x128xf32>
      %32 = vector.broadcast %29 : vector<128x1xf32> to vector<128x128xf32>
      %33 = arith.subf %25, %32 : vector<128x128xf32>
      %34 = arith.mulf %31, %33 : vector<128x128xf32>
      %cst_26 = arith.constant dense<0.000000e+00> : vector<128xf32>
      %35 = vector.multi_reduction <add>, %34, %cst_26 [1] : vector<128x128xf32> to vector<128xf32>
      %36 = vector.shape_cast %35 : vector<128xf32> to vector<128x1xf32>
      %cst_27 = arith.constant 1.280000e+02 : f32
      %37 = vector.broadcast %cst_27 : f32 to vector<128x1xf32>
      %38 = arith.divf %36, %37 : vector<128x1xf32>
      %39 = vector.broadcast %29 : vector<128x1xf32> to vector<128x128xf32>
      %40 = arith.subf %25, %39 : vector<128x128xf32>
      %cst_28 = arith.constant 9.99999974E-6 : f32
      %41 = vector.broadcast %cst_28 : f32 to vector<128x1xf32>
      %42 = arith.addf %38, %41 : vector<128x1xf32>
      %43 = math.rsqrt %42 : vector<128x1xf32>
      %44 = vector.broadcast %43 : vector<128x1xf32> to vector<128x128xf32>
      %45 = arith.mulf %40, %44 : vector<128x128xf32>
      %c0_29 = arith.constant 0 : index
      %c0_30 = arith.constant 0 : index
      %46 = vector.load %arg9[%c0_29, %c0_30] : memref<1x128xf32, #tpu.memory_space<vmem>>, vector<1x128xf32>
      %47 = vector.broadcast %46 : vector<1x128xf32> to vector<128x128xf32>
      %48 = arith.mulf %45, %47 : vector<128x128xf32>
      %c0_31 = arith.constant 0 : index
      %c0_32 = arith.constant 0 : index
      %49 = vector.load %arg10[%c0_31, %c0_32] : memref<1x128xf32, #tpu.memory_space<vmem>>, vector<1x128xf32>
      %50 = vector.broadcast %49 : vector<1x128xf32> to vector<128x128xf32>
      %51 = arith.addf %48, %50 : vector<128x128xf32>
      %cst_33 = arith.constant 0.000000e+00 : f32
      %52 = vector.broadcast %cst_33 : f32 to vector<128x128xf32>
      %53 = arith.maximumf %51, %52 : vector<128x128xf32>
      %54 = arith.truncf %53 : vector<128x128xf32> to vector<128x128xbf16>
      %c0_34 = arith.constant 0 : index
      %c0_35 = arith.constant 0 : index
      %55 = vector.load %arg11[%c0_34, %c0_35] : memref<128x128xbf16, #tpu.memory_space<vmem>>, vector<128x128xbf16>
      tpu.vector_store %arg11[%c0_34, %c0_35], %54 {strides = array<i32>} : memref<128x128xbf16, #tpu.memory_space<vmem>>, vector<128x128xbf16>,
    } else {
    }
    return
  }
  func.func @transform_0(%arg0: i32, %arg1: i32) -> (i32, i32) {
    %c0_i32 = arith.constant 0 : i32
    return %arg0, %arg1 : i32, i32
  }
  func.func @transform_1(%arg0: i32, %arg1: i32) -> (i32, i32) {
    %c0_i32 = arith.constant 0 : i32
    %c0_i32_0 = arith.constant 0 : i32
    return %arg1, %c0_i32 : i32, i32
  }
  func.func @transform_2(%arg0: i32, %arg1: i32) -> (i32, i32) {
    %c0_i32 = arith.constant 0 : i32
    %c0_i32_0 = arith.constant 0 : i32
    return %arg0, %c0_i32 : i32, i32
  }
  func.func @transform_3(%arg0: i32, %arg1: i32) -> (i32, i32) {
    %c0_i32 = arith.constant 0 : i32
    %c0_i32_0 = arith.constant 0 : i32
    return %arg0, %c0_i32 : i32, i32
  }
  func.func @transform_4(%arg0: i32, %arg1: i32) -> (i32, i32) {
    %c0_i32 = arith.constant 0 : i32
    %c0_i32_0 = arith.constant 0 : i32
    %c0_i32_1 = arith.constant 0 : i32
    return %c0_i32, %c0_i32_0 : i32, i32
  }
  func.func @transform_5(%arg0: i32, %arg1: i32) -> (i32, i32) {
    %c0_i32 = arith.constant 0 : i32
    %c0_i32_0 = arith.constant 0 : i32
    %c0_i32_1 = arith.constant 0 : i32
    return %c0_i32, %c0_i32_0 : i32, i32
  }
  func.func @transform_6(%arg0: i32, %arg1: i32) -> (i32, i32) {
    %c0_i32 = arith.constant 0 : i32
    %c0_i32_0 = arith.constant 0 : i32
    %c0_i32_1 = arith.constant 0 : i32
    return %c0_i32, %c0_i32_0 : i32, i32
  }
  func.func @transform_7(%arg0: i32, %arg1: i32) -> (i32, i32) {
    %c0_i32 = arith.constant 0 : i32
    %c0_i32_0 = arith.constant 0 : i32
    %c0_i32_1 = arith.constant 0 : i32
    return %c0_i32, %c0_i32_0 : i32, i32
  }
  func.func @transform_8(%arg0: i32, %arg1: i32) -> (i32, i32) {
    %c0_i32 = arith.constant 0 : i32
    %c0_i32_0 = arith.constant 0 : i32
    %c0_i32_1 = arith.constant 0 : i32
    return %c0_i32, %c0_i32_0 : i32, i32
  }
  func.func @transform_9(%arg0: i32, %arg1: i32) -> (i32, i32) {
    %c0_i32 = arith.constant 0 : i32
    %c0_i32_0 = arith.constant 0 : i32
    return %arg0, %c0_i32 : i32, i32
  }
}

module attributes {stable_mosaic.version = 11 : i64} {
  func.func @_sage_layer_kernel(%arg0: i32, %arg1: i32, %arg2: memref<128x256xbf16, #tpu.memory_space<vmem>>, %arg3: memref<256x128xbf16, #tpu.memory_space<vmem>>, %arg4: memref<128x128xbf16, #tpu.memory_space<vmem>>, %arg5: memref<128x1xf32, #tpu.memory_space<vmem>>, %arg6: memref<128x128xbf16, #tpu.memory_space<vmem>>, %arg7: memref<128x128xbf16, #tpu.memory_space<vmem>>, %arg8: memref<1x128xf32, #tpu.memory_space<vmem>>, %arg9: memref<1x128xf32, #tpu.memory_space<vmem>>, %arg10: memref<1x128xf32, #tpu.memory_space<vmem>>, %arg11: memref<128x128xbf16, #tpu.memory_space<vmem>>, %arg12: memref<128x128xf32, #tpu.memory_space<vmem>>) attributes {dimension_semantics = [#tpu.dimension_semantics<parallel>, #tpu.dimension_semantics<arbitrary>], iteration_bounds = array<i64: 2, 1>, scalar_prefetch = 0 : i64, scratch_operands = 1 : i64, tpu.core_type = #tpu.core_type<tc>, window_params = [{transform_indices = @transform_0, window_bounds = array<i64: 128, 256>}, {transform_indices = @transform_1, window_bounds = array<i64: 256, 128>}, {transform_indices = @transform_2, window_bounds = array<i64: 128, 128>}, {transform_indices = @transform_3, window_bounds = array<i64: 128, 1>}, {pipeline_mode = #tpu.pipeline_mode<synchronous>, transform_indices = @transform_4, window_bounds = array<i64: 128, 128>}, {pipeline_mode = #tpu.pipeline_mode<synchronous>, transform_indices = @transform_5, window_bounds = array<i64: 128, 128>}, {pipeline_mode = #tpu.pipeline_mode<synchronous>, transform_indices = @transform_6, window_bounds = array<i64: 1, 128>}, {pipeline_mode = #tpu.pipeline_mode<synchronous>, transform_indices = @transform_7, window_bounds = array<i64: 1, 128>}, {pipeline_mode = #tpu.pipeline_mode<synchronous>, transform_indices = @transform_8, window_bounds = array<i64: 1, 128>}, {transform_indices = @transform_9, window_bounds = array<i64: 128, 128>}]} {
    %c0_i32 = arith.constant 0 : i32
    %0 = arith.cmpi eq, %arg1, %c0_i32 : i32
    %1 = arith.extui %0 : i1 to i32
    %c0_i32_0 = arith.constant 0 : i32
    %2 = arith.cmpi ne, %1, %c0_i32_0 : i32
    scf.if %2 {
      %cst_10 = arith.constant 0.000000e+00 : f32
      %12 = vector.broadcast %cst_10 : f32 to vector<128x128xf32>
      %c0_11 = arith.constant 0 : index
      %c0_12 = arith.constant 0 : index
      %13 = vector.load %arg12[%c0_11, %c0_12] : memref<128x128xf32, #tpu.memory_space<vmem>>, vector<128x128xf32>
      tpu.vector_store %arg12[%c0_11, %c0_12], %12 {strides = array<i32>} : memref<128x128xf32, #tpu.memory_space<vmem>>, vector<128x128xf32>,
    } else {
    }
    %c0 = arith.constant 0 : index
    %c0_1 = arith.constant 0 : index
    %3 = vector.load %arg12[%c0, %c0_1] : memref<128x128xf32, #tpu.memory_space<vmem>>, vector<128x128xf32>
    %c0_2 = arith.constant 0 : index
    %c0_3 = arith.constant 0 : index
    %4 = vector.load %arg2[%c0_2, %c0_3] : memref<128x256xbf16, #tpu.memory_space<vmem>>, vector<128x256xbf16>
    %c0_4 = arith.constant 0 : index
    %c0_5 = arith.constant 0 : index
    %5 = vector.load %arg3[%c0_4, %c0_5] : memref<256x128xbf16, #tpu.memory_space<vmem>>, vector<256x128xbf16>
    %cst = arith.constant dense<0.000000e+00> : vector<128x128xf32>
    %6 = tpu.matmul %4, %5, %cst {dimension_numbers = #tpu.dot_dimension_numbers<[1], [0], [0], [1], [0, 0, 1, 1], [], []>} : vector<128x256xbf16>, vector<256x128xbf16>, vector<128x128xf32> -> vector<128x128xf32>
    %7 = arith.addf %3, %6 : vector<128x128xf32>
    %c0_6 = arith.constant 0 : index
    %c0_7 = arith.constant 0 : index
    %8 = vector.load %arg12[%c0_6, %c0_7] : memref<128x128xf32, #tpu.memory_space<vmem>>, vector<128x128xf32>
    tpu.vector_store %arg12[%c0_6, %c0_7], %7 {strides = array<i32>} : memref<128x128xf32, #tpu.memory_space<vmem>>, vector<128x128xf32>,
    %c0_i32_8 = arith.constant 0 : i32
    %9 = arith.cmpi eq, %arg1, %c0_i32_8 : i32
    %10 = arith.extui %9 : i1 to i32
    %c0_i32_9 = arith.constant 0 : i32
    %11 = arith.cmpi ne, %10, %c0_i32_9 : i32
    scf.if %11 {
      %c0_10 = arith.constant 0 : index
      %c0_11 = arith.constant 0 : index
      %12 = vector.load %arg12[%c0_10, %c0_11] : memref<128x128xf32, #tpu.memory_space<vmem>>, vector<128x128xf32>
      %c0_12 = arith.constant 0 : index
      %c0_13 = arith.constant 0 : index
      %13 = vector.load %arg5[%c0_12, %c0_13] : memref<128x1xf32, #tpu.memory_space<vmem>>, vector<128x1xf32>
      %14 = vector.broadcast %13 : vector<128x1xf32> to vector<128x128xf32>
      %15 = arith.mulf %12, %14 : vector<128x128xf32>
      %16 = arith.truncf %15 : vector<128x128xf32> to vector<128x128xbf16>
      %c0_14 = arith.constant 0 : index
      %c0_15 = arith.constant 0 : index
      %17 = vector.load %arg6[%c0_14, %c0_15] : memref<128x128xbf16, #tpu.memory_space<vmem>>, vector<128x128xbf16>
      %cst_16 = arith.constant dense<0.000000e+00> : vector<128x128xf32>
      %18 = tpu.matmul %16, %17, %cst_16 {dimension_numbers = #tpu.dot_dimension_numbers<[1], [0], [0], [1], [0, 0, 1, 1], [], []>} : vector<128x128xbf16>, vector<128x128xbf16>, vector<128x128xf32> -> vector<128x128xf32>
      %c0_17 = arith.constant 0 : index
      %c0_18 = arith.constant 0 : index
      %19 = vector.load %arg4[%c0_17, %c0_18] : memref<128x128xbf16, #tpu.memory_space<vmem>>, vector<128x128xbf16>
      %c0_19 = arith.constant 0 : index
      %c0_20 = arith.constant 0 : index
      %20 = vector.load %arg7[%c0_19, %c0_20] : memref<128x128xbf16, #tpu.memory_space<vmem>>, vector<128x128xbf16>
      %cst_21 = arith.constant dense<0.000000e+00> : vector<128x128xf32>
      %21 = tpu.matmul %19, %20, %cst_21 {dimension_numbers = #tpu.dot_dimension_numbers<[1], [0], [0], [1], [0, 0, 1, 1], [], []>} : vector<128x128xbf16>, vector<128x128xbf16>, vector<128x128xf32> -> vector<128x128xf32>
      %22 = arith.addf %18, %21 : vector<128x128xf32>
      %c0_22 = arith.constant 0 : index
      %c0_23 = arith.constant 0 : index
      %23 = vector.load %arg8[%c0_22, %c0_23] : memref<1x128xf32, #tpu.memory_space<vmem>>, vector<1x128xf32>
      %24 = vector.broadcast %23 : vector<1x128xf32> to vector<128x128xf32>
      %25 = arith.addf %22, %24 : vector<128x128xf32>
      %cst_24 = arith.constant dense<0.000000e+00> : vector<128xf32>
      %26 = vector.multi_reduction <add>, %25, %cst_24 [1] : vector<128x128xf32> to vector<128xf32>
      %27 = vector.shape_cast %26 : vector<128xf32> to vector<128x1xf32>
      %cst_25 = arith.constant 1.280000e+02 : f32
      %28 = vector.broadcast %cst_25 : f32 to vector<128x1xf32>
      %29 = arith.divf %27, %28 : vector<128x1xf32>
      %30 = vector.broadcast %29 : vector<128x1xf32> to vector<128x128xf32>
      %31 = arith.subf %25, %30 : vector<128x128xf32>
      %32 = vector.broadcast %29 : vector<128x1xf32> to vector<128x128xf32>
      %33 = arith.subf %25, %32 : vector<128x128xf32>
      %34 = arith.mulf %31, %33 : vector<128x128xf32>
      %cst_26 = arith.constant dense<0.000000e+00> : vector<128xf32>
      %35 = vector.multi_reduction <add>, %34, %cst_26 [1] : vector<128x128xf32> to vector<128xf32>
      %36 = vector.shape_cast %35 : vector<128xf32> to vector<128x1xf32>
      %cst_27 = arith.constant 1.280000e+02 : f32
      %37 = vector.broadcast %cst_27 : f32 to vector<128x1xf32>
      %38 = arith.divf %36, %37 : vector<128x1xf32>
      %39 = vector.broadcast %29 : vector<128x1xf32> to vector<128x128xf32>
      %40 = arith.subf %25, %39 : vector<128x128xf32>
      %cst_28 = arith.constant 9.99999974E-6 : f32
      %41 = vector.broadcast %cst_28 : f32 to vector<128x1xf32>
      %42 = arith.addf %38, %41 : vector<128x1xf32>
      %43 = math.rsqrt %42 : vector<128x1xf32>
      %44 = vector.broadcast %43 : vector<128x1xf32> to vector<128x128xf32>
      %45 = arith.mulf %40, %44 : vector<128x128xf32>
      %c0_29 = arith.constant 0 : index
      %c0_30 = arith.constant 0 : index
      %46 = vector.load %arg9[%c0_29, %c0_30] : memref<1x128xf32, #tpu.memory_space<vmem>>, vector<1x128xf32>
      %47 = vector.broadcast %46 : vector<1x128xf32> to vector<128x128xf32>
      %48 = arith.mulf %45, %47 : vector<128x128xf32>
      %c0_31 = arith.constant 0 : index
      %c0_32 = arith.constant 0 : index
      %49 = vector.load %arg10[%c0_31, %c0_32] : memref<1x128xf32, #tpu.memory_space<vmem>>, vector<1x128xf32>
      %50 = vector.broadcast %49 : vector<1x128xf32> to vector<128x128xf32>
      %51 = arith.addf %48, %50 : vector<128x128xf32>
      %cst_33 = arith.constant 0.000000e+00 : f32
      %52 = vector.broadcast %cst_33 : f32 to vector<128x128xf32>
      %53 = arith.maximumf %51, %52 : vector<128x128xf32>
      %54 = arith.truncf %53 : vector<128x128xf32> to vector<128x128xbf16>
      %c0_34 = arith.constant 0 : index
      %c0_35 = arith.constant 0 : index
      %55 = vector.load %arg11[%c0_34, %c0_35] : memref<128x128xbf16, #tpu.memory_space<vmem>>, vector<128x128xbf16>
      tpu.vector_store %arg11[%c0_34, %c0_35], %54 {strides = array<i32>} : memref<128x128xbf16, #tpu.memory_space<vmem>>, vector<128x128xbf16>,
    } else {
    }
    return
  }
  func.func @transform_0(%arg0: i32, %arg1: i32) -> (i32, i32) {
    %c0_i32 = arith.constant 0 : i32
    return %arg0, %arg1 : i32, i32
  }
  func.func @transform_1(%arg0: i32, %arg1: i32) -> (i32, i32) {
    %c0_i32 = arith.constant 0 : i32
    %c0_i32_0 = arith.constant 0 : i32
    return %arg1, %c0_i32 : i32, i32
  }
  func.func @transform_2(%arg0: i32, %arg1: i32) -> (i32, i32) {
    %c0_i32 = arith.constant 0 : i32
    %c0_i32_0 = arith.constant 0 : i32
    return %arg0, %c0_i32 : i32, i32
  }
  func.func @transform_3(%arg0: i32, %arg1: i32) -> (i32, i32) {
    %c0_i32 = arith.constant 0 : i32
    %c0_i32_0 = arith.constant 0 : i32
    return %arg0, %c0_i32 : i32, i32
  }
  func.func @transform_4(%arg0: i32, %arg1: i32) -> (i32, i32) {
    %c0_i32 = arith.constant 0 : i32
    %c0_i32_0 = arith.constant 0 : i32
    %c0_i32_1 = arith.constant 0 : i32
    return %c0_i32, %c0_i32_0 : i32, i32
  }
  func.func @transform_5(%arg0: i32, %arg1: i32) -> (i32, i32) {
    %c0_i32 = arith.constant 0 : i32
    %c0_i32_0 = arith.constant 0 : i32
    %c0_i32_1 = arith.constant 0 : i32
    return %c0_i32, %c0_i32_0 : i32, i32
  }
  func.func @transform_6(%arg0: i32, %arg1: i32) -> (i32, i32) {
    %c0_i32 = arith.constant 0 : i32
    %c0_i32_0 = arith.constant 0 : i32
    %c0_i32_1 = arith.constant 0 : i32
    return %c0_i32, %c0_i32_0 : i32, i32
  }
  func.func @transform_7(%arg0: i32, %arg1: i32) -> (i32, i32) {
    %c0_i32 = arith.constant 0 : i32
    %c0_i32_0 = arith.constant 0 : i32
    %c0_i32_1 = arith.constant 0 : i32
    return %c0_i32, %c0_i32_0 : i32, i32
  }
  func.func @transform_8(%arg0: i32, %arg1: i32) -> (i32, i32) {
    %c0_i32 = arith.constant 0 : i32
    %c0_i32_0 = arith.constant 0 : i32
    %c0_i32_1 = arith.constant 0 : i32
    return %c0_i32, %c0_i32_0 : i32, i32
  }
  func.func @transform_9(%arg0: i32, %arg1: i32) -> (i32, i32) {
    %c0_i32 = arith.constant 0 : i32
    %c0_i32_0 = arith.constant 0 : i32
    return %arg0, %c0_i32 : i32, i32
  }
}

module attributes {stable_mosaic.version = 11 : i64} {
  func.func @_sage_layer_kernel(%arg0: i32, %arg1: i32, %arg2: memref<128x256xbf16, #tpu.memory_space<vmem>>, %arg3: memref<256x128xbf16, #tpu.memory_space<vmem>>, %arg4: memref<128x128xbf16, #tpu.memory_space<vmem>>, %arg5: memref<128x1xf32, #tpu.memory_space<vmem>>, %arg6: memref<128x128xbf16, #tpu.memory_space<vmem>>, %arg7: memref<128x128xbf16, #tpu.memory_space<vmem>>, %arg8: memref<1x128xf32, #tpu.memory_space<vmem>>, %arg9: memref<1x128xf32, #tpu.memory_space<vmem>>, %arg10: memref<1x128xf32, #tpu.memory_space<vmem>>, %arg11: memref<128x128xf32, #tpu.memory_space<vmem>>, %arg12: memref<128x128xf32, #tpu.memory_space<vmem>>) attributes {dimension_semantics = [#tpu.dimension_semantics<parallel>, #tpu.dimension_semantics<arbitrary>], iteration_bounds = array<i64: 2, 1>, scalar_prefetch = 0 : i64, scratch_operands = 1 : i64, tpu.core_type = #tpu.core_type<tc>, window_params = [{transform_indices = @transform_0, window_bounds = array<i64: 128, 256>}, {transform_indices = @transform_1, window_bounds = array<i64: 256, 128>}, {transform_indices = @transform_2, window_bounds = array<i64: 128, 128>}, {transform_indices = @transform_3, window_bounds = array<i64: 128, 1>}, {pipeline_mode = #tpu.pipeline_mode<synchronous>, transform_indices = @transform_4, window_bounds = array<i64: 128, 128>}, {pipeline_mode = #tpu.pipeline_mode<synchronous>, transform_indices = @transform_5, window_bounds = array<i64: 128, 128>}, {pipeline_mode = #tpu.pipeline_mode<synchronous>, transform_indices = @transform_6, window_bounds = array<i64: 1, 128>}, {pipeline_mode = #tpu.pipeline_mode<synchronous>, transform_indices = @transform_7, window_bounds = array<i64: 1, 128>}, {pipeline_mode = #tpu.pipeline_mode<synchronous>, transform_indices = @transform_8, window_bounds = array<i64: 1, 128>}, {transform_indices = @transform_9, window_bounds = array<i64: 128, 128>}]} {
    %c0_i32 = arith.constant 0 : i32
    %0 = arith.cmpi eq, %arg1, %c0_i32 : i32
    %1 = arith.extui %0 : i1 to i32
    %c0_i32_0 = arith.constant 0 : i32
    %2 = arith.cmpi ne, %1, %c0_i32_0 : i32
    scf.if %2 {
      %cst_10 = arith.constant 0.000000e+00 : f32
      %12 = vector.broadcast %cst_10 : f32 to vector<128x128xf32>
      %c0_11 = arith.constant 0 : index
      %c0_12 = arith.constant 0 : index
      %13 = vector.load %arg12[%c0_11, %c0_12] : memref<128x128xf32, #tpu.memory_space<vmem>>, vector<128x128xf32>
      tpu.vector_store %arg12[%c0_11, %c0_12], %12 {strides = array<i32>} : memref<128x128xf32, #tpu.memory_space<vmem>>, vector<128x128xf32>,
    } else {
    }
    %c0 = arith.constant 0 : index
    %c0_1 = arith.constant 0 : index
    %3 = vector.load %arg12[%c0, %c0_1] : memref<128x128xf32, #tpu.memory_space<vmem>>, vector<128x128xf32>
    %c0_2 = arith.constant 0 : index
    %c0_3 = arith.constant 0 : index
    %4 = vector.load %arg2[%c0_2, %c0_3] : memref<128x256xbf16, #tpu.memory_space<vmem>>, vector<128x256xbf16>
    %c0_4 = arith.constant 0 : index
    %c0_5 = arith.constant 0 : index
    %5 = vector.load %arg3[%c0_4, %c0_5] : memref<256x128xbf16, #tpu.memory_space<vmem>>, vector<256x128xbf16>
    %cst = arith.constant dense<0.000000e+00> : vector<128x128xf32>
    %6 = tpu.matmul %4, %5, %cst {dimension_numbers = #tpu.dot_dimension_numbers<[1], [0], [0], [1], [0, 0, 1, 1], [], []>} : vector<128x256xbf16>, vector<256x128xbf16>, vector<128x128xf32> -> vector<128x128xf32>
    %7 = arith.addf %3, %6 : vector<128x128xf32>
    %c0_6 = arith.constant 0 : index
    %c0_7 = arith.constant 0 : index
    %8 = vector.load %arg12[%c0_6, %c0_7] : memref<128x128xf32, #tpu.memory_space<vmem>>, vector<128x128xf32>
    tpu.vector_store %arg12[%c0_6, %c0_7], %7 {strides = array<i32>} : memref<128x128xf32, #tpu.memory_space<vmem>>, vector<128x128xf32>,
    %c0_i32_8 = arith.constant 0 : i32
    %9 = arith.cmpi eq, %arg1, %c0_i32_8 : i32
    %10 = arith.extui %9 : i1 to i32
    %c0_i32_9 = arith.constant 0 : i32
    %11 = arith.cmpi ne, %10, %c0_i32_9 : i32
    scf.if %11 {
      %c0_10 = arith.constant 0 : index
      %c0_11 = arith.constant 0 : index
      %12 = vector.load %arg12[%c0_10, %c0_11] : memref<128x128xf32, #tpu.memory_space<vmem>>, vector<128x128xf32>
      %c0_12 = arith.constant 0 : index
      %c0_13 = arith.constant 0 : index
      %13 = vector.load %arg5[%c0_12, %c0_13] : memref<128x1xf32, #tpu.memory_space<vmem>>, vector<128x1xf32>
      %14 = vector.broadcast %13 : vector<128x1xf32> to vector<128x128xf32>
      %15 = arith.mulf %12, %14 : vector<128x128xf32>
      %16 = arith.truncf %15 : vector<128x128xf32> to vector<128x128xbf16>
      %c0_14 = arith.constant 0 : index
      %c0_15 = arith.constant 0 : index
      %17 = vector.load %arg6[%c0_14, %c0_15] : memref<128x128xbf16, #tpu.memory_space<vmem>>, vector<128x128xbf16>
      %cst_16 = arith.constant dense<0.000000e+00> : vector<128x128xf32>
      %18 = tpu.matmul %16, %17, %cst_16 {dimension_numbers = #tpu.dot_dimension_numbers<[1], [0], [0], [1], [0, 0, 1, 1], [], []>} : vector<128x128xbf16>, vector<128x128xbf16>, vector<128x128xf32> -> vector<128x128xf32>
      %c0_17 = arith.constant 0 : index
      %c0_18 = arith.constant 0 : index
      %19 = vector.load %arg4[%c0_17, %c0_18] : memref<128x128xbf16, #tpu.memory_space<vmem>>, vector<128x128xbf16>
      %c0_19 = arith.constant 0 : index
      %c0_20 = arith.constant 0 : index
      %20 = vector.load %arg7[%c0_19, %c0_20] : memref<128x128xbf16, #tpu.memory_space<vmem>>, vector<128x128xbf16>
      %cst_21 = arith.constant dense<0.000000e+00> : vector<128x128xf32>
      %21 = tpu.matmul %19, %20, %cst_21 {dimension_numbers = #tpu.dot_dimension_numbers<[1], [0], [0], [1], [0, 0, 1, 1], [], []>} : vector<128x128xbf16>, vector<128x128xbf16>, vector<128x128xf32> -> vector<128x128xf32>
      %22 = arith.addf %18, %21 : vector<128x128xf32>
      %c0_22 = arith.constant 0 : index
      %c0_23 = arith.constant 0 : index
      %23 = vector.load %arg8[%c0_22, %c0_23] : memref<1x128xf32, #tpu.memory_space<vmem>>, vector<1x128xf32>
      %24 = vector.broadcast %23 : vector<1x128xf32> to vector<128x128xf32>
      %25 = arith.addf %22, %24 : vector<128x128xf32>
      %c0_24 = arith.constant 0 : index
      %c0_25 = arith.constant 0 : index
      %26 = vector.load %arg11[%c0_24, %c0_25] : memref<128x128xf32, #tpu.memory_space<vmem>>, vector<128x128xf32>
      tpu.vector_store %arg11[%c0_24, %c0_25], %25 {strides = array<i32>} : memref<128x128xf32, #tpu.memory_space<vmem>>, vector<128x128xf32>,
    } else {
    }
    return
  }
  func.func @transform_0(%arg0: i32, %arg1: i32) -> (i32, i32) {
    %c0_i32 = arith.constant 0 : i32
    return %arg0, %arg1 : i32, i32
  }
  func.func @transform_1(%arg0: i32, %arg1: i32) -> (i32, i32) {
    %c0_i32 = arith.constant 0 : i32
    %c0_i32_0 = arith.constant 0 : i32
    return %arg1, %c0_i32 : i32, i32
  }
  func.func @transform_2(%arg0: i32, %arg1: i32) -> (i32, i32) {
    %c0_i32 = arith.constant 0 : i32
    %c0_i32_0 = arith.constant 0 : i32
    return %arg0, %c0_i32 : i32, i32
  }
  func.func @transform_3(%arg0: i32, %arg1: i32) -> (i32, i32) {
    %c0_i32 = arith.constant 0 : i32
    %c0_i32_0 = arith.constant 0 : i32
    return %arg0, %c0_i32 : i32, i32
  }
  func.func @transform_4(%arg0: i32, %arg1: i32) -> (i32, i32) {
    %c0_i32 = arith.constant 0 : i32
    %c0_i32_0 = arith.constant 0 : i32
    %c0_i32_1 = arith.constant 0 : i32
    return %c0_i32, %c0_i32_0 : i32, i32
  }
  func.func @transform_5(%arg0: i32, %arg1: i32) -> (i32, i32) {
    %c0_i32 = arith.constant 0 : i32
    %c0_i32_0 = arith.constant 0 : i32
    %c0_i32_1 = arith.constant 0 : i32
    return %c0_i32, %c0_i32_0 : i32, i32
  }
  func.func @transform_6(%arg0: i32, %arg1: i32) -> (i32, i32) {
    %c0_i32 = arith.constant 0 : i32
    %c0_i32_0 = arith.constant 0 : i32
    %c0_i32_1 = arith.constant 0 : i32
    return %c0_i32, %c0_i32_0 : i32, i32
  }
  func.func @transform_7(%arg0: i32, %arg1: i32) -> (i32, i32) {
    %c0_i32 = arith.constant 0 : i32
    %c0_i32_0 = arith.constant 0 : i32
    %c0_i32_1 = arith.constant 0 : i32
    return %c0_i32, %c0_i32_0 : i32, i32
  }
  func.func @transform_8(%arg0: i32, %arg1: i32) -> (i32, i32) {
    %c0_i32 = arith.constant 0 : i32
    %c0_i32_0 = arith.constant 0 : i32
    %c0_i32_1 = arith.constant 0 : i32
    return %c0_i32, %c0_i32_0 : i32, i32
  }
  func.func @transform_9(%arg0: i32, %arg1: i32) -> (i32, i32) {
    %c0_i32 = arith.constant 0 : i32
    %c0_i32_0 = arith.constant 0 : i32
    return %arg0, %c0_i32 : i32, i32
  }
}

</mosaic_0001>

<llo_original>
// kernel: emma_sage_forward.5
$region0: #{emma_sage_forward.5}
  #allocation0 [shape = 'u32[]', space=smem, size = 0x4, offset = 0x4, fixed_abs, tag = 'smem constant byte address 0x4 - core index']
  #allocation1 [shape = 'u32[144,128]{1,0:T(1,128)}', space=vmem, size = 0x12000, scoped, tag = 'internal scratch']
  #allocation2 [shape = 'f32[128,128]{1,0:T(8,128)}', space=vmem, size = 0x10000, scoped, tag = 'scratch operand']
  %s0 = inlined_call_operand.vmem [shape: bf16[256,256], index: 0, kind: input, shape index: {}]
  %s1 = inlined_call_operand.vmem [shape: bf16[256,128], index: 1, kind: input, shape index: {}, may-alias: {1,2}]
  %s2 = inlined_call_operand.vmem [shape: bf16[256,128], index: 2, kind: input, shape index: {}, may-alias: {1,2}]
  %s3 = inlined_call_operand.vmem [shape: f32[256,1], index: 3, kind: input, shape index: {}]
  %s4 = inlined_call_operand.vmem [shape: bf16[128,128], index: 4, kind: input, shape index: {}]
  %s5 = inlined_call_operand.vmem [shape: bf16[128,128], index: 5, kind: input, shape index: {}]
  %s6 = inlined_call_operand.vmem [shape: f32[1,128], index: 6, kind: input, shape index: {}]
  %s7 = inlined_call_operand.vmem [shape: f32[1,128], index: 7, kind: input, shape index: {}]
  %s8 = inlined_call_operand.vmem [shape: f32[1,128], index: 8, kind: input, shape index: {}]
  %s9 = inlined_call_operand.hbm [shape: f32[256,128], index: 9, kind: output, shape index: {}]
  %s10 = sld [smem:[#allocation0]]
  $region77: #{emma_sage_forward.5} parent=0
    _
  %s12 = ssub.s32 1, %s10
  %s13 = scalar_select 0, %s12, %s10
  $region1: #{emma_sage_forward.5} parent=0
    #allocation3 [shape = 'u8[131072]{0}', space=vmem, size = 0x20000, scoped, tag = 'output window, operand 0']
    #allocation4 [shape = 's32[2]{0}', space=sflag, size = 0x8, scoped, tag = 'scoped memory for emma_sage_forward.5']
    %14 = vsyncpa [#allocation4], 0
    %s15 = scalar_lea.sflag [#allocation4], 1
    %16 = vsyncpa %s15, 0
    loop: start=0, step=1, limit=4
    $region2: #{emma_sage_forward.5} parent=1 // loop_pre_header
      _
    $region3: #{emma_sage_forward.5} parent=1 // loop_header
      %s18 = sphi 0, %s22
      %p19 = scmp.ge.s32.totalorder %s18, 4
      %s25 = sphi 0, %s37
      %s26 = sphi 0, %s33
      %s27 = sphi 0, %s25
      %s28 = sphi 0, %s26
      %s29 = sphi 0, %s27
      %s30 = sphi 0, %s28
      %s42 = sphi 0, %s44
      %s45 = sphi 0, %s42
      %s46 = sphi 0, %s45
      %s62 = sphi 0, %s46
      %s68 = sphi 0, %s70
      %s71 = sphi 0, %s68
      %s72 = sphi 0, %s71
      %s88 = sphi 0, %s72
      %s94 = sphi 0, %s96
      %s97 = sphi 0, %s94
      %s98 = sphi 0, %s97
      %s114 = sphi 0, %s98
      %s120 = sphi 0, %s122
      %s123 = sphi 0, %s120
      %s124 = sphi 0, %s123
      %s140 = sphi 0, %s124
      %s144 = sphi 0, %s144
      %s146 = sphi 0, %s144
      %s147 = sphi 0, %s146
      %s161 = sphi 0, %s147
      %s165 = sphi 0, %s165
      %s167 = sphi 0, %s165
      %s168 = sphi 0, %s167
      %s182 = sphi 0, %s168
      %s186 = sphi 0, %s186
      %s188 = sphi 0, %s186
      %s189 = sphi 0, %s188
      %s203 = sphi 0, %s189
      %s207 = sphi 0, %s207
      %s209 = sphi 0, %s207
      %s210 = sphi 0, %s209
      %s224 = sphi 0, %s210
      %s228 = sphi 0, %s228
      %s230 = sphi 0, %s228
      %s231 = sphi 0, %s230
      %s245 = sphi 0, %s231
      %s251 = sphi 0, %s253
      %s254 = sphi 0, %s251
      %s255 = sphi 0, %s254
      %s271 = sphi 0, %s255
    $region4: #{emma_sage_forward.5} parent=1 // loop_header_branch
      %21 = sbr.rel (%p19) target = $region8
    $region5: #{emma_sage_forward.5} parent=1 // loop_body
      %s23 = ssub.s32 %s18, 1
      %s24 = ssub.s32 %s18, 2
      %s31 = sadd.s32 1, %s26
      %p32 = scmp.ge.s32.totalorder %s31, 1
      %s33 = scalar_select %p32, 0, %s31
      %s34 = sadd.s32 1, %s25
      %s35 = scalar_select %p32, %s34, %s25
      %p36 = scmp.ge.s32.totalorder %s35, 2
      %s37 = scalar_select %p36, 0, %s35
      %s38 = ssub.s32 %s25, %s37
      %s39 = ssub.s32 %s26, %s33
      %s40 = sor.u32 %s38, %s39
      %p41 = scmp.eq.s32.totalorder %s40, 0
      %s43 = sadd.s32 %s42, 1
      %s44 = scalar_select %p41, %s42, %s43
      %p47 = pneg %p41
      %p48 = scmp.eq.s32.totalorder %s18, 1
      %p49 = por %p47, %p48
      %p50 = scmp.ne.s32.totalorder %s42, %s45
      %p51 = scmp.eq.s32.totalorder %s18, 0
      %p52 = por %p50, %p51
      %p53 = scmp.ne.s32.totalorder %s42, %s45
      %p54 = scmp.eq.s32.totalorder %s23, 1
      %p55 = por %p53, %p54
      %p56 = scmp.ne.s32.totalorder %s45, %s46
      %p57 = scmp.eq.s32.totalorder %s23, 0
      %p58 = por %p56, %p57
      %p59 = scmp.ne.s32.totalorder %s45, %s46
      %p60 = scmp.eq.s32.totalorder %s24, 1
      %p61 = por %p59, %p60
      %p63 = scmp.ne.s32.totalorder %s46, %s62
      %p64 = scmp.eq.s32.totalorder %s24, 0
      %p65 = por %p63, %p64
      %s66 = ssub.s32 %s26, %s33
      %p67 = scmp.eq.s32.totalorder %s66, 0
      %s69 = sadd.s32 %s68, 1
      %s70 = scalar_select %p67, %s68, %s69
      %p73 = pneg %p67
      %p74 = scmp.eq.s32.totalorder %s18, 1
      %p75 = por %p73, %p74
      %p76 = scmp.ne.s32.totalorder %s68, %s71
      %p77 = scmp.eq.s32.totalorder %s18, 0
      %p78 = por %p76, %p77
      %p79 = scmp.ne.s32.totalorder %s68, %s71
      %p80 = scmp.eq.s32.totalorder %s23, 1
      %p81 = por %p79, %p80
      %p82 = scmp.ne.s32.totalorder %s71, %s72
      %p83 = scmp.eq.s32.totalorder %s23, 0
      %p84 = por %p82, %p83
      %p85 = scmp.ne.s32.totalorder %s71, %s72
      %p86 = scmp.eq.s32.totalorder %s24, 1
      %p87 = por %p85, %p86
      %p89 = scmp.ne.s32.totalorder %s72, %s88
      %p90 = scmp.eq.s32.totalorder %s24, 0
      %p91 = por %p89, %p90
      %s92 = ssub.s32 %s25, %s37
      %p93 = scmp.eq.s32.totalorder %s92, 0
      %s95 = sadd.s32 %s94, 1
      %s96 = scalar_select %p93, %s94, %s95
      %p99 = pneg %p93
      %p100 = scmp.eq.s32.totalorder %s18, 1
      %p101 = por %p99, %p100
      %p102 = scmp.ne.s32.totalorder %s94, %s97
      %p103 = scmp.eq.s32.totalorder %s18, 0
      %p104 = por %p102, %p103
      %p105 = scmp.ne.s32.totalorder %s94, %s97
      %p106 = scmp.eq.s32.totalorder %s23, 1
      %p107 = por %p105, %p106
      %p108 = scmp.ne.s32.totalorder %s97, %s98
      %p109 = scmp.eq.s32.totalorder %s23, 0
      %p110 = por %p108, %p109
      %p111 = scmp.ne.s32.totalorder %s97, %s98
      %p112 = scmp.eq.s32.totalorder %s24, 1
      %p113 = por %p111, %p112
      %p115 = scmp.ne.s32.totalorder %s98, %s114
      %p116 = scmp.eq.s32.totalorder %s24, 0
      %p117 = por %p115, %p116
      %s118 = ssub.s32 %s25, %s37
      %p119 = scmp.eq.s32.totalorder %s118, 0
      %s121 = sadd.s32 %s120, 1
      %s122 = scalar_select %p119, %s120, %s121
      %p125 = pneg %p119
      %p126 = scmp.eq.s32.totalorder %s18, 1
      %p127 = por %p125, %p126
      %p128 = scmp.ne.s32.totalorder %s120, %s123
      %p129 = scmp.eq.s32.totalorder %s18, 0
      %p130 = por %p128, %p129
      %p131 = scmp.ne.s32.totalorder %s120, %s123
      %p132 = scmp.eq.s32.totalorder %s23, 1
      %p133 = por %p131, %p132
      %p134 = scmp.ne.s32.totalorder %s123, %s124
      %p135 = scmp.eq.s32.totalorder %s23, 0
      %p136 = por %p134, %p135
      %p137 = scmp.ne.s32.totalorder %s123, %s124
      %p138 = scmp.eq.s32.totalorder %s24, 1
      %p139 = por %p137, %p138
      %p141 = scmp.ne.s32.totalorder %s124, %s140
      %p142 = scmp.eq.s32.totalorder %s24, 0
      %p143 = por %p141, %p142
      %s145 = sadd.s32 %s144, 1
      %p148 = scmp.eq.s32.totalorder %s18, 1
      %p149 = scmp.ne.s32.totalorder %s144, %s146
      %p150 = scmp.eq.s32.totalorder %s18, 0
      %p151 = por %p149, %p150
      %p152 = scmp.ne.s32.totalorder %s144, %s146
      %p153 = scmp.eq.s32.totalorder %s23, 1
      %p154 = por %p152, %p153
      %p155 = scmp.ne.s32.totalorder %s146, %s147
      %p156 = scmp.eq.s32.totalorder %s23, 0
      %p157 = por %p155, %p156
      %p158 = scmp.ne.s32.totalorder %s146, %s147
      %p159 = scmp.eq.s32.totalorder %s24, 1
      %p160 = por %p158, %p159
      %p162 = scmp.ne.s32.totalorder %s147, %s161
      %p163 = scmp.eq.s32.totalorder %s24, 0
      %p164 = por %p162, %p163
      %s166 = sadd.s32 %s165, 1
      %p169 = scmp.eq.s32.totalorder %s18, 1
      %p170 = scmp.ne.s32.totalorder %s165, %s167
      %p171 = scmp.eq.s32.totalorder %s18, 0
      %p172 = por %p170, %p171
      %p173 = scmp.ne.s32.totalorder %s165, %s167
      %p174 = scmp.eq.s32.totalorder %s23, 1
      %p175 = por %p173, %p174
      %p176 = scmp.ne.s32.totalorder %s167, %s168
      %p177 = scmp.eq.s32.totalorder %s23, 0
      %p178 = por %p176, %p177
      %p179 = scmp.ne.s32.totalorder %s167, %s168
      %p180 = scmp.eq.s32.totalorder %s24, 1
      %p181 = por %p179, %p180
      %p183 = scmp.ne.s32.totalorder %s168, %s182
      %p184 = scmp.eq.s32.totalorder %s24, 0
      %p185 = por %p183, %p184
      %s187 = sadd.s32 %s186, 1
      %p190 = scmp.eq.s32.totalorder %s18, 1
      %p191 = scmp.ne.s32.totalorder %s186, %s188
      %p192 = scmp.eq.s32.totalorder %s18, 0
      %p193 = por %p191, %p192
      %p194 = scmp.ne.s32.totalorder %s186, %s188
      %p195 = scmp.eq.s32.totalorder %s23, 1
      %p196 = por %p194, %p195
      %p197 = scmp.ne.s32.totalorder %s188, %s189
      %p198 = scmp.eq.s32.totalorder %s23, 0
      %p199 = por %p197, %p198
      %p200 = scmp.ne.s32.totalorder %s188, %s189
      %p201 = scmp.eq.s32.totalorder %s24, 1
      %p202 = por %p200, %p201
      %p204 = scmp.ne.s32.totalorder %s189, %s203
      %p205 = scmp.eq.s32.totalorder %s24, 0
      %p206 = por %p204, %p205
      %s208 = sadd.s32 %s207, 1
      %p211 = scmp.eq.s32.totalorder %s18, 1
      %p212 = scmp.ne.s32.totalorder %s207, %s209
      %p213 = scmp.eq.s32.totalorder %s18, 0
      %p214 = por %p212, %p213
      %p215 = scmp.ne.s32.totalorder %s207, %s209
      %p216 = scmp.eq.s32.totalorder %s23, 1
      %p217 = por %p215, %p216
      %p218 = scmp.ne.s32.totalorder %s209, %s210
      %p219 = scmp.eq.s32.totalorder %s23, 0
      %p220 = por %p218, %p219
      %p221 = scmp.ne.s32.totalorder %s209, %s210
      %p222 = scmp.eq.s32.totalorder %s24, 1
      %p223 = por %p221, %p222
      %p225 = scmp.ne.s32.totalorder %s210, %s224
      %p226 = scmp.eq.s32.totalorder %s24, 0
      %p227 = por %p225, %p226
      %s229 = sadd.s32 %s228, 1
      %p232 = scmp.eq.s32.totalorder %s18, 1
      %p233 = scmp.ne.s32.totalorder %s228, %s230
      %p234 = scmp.eq.s32.totalorder %s18, 0
      %p235 = por %p233, %p234
      %p236 = scmp.ne.s32.totalorder %s228, %s230
      %p237 = scmp.eq.s32.totalorder %s23, 1
      %p238 = por %p236, %p237
      %p239 = scmp.ne.s32.totalorder %s230, %s231
      %p240 = scmp.eq.s32.totalorder %s23, 0
      %p241 = por %p239, %p240
      %p242 = scmp.ne.s32.totalorder %s230, %s231
      %p243 = scmp.eq.s32.totalorder %s24, 1
      %p244 = por %p242, %p243
      %p246 = scmp.ne.s32.totalorder %s231, %s245
      %p247 = scmp.eq.s32.totalorder %s24, 0
      %p248 = por %p246, %p247
      %s249 = ssub.s32 %s25, %s37
      %p250 = scmp.eq.s32.totalorder %s249, 0
      %s252 = sadd.s32 %s251, 1
      %s253 = scalar_select %p250, %s251, %s252
      %p256 = pneg %p250
      %p257 = scmp.eq.s32.totalorder %s18, 1
      %p258 = por %p256, %p257
      %p259 = scmp.ne.s32.totalorder %s251, %s254
      %p260 = scmp.eq.s32.totalorder %s18, 0
      %p261 = por %p259, %p260
      %p262 = scmp.ne.s32.totalorder %s251, %s254
      %p263 = scmp.eq.s32.totalorder %s23, 1
      %p264 = por %p262, %p263
      %p265 = scmp.ne.s32.totalorder %s254, %s255
      %p266 = scmp.eq.s32.totalorder %s23, 0
      %p267 = por %p265, %p266
      %p268 = scmp.ne.s32.totalorder %s254, %s255
      %p269 = scmp.eq.s32.totalorder %s24, 1
      %p270 = por %p268, %p269
      %p272 = scmp.ne.s32.totalorder %s255, %s271
      %p273 = scmp.eq.s32.totalorder %s24, 0
      %p274 = por %p272, %p273
      %p275 = scmp.le.s32.totalorder 1, %s18
      %p276 = scmp.lt.s32.totalorder %s18, 3
      %p277 = pnand %p275, %p276
      %p278 = pneg %p277
      // Predicated region
      $region9: #{emma_sage_forward.5} parent=5 // pred_check
        _
      $region10: #{emma_sage_forward.5} parent=5 // pred_check_branch
        %280 = sbr.rel (%p277) target = $region12
      $region11: #{emma_sage_forward.5} parent=5 // pred_region
        %s281 = ssub.s32 %s18, 1
        // Predicated region
        $region13: #{emma_sage_forward.5} parent=11 // pred_check
          %p282 = pneg %p84
        $region14: #{emma_sage_forward.5} parent=11 // pred_check_branch
          %284 = sbr.rel (%p282) target = $region16
        $region15: #{emma_sage_forward.5} parent=11 // pred_region
          %s285 = smul.u32 32, %s28
          %p286 = scmp.lt.s32.totalorder %s285, 31
          %s287 = scalar_select %p286, %s285, 31
          %s288 = smul.addr %s287, 4
          %s289 = scalar_lea.vmem %s1, %s288
          %s290 = smul.u32 32, %s28
        $region16: #{emma_sage_forward.5} parent=11 // pred_fallthru
          _
        // Predicated region
        $region17: #{emma_sage_forward.5} parent=11 // pred_check
          %p291 = pneg %p157
        $region18: #{emma_sage_forward.5} parent=11 // pred_check_branch
          %293 = sbr.rel (%p291) target = $region20
        $region19: #{emma_sage_forward.5} parent=11 // pred_region
          _
        $region20: #{emma_sage_forward.5} parent=11 // pred_fallthru
          _
        // Predicated region
        $region21: #{emma_sage_forward.5} parent=11 // pred_check
          %p294 = pneg %p178
        $region22: #{emma_sage_forward.5} parent=11 // pred_check_branch
          %296 = sbr.rel (%p294) target = $region24
        $region23: #{emma_sage_forward.5} parent=11 // pred_region
          _
        $region24: #{emma_sage_forward.5} parent=11 // pred_fallthru
          _
        // Predicated region
        $region25: #{emma_sage_forward.5} parent=11 // pred_check
          %p297 = pneg %p199
        $region26: #{emma_sage_forward.5} parent=11 // pred_check_branch
          %299 = sbr.rel (%p297) target = $region28
        $region27: #{emma_sage_forward.5} parent=11 // pred_region
          _
        $region28: #{emma_sage_forward.5} parent=11 // pred_fallthru
          _
        // Predicated region
        $region29: #{emma_sage_forward.5} parent=11 // pred_check
          %p300 = pneg %p220
        $region30: #{emma_sage_forward.5} parent=11 // pred_check_branch
          %302 = sbr.rel (%p300) target = $region32
        $region31: #{emma_sage_forward.5} parent=11 // pred_region
          _
        $region32: #{emma_sage_forward.5} parent=11 // pred_fallthru
          _
        // Predicated region
        $region33: #{emma_sage_forward.5} parent=11 // pred_check
          %p303 = pneg %p241
        $region34: #{emma_sage_forward.5} parent=11 // pred_check_branch
          %305 = sbr.rel (%p303) target = $region36
        $region35: #{emma_sage_forward.5} parent=11 // pred_region
          _
        $region36: #{emma_sage_forward.5} parent=11 // pred_fallthru
          _
      $region12: #{emma_sage_forward.5} parent=5 // pred_fallthru
        _
      %p306 = scmp.lt.s32.totalorder %s18, 2
      // Predicated region
      $region37: #{emma_sage_forward.5} parent=5 // pred_check
        %p307 = pneg %p306
      $region38: #{emma_sage_forward.5} parent=5 // pred_check_branch
        %309 = sbr.rel (%p307) target = $region40
      $region39: #{emma_sage_forward.5} parent=5 // pred_region
        // Predicated region
        $region41: #{emma_sage_forward.5} parent=39 // pred_check
          %p310 = pneg %p52
        $region42: #{emma_sage_forward.5} parent=39 // pred_check_branch
          %312 = sbr.rel (%p310) target = $region44
        $region43: #{emma_sage_forward.5} parent=39 // pred_region
          %s313 = smul.u32 16, %s25
          %s314 = smul.u32 2, %s26
          %p315 = scmp.lt.s32.totalorder %s313, 31
          %s316 = scalar_select %p315, %s313, 31
          %p317 = scmp.lt.s32.totalorder %s314, 1
          %s318 = scalar_select %p317, %s314, 1
          %s319 = smul.addr %s316, 2
          %s320 = sadd.s32 %s318, %s319
          %s321 = smul.addr %s320, 4
          %s322 = scalar_lea.vmem %s0, %s321
          %s323 = smul.u32 16, %s25
          %s324 = smul.u32 2, %s26
        $region44: #{emma_sage_forward.5} parent=39 // pred_fallthru
          _
        // Predicated region
        $region45: #{emma_sage_forward.5} parent=39 // pred_check
          %p325 = pneg %p104
        $region46: #{emma_sage_forward.5} parent=39 // pred_check_branch
          %327 = sbr.rel (%p325) target = $region48
        $region47: #{emma_sage_forward.5} parent=39 // pred_region
          %s328 = smul.u32 16, %s25
          %p329 = scmp.lt.s32.totalorder %s328, 31
          %s330 = scalar_select %p329, %s328, 31
          %s331 = smul.addr %s330, 4
          %s332 = scalar_lea.vmem %s2, %s331
          %s333 = smul.u32 16, %s25
        $region48: #{emma_sage_forward.5} parent=39 // pred_fallthru
          _
        // Predicated region
        $region49: #{emma_sage_forward.5} parent=39 // pred_check
          %p334 = pneg %p130
        $region50: #{emma_sage_forward.5} parent=39 // pred_check_branch
          %336 = sbr.rel (%p334) target = $region52
        $region51: #{emma_sage_forward.5} parent=39 // pred_region
          %s337 = smul.u32 16, %s25
          %p338 = scmp.lt.s32.totalorder %s337, 31
          %s339 = scalar_select %p338, %s337, 31
          %s340 = smul.addr %s339, 8
          %s341 = scalar_lea.vmem %s3, %s340
          %s342 = smul.u32 16, %s25
        $region52: #{emma_sage_forward.5} parent=39 // pred_fallthru
          _
      $region40: #{emma_sage_forward.5} parent=5 // pred_fallthru
        _
      %p343 = scmp.le.s32.totalorder 1, %s18
      %p344 = scmp.lt.s32.totalorder %s18, 3
      %p345 = pnand %p343, %p344
      %p346 = pneg %p345
      // Predicated region
      $region53: #{emma_sage_forward.5} parent=5 // pred_check
        _
      $region54: #{emma_sage_forward.5} parent=5 // pred_check_branch
        %348 = sbr.rel (%p345) target = $region56
      $region55: #{emma_sage_forward.5} parent=5 // pred_region
        %s349 = ssub.s32 %s18, 1
        %s350 = smul.u32 16, %s27
        %s351 = smul.u32 2, %s28
        %p352 = scmp.lt.s32.totalorder %s350, 31
        %s353 = scalar_select %p352, %s350, 31
        %p354 = scmp.lt.s32.totalorder %s351, 1
        %s355 = scalar_select %p354, %s351, 1
        %s356 = smul.addr %s353, 2
        %s357 = sadd.s32 %s355, %s356
        %s358 = smul.addr %s357, 4
        %s359 = scalar_lea.vmem %s0, %s358
        %p360 = pneg %p58
        %p361 = pneg %p55
        %s362 = smul.u32 32, %s28
        %p363 = scmp.lt.s32.totalorder %s362, 31
        %s364 = scalar_select %p363, %s362, 31
        %s365 = smul.addr %s364, 4
        %s366 = scalar_lea.vmem %s1, %s365
        %p367 = pneg %p84
        %p368 = pneg %p81
        %s369 = smul.u32 16, %s27
        %p370 = scmp.lt.s32.totalorder %s369, 31
        %s371 = scalar_select %p370, %s369, 31
        %s372 = smul.addr %s371, 4
        %s373 = scalar_lea.vmem %s2, %s372
        %p374 = pneg %p110
        %p375 = pneg %p107
        %s376 = smul.u32 16, %s27
        %p377 = scmp.lt.s32.totalorder %s376, 31
        %s378 = scalar_select %p377, %s376, 31
        %s379 = smul.addr %s378, 8
        %s380 = scalar_lea.vmem %s3, %s379
        %p381 = pneg %p136
        %p382 = pneg %p133
        %p383 = pneg %p157
        %p384 = pneg %p154
        %p385 = pneg %p178
        %p386 = pneg %p175
        %p387 = pneg %p199
        %p388 = pneg %p196
        %p389 = pneg %p220
        %p390 = pneg %p217
        %p391 = pneg %p241
        %p392 = pneg %p238
        %p393 = pneg %p267
        %p394 = pneg %p264
        %s395 = sand.u32 %s254, 1
        %s396 = scalar_lea.sflag [#allocation4], %s395
        %s397 = sand.u32 %s254, 1
        %s398 = smul.addr %s397, 128
        %s399 = scalar_lea.vmem [#allocation3], %s398
        %s400 = smul.u32 16, %s27
        %s401 = smul.u32 2, %s28
        %p402 = scmp.lt.s32.totalorder %s400, 31
        %s403 = scalar_select %p402, %s400, 31
        %p404 = scmp.lt.s32.totalorder %s401, 1
        %s405 = scalar_select %p404, %s401, 1
        %s406 = smul.addr %s403, 2
        %s407 = sadd.s32 %s405, %s406
        %s408 = smul.addr %s407, 4
        %s409 = scalar_lea.vmem %s0, %s408
        %s410 = smul.u32 16, %s27
        %s411 = smul.u32 2, %s28
        %s412 = smul.u32 32, %s28
        %p413 = scmp.lt.s32.totalorder %s412, 31
        %s414 = scalar_select %p413, %s412, 31
        %s415 = smul.addr %s414, 4
        %s416 = scalar_lea.vmem %s1, %s415
        %s417 = smul.u32 32, %s28
        %s418 = smul.u32 16, %s27
        %p419 = scmp.lt.s32.totalorder %s418, 31
        %s420 = scalar_select %p419, %s418, 31
        %s421 = smul.addr %s420, 4
        %s422 = scalar_lea.vmem %s2, %s421
        %s423 = smul.u32 16, %s27
        %s424 = smul.u32 16, %s27
        %p425 = scmp.lt.s32.totalorder %s424, 31
        %s426 = scalar_select %p425, %s424, 31
        %s427 = smul.addr %s426, 8
        %s428 = scalar_lea.vmem %s3, %s427
        %s429 = smul.u32 16, %s27
        %s430 = smul.u32 16, %s27
        %p432 = scmp.eq.s32.totalorder %s28, 0
        // Predicated region
        $region57: #{emma_sage_forward.5} parent=55 // pred_check
          %p433 = pneg %p432
        $region58: #{emma_sage_forward.5} parent=55 // pred_check_branch
          %435 = sbr.rel (%p433) target = $region60
        $region59: #{emma_sage_forward.5} parent=55 // pred_region
          %436 = vst [vmem:[#allocation2] sm:$0xff] 0.0
          %437 = vst [vmem:[#allocation2 + $0x8] sm:$0xff] 0.0
          %438 = vst [vmem:[#allocation2 + $0x10] sm:$0xff] 0.0
          %439 = vst [vmem:[#allocation2 + $0x18] sm:$0xff] 0.0
          %440 = vst [vmem:[#allocation2 + $0x20] sm:$0xff] 0.0
          %441 = vst [vmem:[#allocation2 + $0x28] sm:$0xff] 0.0
          %442 = vst [vmem:[#allocation2 + $0x30] sm:$0xff] 0.0
          %443 = vst [vmem:[#allocation2 + $0x38] sm:$0xff] 0.0
          %444 = vst [vmem:[#allocation2 + $0x40] sm:$0xff] 0.0
          %445 = vst [vmem:[#allocation2 + $0x48] sm:$0xff] 0.0
          %446 = vst [vmem:[#allocation2 + $0x50] sm:$0xff] 0.0
          %447 = vst [vmem:[#allocation2 + $0x58] sm:$0xff] 0.0
          %448 = vst [vmem:[#allocation2 + $0x60] sm:$0xff] 0.0
          %449 = vst [vmem:[#allocation2 + $0x68] sm:$0xff] 0.0
          %450 = vst [vmem:[#allocation2 + $0x70] sm:$0xff] 0.0
          %451 = vst [vmem:[#allocation2 + $0x78] sm:$0xff] 0.0
        $region60: #{emma_sage_forward.5} parent=55 // pred_fallthru
          _
        %v452 = vld [vmem:[#allocation2] sm:$0xff]
        %v453 = vld [vmem:[#allocation2 + $0x8] sm:$0xff]
        %v454 = vld [vmem:[#allocation2 + $0x10] sm:$0xff]
        %v455 = vld [vmem:[#allocation2 + $0x18] sm:$0xff]
        %v456 = vld [vmem:[#allocation2 + $0x20] sm:$0xff]
        %v457 = vld [vmem:[#allocation2 + $0x28] sm:$0xff]
        %v458 = vld [vmem:[#allocation2 + $0x30] sm:$0xff]
        %v459 = vld [vmem:[#allocation2 + $0x38] sm:$0xff]
        %v460 = vld [vmem:[#allocation2 + $0x40] sm:$0xff]
        %v461 = vld [vmem:[#allocation2 + $0x48] sm:$0xff]
        %v462 = vld [vmem:[#allocation2 + $0x50] sm:$0xff]
        %v463 = vld [vmem:[#allocation2 + $0x58] sm:$0xff]
        %v464 = vld [vmem:[#allocation2 + $0x60] sm:$0xff]
        %v465 = vld [vmem:[#allocation2 + $0x68] sm:$0xff]
        %v466 = vld [vmem:[#allocation2 + $0x70] sm:$0xff]
        %v467 = vld [vmem:[#allocation2 + $0x78] sm:$0xff]
        %v468 = vld [vmem:[%s409] sm:$0xff]
        %v469 = vld [vmem:[%s409 + $0x8] sm:$0xff]
        %v470 = vld [vmem:[%s409 + $0x10] sm:$0xff]
        %v471 = vld [vmem:[%s409 + $0x18] sm:$0xff]
        %v472 = vld [vmem:[%s409 + $0x20] sm:$0xff]
        %v473 = vld [vmem:[%s409 + $0x28] sm:$0xff]
        %v474 = vld [vmem:[%s409 + $0x30] sm:$0xff]
        %v475 = vld [vmem:[%s409 + $0x38] sm:$0xff]
        %v476 = vld [vmem:[%s409 + $0x40] sm:$0xff]
        %v477 = vld [vmem:[%s409 + $0x48] sm:$0xff]
        %v478 = vld [vmem:[%s409 + $0x50] sm:$0xff]
        %v479 = vld [vmem:[%s409 + $0x58] sm:$0xff]
        %v480 = vld [vmem:[%s409 + $0x60] sm:$0xff]
        %v481 = vld [vmem:[%s409 + $0x68] sm:$0xff]
        %v482 = vld [vmem:[%s409 + $0x70] sm:$0xff]
        %v483 = vld [vmem:[%s409 + $0x78] sm:$0xff]
        %v484 = vld [vmem:[%s416] sm:$0xf]
        %v485 = vld [vmem:[%s416 + $0x4] sm:$0xf]
        %v486 = vld [vmem:[%s416 + $0x8] sm:$0xf]
        %v487 = vld [vmem:[%s416 + $0xc] sm:$0xf]
        %v488 = vld [vmem:[%s416 + $0x10] sm:$0xf]
        %v489 = vld [vmem:[%s416 + $0x14] sm:$0xf]
        %v490 = vld [vmem:[%s416 + $0x18] sm:$0xf]
        %v491 = vld [vmem:[%s416 + $0x1c] sm:$0xf]
        %v492 = vld [vmem:[%s416 + $0x20] sm:$0xf]
        %v493 = vld [vmem:[%s416 + $0x24] sm:$0xf]
        %v494 = vld [vmem:[%s416 + $0x28] sm:$0xf]
        %v495 = vld [vmem:[%s416 + $0x2c] sm:$0xf]
        %v496 = vld [vmem:[%s416 + $0x30] sm:$0xf]
        %v497 = vld [vmem:[%s416 + $0x34] sm:$0xf]
        %v498 = vld [vmem:[%s416 + $0x38] sm:$0xf]
        %v499 = vld [vmem:[%s416 + $0x3c] sm:$0xf]
        %v500 = vld [vmem:[%s416 + $0x40] sm:$0xf]
        %v501 = vld [vmem:[%s416 + $0x44] sm:$0xf]
        %v502 = vld [vmem:[%s416 + $0x48] sm:$0xf]
        %v503 = vld [vmem:[%s416 + $0x4c] sm:$0xf]
        %v504 = vld [vmem:[%s416 + $0x50] sm:$0xf]
        %v505 = vld [vmem:[%s416 + $0x54] sm:$0xf]
        %v506 = vld [vmem:[%s416 + $0x58] sm:$0xf]
        %v507 = vld [vmem:[%s416 + $0x5c] sm:$0xf]
        %v508 = vld [vmem:[%s416 + $0x60] sm:$0xf]
        %v509 = vld [vmem:[%s416 + $0x64] sm:$0xf]
        %v510 = vld [vmem:[%s416 + $0x68] sm:$0xf]
        %v511 = vld [vmem:[%s416 + $0x6c] sm:$0xf]
        %v512 = vld [vmem:[%s416 + $0x70] sm:$0xf]
        %v513 = vld [vmem:[%s416 + $0x74] sm:$0xf]
        %v514 = vld [vmem:[%s416 + $0x78] sm:$0xf]
        %v515 = vld [vmem:[%s416 + $0x7c] sm:$0xf]
        %v532 = vunpack.c.l.b16 %v468
        %v533 = vunpack.c.h.b16 %v468
        %v534 = vunpack.c.l.b16 %v469
        %v535 = vunpack.c.h.b16 %v469
        %v536 = vunpack.c.l.b16 %v470
        %v537 = vunpack.c.h.b16 %v470
        %v538 = vunpack.c.l.b16 %v471
        %v539 = vunpack.c.h.b16 %v471
        %v540 = vunpack.c.l.b16 %v472
        %v541 = vunpack.c.h.b16 %v472
        %v542 = vunpack.c.l.b16 %v473
        %v543 = vunpack.c.h.b16 %v473
        %v544 = vunpack.c.l.b16 %v474
        %v545 = vunpack.c.h.b16 %v474
        %v546 = vunpack.c.l.b16 %v475
        %v547 = vunpack.c.h.b16 %v475
        %v548 = vunpack.c.l.b16 %v476
        %v549 = vunpack.c.h.b16 %v476
        %v550 = vunpack.c.l.b16 %v477
        %v551 = vunpack.c.h.b16 %v477
        %v552 = vunpack.c.l.b16 %v478
        %v553 = vunpack.c.h.b16 %v478
        %v554 = vunpack.c.l.b16 %v479
        %v555 = vunpack.c.h.b16 %v479
        %v556 = vunpack.c.l.b16 %v480
        %v557 = vunpack.c.h.b16 %v480
        %v558 = vunpack.c.l.b16 %v481
        %v559 = vunpack.c.h.b16 %v481
        %v560 = vunpack.c.l.b16 %v482
        %v561 = vunpack.c.h.b16 %v482
        %v562 = vunpack.c.l.b16 %v483
        %v563 = vunpack.c.h.b16 %v483
        %v564 = vpack.c.b16 %v534, %v532
        %v565 = vpack.c.b16 %v535, %v533
        %v566 = vpack.c.b16 %v538, %v536
        %v567 = vpack.c.b16 %v539, %v537
        %v568 = vpack.c.b16 %v542, %v540
        %v569 = vpack.c.b16 %v543, %v541
        %v570 = vpack.c.b16 %v546, %v544
        %v571 = vpack.c.b16 %v547, %v545
        %v572 = vpack.c.b16 %v550, %v548
        %v573 = vpack.c.b16 %v551, %v549
        %v574 = vpack.c.b16 %v554, %v552
        %v575 = vpack.c.b16 %v555, %v553
        %v576 = vpack.c.b16 %v558, %v556
        %v577 = vpack.c.b16 %v559, %v557
        %v578 = vpack.c.b16 %v562, %v560
        %v579 = vpack.c.b16 %v563, %v561
        %v628 = vunpack.c.l.b16 %v484
        %v629 = vunpack.c.l.b16 %v485
        %v630 = vunpack.c.l.b16 %v486
        %v631 = vunpack.c.l.b16 %v487
        %v632 = vunpack.c.l.b16 %v488
        %v633 = vunpack.c.l.b16 %v489
        %v634 = vunpack.c.l.b16 %v490
        %v635 = vunpack.c.l.b16 %v491
        %v636 = vunpack.c.l.b16 %v492
        %v637 = vunpack.c.l.b16 %v493
        %v638 = vunpack.c.l.b16 %v494
        %v639 = vunpack.c.l.b16 %v495
        %v640 = vunpack.c.l.b16 %v496
        %v641 = vunpack.c.l.b16 %v497
        %v642 = vunpack.c.l.b16 %v498
        %v643 = vunpack.c.l.b16 %v499
        %v644 = vunpack.c.l.b16 %v500
        %v645 = vunpack.c.l.b16 %v501
        %v646 = vunpack.c.l.b16 %v502
        %v647 = vunpack.c.l.b16 %v503
        %v648 = vunpack.c.l.b16 %v504
        %v649 = vunpack.c.l.b16 %v505
        %v650 = vunpack.c.l.b16 %v506
        %v651 = vunpack.c.l.b16 %v507
        %v652 = vunpack.c.l.b16 %v508
        %v653 = vunpack.c.l.b16 %v509
        %v654 = vunpack.c.l.b16 %v510
        %v655 = vunpack.c.l.b16 %v511
        %v656 = vunpack.c.l.b16 %v512
        %v657 = vunpack.c.l.b16 %v513
        %v658 = vunpack.c.l.b16 %v514
        %v659 = vunpack.c.l.b16 %v515
        %v660 = vpack.c.b16 %v629, %v628
        %v661 = vpack.c.b16 %v631, %v630
        %v662 = vpack.c.b16 %v633, %v632
        %v663 = vpack.c.b16 %v635, %v634
        %v664 = vpack.c.b16 %v637, %v636
        %v665 = vpack.c.b16 %v639, %v638
        %v666 = vpack.c.b16 %v641, %v640
        %v667 = vpack.c.b16 %v643, %v642
        %v668 = vpack.c.b16 %v645, %v644
        %v669 = vpack.c.b16 %v647, %v646
        %v670 = vpack.c.b16 %v649, %v648
        %v671 = vpack.c.b16 %v651, %v650
        %v672 = vpack.c.b16 %v653, %v652
        %v673 = vpack.c.b16 %v655, %v654
        %v674 = vpack.c.b16 %v657, %v656
        %v675 = vpack.c.b16 %v659, %v658
        %692 = vmatprep.subr.bf16.mxu0 0
        %693 = vmatpush1.bf16.msra.mxu0 %v660
        %694 = vmatprep.subr.bf16.mxu0 0
        %695 = vmatpush1.bf16.msra.mxu0 %v661
        %696 = vmatprep.subr.bf16.mxu0 0
        %697 = vmatpush1.bf16.msra.mxu0 %v662
        %698 = vmatprep.subr.bf16.mxu0 0
        %699 = vmatpush1.bf16.msra.mxu0 %v663
        %700 = vmatprep.subr.bf16.mxu0 0
        %701 = vmatpush1.bf16.msra.mxu0 %v664
        %702 = vmatprep.subr.bf16.mxu0 0
        %703 = vmatpush1.bf16.msra.mxu0 %v665
        %704 = vmatprep.subr.bf16.mxu0 0
        %705 = vmatpush1.bf16.msra.mxu0 %v666
        %706 = vmatprep.subr.bf16.mxu0 0
        %707 = vmatpush1.bf16.msra.mxu0 %v667
        %708 = vmatprep.subr.bf16.mxu0 0
        %709 = vmatpush1.bf16.msra.mxu0 %v668
        %710 = vmatprep.subr.bf16.mxu0 0
        %711 = vmatpush1.bf16.msra.mxu0 %v669
        %712 = vmatprep.subr.bf16.mxu0 0
        %713 = vmatpush1.bf16.msra.mxu0 %v670
        %714 = vmatprep.subr.bf16.mxu0 0
        %715 = vmatpush1.bf16.msra.mxu0 %v671
        %716 = vmatprep.subr.bf16.mxu0 0
        %717 = vmatpush1.bf16.msra.mxu0 %v672
        %718 = vmatprep.subr.bf16.mxu0 0
        %719 = vmatpush1.bf16.msra.mxu0 %v673
        %720 = vmatprep.subr.bf16.mxu0 0
        %721 = vmatpush1.bf16.msra.mxu0 %v674
        %722 = vmatprep.subr.bf16.mxu0 0
        %723 = vmatpush1.bf16.msra.mxu0 %v675
        %724 = vmatprep.mubr.bf16.mxu0 %v565
        %725 = vmatmul.mubr.bf16.gmra.mrb[0].mxu0 %v564
        %v726 = vpop.f32.mrb[0].mxu0
        %v727 = vadd.f32 0.0, %v726
        %v728 = vpop.f32.mrb[0].mxu0
        %v729 = vpop.f32.mrb[0].mxu0
        %v730 = vadd.f32 0.0, %v729
        %v731 = vpop.f32.mrb[0].mxu0
        %732 = vmatprep.mubr.bf16.mxu0 %v567
        %733 = vmatmul.mubr.bf16.gmra.mrb[0].mxu0 %v566
        %v734 = vpop.f32.mrb[0].mxu0
        %v735 = vadd.f32 0.0, %v734
        %v736 = vpop.f32.mrb[0].mxu0
        %v737 = vpop.f32.mrb[0].mxu0
        %v738 = vadd.f32 0.0, %v737
        %v739 = vpop.f32.mrb[0].mxu0
        %740 = vmatprep.mubr.bf16.mxu0 %v569
        %741 = vmatmul.mubr.bf16.gmra.mrb[0].mxu0 %v568
        %v742 = vpop.f32.mrb[0].mxu0
        %v743 = vadd.f32 0.0, %v742
        %v744 = vpop.f32.mrb[0].mxu0
        %v745 = vpop.f32.mrb[0].mxu0
        %v746 = vadd.f32 0.0, %v745
        %v747 = vpop.f32.mrb[0].mxu0
        %748 = vmatprep.mubr.bf16.mxu0 %v571
        %749 = vmatmul.mubr.bf16.gmra.mrb[0].mxu0 %v570
        %v750 = vpop.f32.mrb[0].mxu0
        %v751 = vadd.f32 0.0, %v750
        %v752 = vpop.f32.mrb[0].mxu0
        %v753 = vpop.f32.mrb[0].mxu0
        %v754 = vadd.f32 0.0, %v753
        %v755 = vpop.f32.mrb[0].mxu0
        %756 = vmatprep.mubr.bf16.mxu0 %v573
        %757 = vmatmul.mubr.bf16.gmra.mrb[0].mxu0 %v572
        %v758 = vpop.f32.mrb[0].mxu0
        %v759 = vadd.f32 0.0, %v758
        %v760 = vpop.f32.mrb[0].mxu0
        %v761 = vpop.f32.mrb[0].mxu0
        %v762 = vadd.f32 0.0, %v761
        %v763 = vpop.f32.mrb[0].mxu0
        %764 = vmatprep.mubr.bf16.mxu0 %v575
        %765 = vmatmul.mubr.bf16.gmra.mrb[0].mxu0 %v574
        %v766 = vpop.f32.mrb[0].mxu0
        %v767 = vadd.f32 0.0, %v766
        %v768 = vpop.f32.mrb[0].mxu0
        %v769 = vpop.f32.mrb[0].mxu0
        %v770 = vadd.f32 0.0, %v769
        %v771 = vpop.f32.mrb[0].mxu0
        %772 = vmatprep.mubr.bf16.mxu0 %v577
        %773 = vmatmul.mubr.bf16.gmra.mrb[0].mxu0 %v576
        %v774 = vpop.f32.mrb[0].mxu0
        %v775 = vadd.f32 0.0, %v774
        %v776 = vpop.f32.mrb[0].mxu0
        %v777 = vpop.f32.mrb[0].mxu0
        %v778 = vadd.f32 0.0, %v777
        %v779 = vpop.f32.mrb[0].mxu0
        %780 = vmatprep.mubr.bf16.mxu0 %v579
        %781 = vmatmul.mubr.bf16.gmra.mrb[0].mxu0 %v578
        %v782 = vpop.f32.mrb[0].mxu0
        %v783 = vadd.f32 0.0, %v782
        %v784 = vpop.f32.mrb[0].mxu0
        %v785 = vpop.f32.mrb[0].mxu0
        %v786 = vadd.f32 0.0, %v785
        %v787 = vpop.f32.mrb[0].mxu0
        %788 = vdwg.mxu0
        %v789 = vadd.f32 %v452, %v727
        %v790 = vadd.f32 %v453, %v730
        %v791 = vadd.f32 %v454, %v735
        %v792 = vadd.f32 %v455, %v738
        %v793 = vadd.f32 %v456, %v743
        %v794 = vadd.f32 %v457, %v746
        %v795 = vadd.f32 %v458, %v751
        %v796 = vadd.f32 %v459, %v754
        %v797 = vadd.f32 %v460, %v759
        %v798 = vadd.f32 %v461, %v762
        %v799 = vadd.f32 %v462, %v767
        %v800 = vadd.f32 %v463, %v770
        %v801 = vadd.f32 %v464, %v775
        %v802 = vadd.f32 %v465, %v778
        %v803 = vadd.f32 %v466, %v783
        %v804 = vadd.f32 %v467, %v786
        %805 = vst [vmem:[#allocation2] sm:$0xff] %v789
        %806 = vst [vmem:[#allocation2 + $0x8] sm:$0xff] %v790
        %807 = vst [vmem:[#allocation2 + $0x10] sm:$0xff] %v791
        %808 = vst [vmem:[#allocation2 + $0x18] sm:$0xff] %v792
        %809 = vst [vmem:[#allocation2 + $0x20] sm:$0xff] %v793
        %810 = vst [vmem:[#allocation2 + $0x28] sm:$0xff] %v794
        %811 = vst [vmem:[#allocation2 + $0x30] sm:$0xff] %v795
        %812 = vst [vmem:[#allocation2 + $0x38] sm:$0xff] %v796
        %813 = vst [vmem:[#allocation2 + $0x40] sm:$0xff] %v797
        %814 = vst [vmem:[#allocation2 + $0x48] sm:$0xff] %v798
        %815 = vst [vmem:[#allocation2 + $0x50] sm:$0xff] %v799
        %816 = vst [vmem:[#allocation2 + $0x58] sm:$0xff] %v800
        %817 = vst [vmem:[#allocation2 + $0x60] sm:$0xff] %v801
        %818 = vst [vmem:[#allocation2 + $0x68] sm:$0xff] %v802
        %819 = vst [vmem:[#allocation2 + $0x70] sm:$0xff] %v803
        %820 = vst [vmem:[#allocation2 + $0x78] sm:$0xff] %v804
        // Predicated region
        $region61: #{emma_sage_forward.5} parent=55 // pred_check
          %p821 = pneg %p432
        $region62: #{emma_sage_forward.5} parent=55 // pred_check_branch
          %823 = sbr.rel (%p821) target = $region64
        $region63: #{emma_sage_forward.5} parent=55 // pred_region
          %v824 = vld [vmem:[#allocation2] sm:$0xff]
          %v825 = vld [vmem:[#allocation2 + $0x8] sm:$0xff]
          %v826 = vld [vmem:[#allocation2 + $0x10] sm:$0xff]
          %v827 = vld [vmem:[#allocation2 + $0x18] sm:$0xff]
          %v828 = vld [vmem:[#allocation2 + $0x20] sm:$0xff]
          %v829 = vld [vmem:[#allocation2 + $0x28] sm:$0xff]
          %v830 = vld [vmem:[#allocation2 + $0x30] sm:$0xff]
          %v831 = vld [vmem:[#allocation2 + $0x38] sm:$0xff]
          %v832 = vld [vmem:[#allocation2 + $0x40] sm:$0xff]
          %v833 = vld [vmem:[#allocation2 + $0x48] sm:$0xff]
          %v834 = vld [vmem:[#allocation2 + $0x50] sm:$0xff]
          %v835 = vld [vmem:[#allocation2 + $0x58] sm:$0xff]
          %v836 = vld [vmem:[#allocation2 + $0x60] sm:$0xff]
          %v837 = vld [vmem:[#allocation2 + $0x68] sm:$0xff]
          %v838 = vld [vmem:[#allocation2 + $0x70] sm:$0xff]
          %v839 = vld [vmem:[#allocation2 + $0x78] sm:$0xff]
          %v840 = vld [vmem:[%s428] sm:$0xff]
          %v841 = vld [vmem:[%s428 + $0x8] sm:$0xff]
          %v842 = vld [vmem:[%s428 + $0x10] sm:$0xff]
          %v843 = vld [vmem:[%s428 + $0x18] sm:$0xff]
          %v844 = vld [vmem:[%s428 + $0x20] sm:$0xff]
          %v845 = vld [vmem:[%s428 + $0x28] sm:$0xff]
          %v846 = vld [vmem:[%s428 + $0x30] sm:$0xff]
          %v847 = vld [vmem:[%s428 + $0x38] sm:$0xff]
          %v848 = vld [vmem:[%s428 + $0x40] sm:$0xff]
          %v849 = vld [vmem:[%s428 + $0x48] sm:$0xff]
          %v850 = vld [vmem:[%s428 + $0x50] sm:$0xff]
          %v851 = vld [vmem:[%s428 + $0x58] sm:$0xff]
          %v852 = vld [vmem:[%s428 + $0x60] sm:$0xff]
          %v853 = vld [vmem:[%s428 + $0x68] sm:$0xff]
          %v854 = vld [vmem:[%s428 + $0x70] sm:$0xff]
          %v855 = vld [vmem:[%s428 + $0x78] sm:$0xff]
          %857 = vset.pattern.permute.xlu0 0
          %858 = vperm.xlu0 %857, %v840
          %v859 = vpop.permute.xlu0 %858
          %862 = vset.pattern.permute.xlu0 0
          %863 = vperm.xlu0 %862, %v841
          %v864 = vpop.permute.xlu0 %863
          %867 = vset.pattern.permute.xlu0 0
          %868 = vperm.xlu0 %867, %v842
          %v869 = vpop.permute.xlu0 %868
          %872 = vset.pattern.permute.xlu0 0
          %873 = vperm.xlu0 %872, %v843
          %v874 = vpop.permute.xlu0 %873
          %877 = vset.pattern.permute.xlu0 0
          %878 = vperm.xlu0 %877, %v844
          %v879 = vpop.permute.xlu0 %878
          %882 = vset.pattern.permute.xlu0 0
          %883 = vperm.xlu0 %882, %v845
          %v884 = vpop.permute.xlu0 %883
          %887 = vset.pattern.permute.xlu0 0
          %888 = vperm.xlu0 %887, %v846
          %v889 = vpop.permute.xlu0 %888
          %892 = vset.pattern.permute.xlu0 0
          %893 = vperm.xlu0 %892, %v847
          %v894 = vpop.permute.xlu0 %893
          %897 = vset.pattern.permute.xlu0 0
          %898 = vperm.xlu0 %897, %v848
          %v899 = vpop.permute.xlu0 %898
          %902 = vset.pattern.permute.xlu0 0
          %903 = vperm.xlu0 %902, %v849
          %v904 = vpop.permute.xlu0 %903
          %907 = vset.pattern.permute.xlu0 0
          %908 = vperm.xlu0 %907, %v850
          %v909 = vpop.permute.xlu0 %908
          %912 = vset.pattern.permute.xlu0 0
          %913 = vperm.xlu0 %912, %v851
          %v914 = vpop.permute.xlu0 %913
          %917 = vset.pattern.permute.xlu0 0
          %918 = vperm.xlu0 %917, %v852
          %v919 = vpop.permute.xlu0 %918
          %922 = vset.pattern.permute.xlu0 0
          %923 = vperm.xlu0 %922, %v853
          %v924 = vpop.permute.xlu0 %923
          %927 = vset.pattern.permute.xlu0 0
          %928 = vperm.xlu0 %927, %v854
          %v929 = vpop.permute.xlu0 %928
          %932 = vset.pattern.permute.xlu0 0
          %933 = vperm.xlu0 %932, %v855
          %v934 = vpop.permute.xlu0 %933
          %v936 = vmul.f32 %v824, %v859
          %v937 = vmul.f32 %v825, %v864
          %v938 = vmul.f32 %v826, %v869
          %v939 = vmul.f32 %v827, %v874
          %v940 = vmul.f32 %v828, %v879
          %v941 = vmul.f32 %v829, %v884
          %v942 = vmul.f32 %v830, %v889
          %v943 = vmul.f32 %v831, %v894
          %v944 = vmul.f32 %v832, %v899
          %v945 = vmul.f32 %v833, %v904
          %v946 = vmul.f32 %v834, %v909
          %v947 = vmul.f32 %v835, %v914
          %v948 = vmul.f32 %v836, %v919
          %v949 = vmul.f32 %v837, %v924
          %v950 = vmul.f32 %v838, %v929
          %v951 = vmul.f32 %v839, %v934
          %v952 = vpack.c.bf16 %v937, %v936
          %v953 = vpack.c.bf16 %v939, %v938
          %v954 = vpack.c.bf16 %v941, %v940
          %v955 = vpack.c.bf16 %v943, %v942
          %v956 = vpack.c.bf16 %v945, %v944
          %v957 = vpack.c.bf16 %v947, %v946
          %v958 = vpack.c.bf16 %v949, %v948
          %v959 = vpack.c.bf16 %v951, %v950
          %v960 = vld [vmem:[%s4] sm:$0xf]
          %v961 = vld [vmem:[%s4 + $0x4] sm:$0xf]
          %v962 = vld [vmem:[%s4 + $0x8] sm:$0xf]
          %v963 = vld [vmem:[%s4 + $0xc] sm:$0xf]
          %v964 = vld [vmem:[%s4 + $0x10] sm:$0xf]
          %v965 = vld [vmem:[%s4 + $0x14] sm:$0xf]
          %v966 = vld [vmem:[%s4 + $0x18] sm:$0xf]
          %v967 = vld [vmem:[%s4 + $0x1c] sm:$0xf]
          %v968 = vld [vmem:[%s4 + $0x20] sm:$0xf]
          %v969 = vld [vmem:[%s4 + $0x24] sm:$0xf]
          %v970 = vld [vmem:[%s4 + $0x28] sm:$0xf]
          %v971 = vld [vmem:[%s4 + $0x2c] sm:$0xf]
          %v972 = vld [vmem:[%s4 + $0x30] sm:$0xf]
          %v973 = vld [vmem:[%s4 + $0x34] sm:$0xf]
          %v974 = vld [vmem:[%s4 + $0x38] sm:$0xf]
          %v975 = vld [vmem:[%s4 + $0x3c] sm:$0xf]
          %v976 = vld [vmem:[%s422] sm:$0xf]
          %v977 = vld [vmem:[%s422 + $0x4] sm:$0xf]
          %v978 = vld [vmem:[%s422 + $0x8] sm:$0xf]
          %v979 = vld [vmem:[%s422 + $0xc] sm:$0xf]
          %v980 = vld [vmem:[%s422 + $0x10] sm:$0xf]
          %v981 = vld [vmem:[%s422 + $0x14] sm:$0xf]
          %v982 = vld [vmem:[%s422 + $0x18] sm:$0xf]
          %v983 = vld [vmem:[%s422 + $0x1c] sm:$0xf]
          %v984 = vld [vmem:[%s422 + $0x20] sm:$0xf]
          %v985 = vld [vmem:[%s422 + $0x24] sm:$0xf]
          %v986 = vld [vmem:[%s422 + $0x28] sm:$0xf]
          %v987 = vld [vmem:[%s422 + $0x2c] sm:$0xf]
          %v988 = vld [vmem:[%s422 + $0x30] sm:$0xf]
          %v989 = vld [vmem:[%s422 + $0x34] sm:$0xf]
          %v990 = vld [vmem:[%s422 + $0x38] sm:$0xf]
          %v991 = vld [vmem:[%s422 + $0x3c] sm:$0xf]
          %v992 = vld [vmem:[%s5] sm:$0xf]
          %v993 = vld [vmem:[%s5 + $0x4] sm:$0xf]
          %v994 = vld [vmem:[%s5 + $0x8] sm:$0xf]
          %v995 = vld [vmem:[%s5 + $0xc] sm:$0xf]
          %v996 = vld [vmem:[%s5 + $0x10] sm:$0xf]
          %v997 = vld [vmem:[%s5 + $0x14] sm:$0xf]
          %v998 = vld [vmem:[%s5 + $0x18] sm:$0xf]
          %v999 = vld [vmem:[%s5 + $0x1c] sm:$0xf]
          %v1000 = vld [vmem:[%s5 + $0x20] sm:$0xf]
          %v1001 = vld [vmem:[%s5 + $0x24] sm:$0xf]
          %v1002 = vld [vmem:[%s5 + $0x28] sm:$0xf]
          %v1003 = vld [vmem:[%s5 + $0x2c] sm:$0xf]
          %v1004 = vld [vmem:[%s5 + $0x30] sm:$0xf]
          %v1005 = vld [vmem:[%s5 + $0x34] sm:$0xf]
          %v1006 = vld [vmem:[%s5 + $0x38] sm:$0xf]
          %v1007 = vld [vmem:[%s5 + $0x3c] sm:$0xf]
          %v1024 = vunpack.c.l.b16 %v976
          %v1025 = vunpack.c.l.b16 %v977
          %v1026 = vunpack.c.l.b16 %v978
          %v1027 = vunpack.c.l.b16 %v979
          %v1028 = vunpack.c.l.b16 %v980
          %v1029 = vunpack.c.l.b16 %v981
          %v1030 = vunpack.c.l.b16 %v982
          %v1031 = vunpack.c.l.b16 %v983
          %v1032 = vunpack.c.l.b16 %v984
          %v1033 = vunpack.c.l.b16 %v985
          %v1034 = vunpack.c.l.b16 %v986
          %v1035 = vunpack.c.l.b16 %v987
          %v1036 = vunpack.c.l.b16 %v988
          %v1037 = vunpack.c.l.b16 %v989
          %v1038 = vunpack.c.l.b16 %v990
          %v1039 = vunpack.c.l.b16 %v991
          %v1040 = vpack.c.b16 %v1025, %v1024
          %v1041 = vpack.c.b16 %v1027, %v1026
          %v1042 = vpack.c.b16 %v1029, %v1028
          %v1043 = vpack.c.b16 %v1031, %v1030
          %v1044 = vpack.c.b16 %v1033, %v1032
          %v1045 = vpack.c.b16 %v1035, %v1034
          %v1046 = vpack.c.b16 %v1037, %v1036
          %v1047 = vpack.c.b16 %v1039, %v1038
          %v1072 = vunpack.c.l.b16 %v992
          %v1073 = vunpack.c.l.b16 %v993
          %v1074 = vunpack.c.l.b16 %v994
          %v1075 = vunpack.c.l.b16 %v995
          %v1076 = vunpack.c.l.b16 %v996
          %v1077 = vunpack.c.l.b16 %v997
          %v1078 = vunpack.c.l.b16 %v998
          %v1079 = vunpack.c.l.b16 %v999
          %v1080 = vunpack.c.l.b16 %v1000
          %v1081 = vunpack.c.l.b16 %v1001
          %v1082 = vunpack.c.l.b16 %v1002
          %v1083 = vunpack.c.l.b16 %v1003
          %v1084 = vunpack.c.l.b16 %v1004
          %v1085 = vunpack.c.l.b16 %v1005
          %v1086 = vunpack.c.l.b16 %v1006
          %v1087 = vunpack.c.l.b16 %v1007
          %v1088 = vpack.c.b16 %v1073, %v1072
          %v1089 = vpack.c.b16 %v1075, %v1074
          %v1090 = vpack.c.b16 %v1077, %v1076
          %v1091 = vpack.c.b16 %v1079, %v1078
          %v1092 = vpack.c.b16 %v1081, %v1080
          %v1093 = vpack.c.b16 %v1083, %v1082
          %v1094 = vpack.c.b16 %v1085, %v1084
          %v1095 = vpack.c.b16 %v1087, %v1086
          %1104 = vmatprep.subr.bf16.mxu0 0
          %1105 = vmatpush1.bf16.msra.mxu0 %v1088
          %1106 = vmatprep.subr.bf16.mxu0 0
          %1107 = vmatpush1.bf16.msra.mxu0 %v1089
          %1108 = vmatprep.subr.bf16.mxu0 0
          %1109 = vmatpush1.bf16.msra.mxu0 %v1090
          %1110 = vmatprep.subr.bf16.mxu0 0
          %1111 = vmatpush1.bf16.msra.mxu0 %v1091
          %1112 = vmatprep.subr.bf16.mxu0 0
          %1113 = vmatpush1.bf16.msra.mxu0 %v1092
          %1114 = vmatprep.subr.bf16.mxu0 0
          %1115 = vmatpush1.bf16.msra.mxu0 %v1093
          %1116 = vmatprep.subr.bf16.mxu0 0
          %1117 = vmatpush1.bf16.msra.mxu0 %v1094
          %1118 = vmatprep.subr.bf16.mxu0 0
          %1119 = vmatpush1.bf16.msra.mxu0 %v1095
          %1120 = vmatprep.subr.bf16.mxu0 0
          %1121 = vmatpush1.bf16.msra.mxu0 0
          %1122 = vmatprep.subr.bf16.mxu0 0
          %1123 = vmatpush1.bf16.msra.mxu0 0
          %1124 = vmatprep.subr.bf16.mxu0 0
          %1125 = vmatpush1.bf16.msra.mxu0 0
          %1126 = vmatprep.subr.bf16.mxu0 0
          %1127 = vmatpush1.bf16.msra.mxu0 0
          %1128 = vmatprep.subr.bf16.mxu0 0
          %1129 = vmatpush1.bf16.msra.mxu0 0
          %1130 = vmatprep.subr.bf16.mxu0 0
          %1131 = vmatpush1.bf16.msra.mxu0 0
          %1132 = vmatprep.subr.bf16.mxu0 0
          %1133 = vmatpush1.bf16.msra.mxu0 0
          %1134 = vmatprep.subr.bf16.mxu0 0
          %1135 = vmatpush1.bf16.msra.mxu0 0
          %1136 = vmatprep.mubr.bf16.mxu0 0
          %1137 = vmatmul.mubr.bf16.gmra.mrb[0].mxu0 %v1040
          %v1138 = vpop.f32.mrb[0].mxu0
          %v1139 = vadd.f32 0.0, %v1138
          %v1140 = vpop.f32.mrb[0].mxu0
          %v1141 = vpop.f32.mrb[0].mxu0
          %v1142 = vadd.f32 0.0, %v1141
          %v1143 = vpop.f32.mrb[0].mxu0
          %1144 = vmatprep.mubr.bf16.mxu0 0
          %1145 = vmatmul.mubr.bf16.gmra.mrb[0].mxu0 %v1041
          %v1146 = vpop.f32.mrb[0].mxu0
          %v1147 = vadd.f32 0.0, %v1146
          %v1148 = vpop.f32.mrb[0].mxu0
          %v1149 = vpop.f32.mrb[0].mxu0
          %v1150 = vadd.f32 0.0, %v1149
          %v1151 = vpop.f32.mrb[0].mxu0
          %1152 = vmatprep.mubr.bf16.mxu0 0
          %1153 = vmatmul.mubr.bf16.gmra.mrb[0].mxu0 %v1042
          %v1154 = vpop.f32.mrb[0].mxu0
          %v1155 = vadd.f32 0.0, %v1154
          %v1156 = vpop.f32.mrb[0].mxu0
          %v1157 = vpop.f32.mrb[0].mxu0
          %v1158 = vadd.f32 0.0, %v1157
          %v1159 = vpop.f32.mrb[0].mxu0
          %1160 = vmatprep.mubr.bf16.mxu0 0
          %1161 = vmatmul.mubr.bf16.gmra.mrb[0].mxu0 %v1043
          %v1162 = vpop.f32.mrb[0].mxu0
          %v1163 = vadd.f32 0.0, %v1162
          %v1164 = vpop.f32.mrb[0].mxu0
          %v1165 = vpop.f32.mrb[0].mxu0
          %v1166 = vadd.f32 0.0, %v1165
          %v1167 = vpop.f32.mrb[0].mxu0
          %1168 = vmatprep.mubr.bf16.mxu0 0
          %1169 = vmatmul.mubr.bf16.gmra.mrb[0].mxu0 %v1044
          %v1170 = vpop.f32.mrb[0].mxu0
          %v1171 = vadd.f32 0.0, %v1170
          %v1172 = vpop.f32.mrb[0].mxu0
          %v1173 = vpop.f32.mrb[0].mxu0
          %v1174 = vadd.f32 0.0, %v1173
          %v1175 = vpop.f32.mrb[0].mxu0
          %1176 = vmatprep.mubr.bf16.mxu0 0
          %1177 = vmatmul.mubr.bf16.gmra.mrb[0].mxu0 %v1045
          %v1178 = vpop.f32.mrb[0].mxu0
          %v1179 = vadd.f32 0.0, %v1178
          %v1180 = vpop.f32.mrb[0].mxu0
          %v1181 = vpop.f32.mrb[0].mxu0
          %v1182 = vadd.f32 0.0, %v1181
          %v1183 = vpop.f32.mrb[0].mxu0
          %1184 = vmatprep.mubr.bf16.mxu0 0
          %1185 = vmatmul.mubr.bf16.gmra.mrb[0].mxu0 %v1046
          %v1186 = vpop.f32.mrb[0].mxu0
          %v1187 = vadd.f32 0.0, %v1186
          %v1188 = vpop.f32.mrb[0].mxu0
          %v1189 = vpop.f32.mrb[0].mxu0
          %v1190 = vadd.f32 0.0, %v1189
          %v1191 = vpop.f32.mrb[0].mxu0
          %1192 = vmatprep.mubr.bf16.mxu0 0
          %1193 = vmatmul.mubr.bf16.gmra.mrb[0].mxu0 %v1047
          %v1194 = vpop.f32.mrb[0].mxu0
          %v1195 = vadd.f32 0.0, %v1194
          %v1196 = vpop.f32.mrb[0].mxu0
          %v1197 = vpop.f32.mrb[0].mxu0
          %v1198 = vadd.f32 0.0, %v1197
          %v1199 = vpop.f32.mrb[0].mxu0
          %1200 = vdwg.mxu0
          %v1217 = vunpack.c.l.b16 %v960
          %v1218 = vunpack.c.l.b16 %v961
          %v1219 = vunpack.c.l.b16 %v962
          %v1220 = vunpack.c.l.b16 %v963
          %v1221 = vunpack.c.l.b16 %v964
          %v1222 = vunpack.c.l.b16 %v965
          %v1223 = vunpack.c.l.b16 %v966
          %v1224 = vunpack.c.l.b16 %v967
          %v1225 = vunpack.c.l.b16 %v968
          %v1226 = vunpack.c.l.b16 %v969
          %v1227 = vunpack.c.l.b16 %v970
          %v1228 = vunpack.c.l.b16 %v971
          %v1229 = vunpack.c.l.b16 %v972
          %v1230 = vunpack.c.l.b16 %v973
          %v1231 = vunpack.c.l.b16 %v974
          %v1232 = vunpack.c.l.b16 %v975
          %v1233 = vpack.c.b16 %v1218, %v1217
          %v1234 = vpack.c.b16 %v1220, %v1219
          %v1235 = vpack.c.b16 %v1222, %v1221
          %v1236 = vpack.c.b16 %v1224, %v1223
          %v1237 = vpack.c.b16 %v1226, %v1225
          %v1238 = vpack.c.b16 %v1228, %v1227
          %v1239 = vpack.c.b16 %v1230, %v1229
          %v1240 = vpack.c.b16 %v1232, %v1231
          %1249 = vmatprep.subr.bf16.mxu0 0
          %1250 = vmatpush1.bf16.msra.mxu0 %v1233
          %1251 = vmatprep.subr.bf16.mxu0 0
          %1252 = vmatpush1.bf16.msra.mxu0 %v1234
          %1253 = vmatprep.subr.bf16.mxu0 0
          %1254 = vmatpush1.bf16.msra.mxu0 %v1235
          %1255 = vmatprep.subr.bf16.mxu0 0
          %1256 = vmatpush1.bf16.msra.mxu0 %v1236
          %1257 = vmatprep.subr.bf16.mxu0 0
          %1258 = vmatpush1.bf16.msra.mxu0 %v1237
          %1259 = vmatprep.subr.bf16.mxu0 0
          %1260 = vmatpush1.bf16.msra.mxu0 %v1238
          %1261 = vmatprep.subr.bf16.mxu0 0
          %1262 = vmatpush1.bf16.msra.mxu0 %v1239
          %1263 = vmatprep.subr.bf16.mxu0 0
          %1264 = vmatpush1.bf16.msra.mxu0 %v1240
          %1265 = vmatprep.subr.bf16.mxu0 0
          %1266 = vmatpush1.bf16.msra.mxu0 0
          %1267 = vmatprep.subr.bf16.mxu0 0
          %1268 = vmatpush1.bf16.msra.mxu0 0
          %1269 = vmatprep.subr.bf16.mxu0 0
          %1270 = vmatpush1.bf16.msra.mxu0 0
          %1271 = vmatprep.subr.bf16.mxu0 0
          %1272 = vmatpush1.bf16.msra.mxu0 0
          %1273 = vmatprep.subr.bf16.mxu0 0
          %1274 = vmatpush1.bf16.msra.mxu0 0
          %1275 = vmatprep.subr.bf16.mxu0 0
          %1276 = vmatpush1.bf16.msra.mxu0 0
          %1277 = vmatprep.subr.bf16.mxu0 0
          %1278 = vmatpush1.bf16.msra.mxu0 0
          %1279 = vmatprep.subr.bf16.mxu0 0
          %1280 = vmatpush1.bf16.msra.mxu0 0
          %1281 = vmatprep.mubr.bf16.mxu0 0
          %1282 = vmatmul.mubr.bf16.gmra.mrb[0].mxu0 %v952
          %v1283 = vpop.f32.mrb[0].mxu0
          %v1284 = vadd.f32 %v1139, %v1283
          %v1285 = vpop.f32.mrb[0].mxu0
          %v1286 = vpop.f32.mrb[0].mxu0
          %v1287 = vadd.f32 %v1142, %v1286
          %v1288 = vpop.f32.mrb[0].mxu0
          %1289 = vmatprep.mubr.bf16.mxu0 0
          %1290 = vmatmul.mubr.bf16.gmra.mrb[0].mxu0 %v953
          %v1291 = vpop.f32.mrb[0].mxu0
          %v1292 = vadd.f32 %v1147, %v1291
          %v1293 = vpop.f32.mrb[0].mxu0
          %v1294 = vpop.f32.mrb[0].mxu0
          %v1295 = vadd.f32 %v1150, %v1294
          %v1296 = vpop.f32.mrb[0].mxu0
          %1297 = vmatprep.mubr.bf16.mxu0 0
          %1298 = vmatmul.mubr.bf16.gmra.mrb[0].mxu0 %v954
          %v1299 = vpop.f32.mrb[0].mxu0
          %v1300 = vadd.f32 %v1155, %v1299
          %v1301 = vpop.f32.mrb[0].mxu0
          %v1302 = vpop.f32.mrb[0].mxu0
          %v1303 = vadd.f32 %v1158, %v1302
          %v1304 = vpop.f32.mrb[0].mxu0
          %1305 = vmatprep.mubr.bf16.mxu0 0
          %1306 = vmatmul.mubr.bf16.gmra.mrb[0].mxu0 %v955
          %v1307 = vpop.f32.mrb[0].mxu0
          %v1308 = vadd.f32 %v1163, %v1307
          %v1309 = vpop.f32.mrb[0].mxu0
          %v1310 = vpop.f32.mrb[0].mxu0
          %v1311 = vadd.f32 %v1166, %v1310
          %v1312 = vpop.f32.mrb[0].mxu0
          %1313 = vmatprep.mubr.bf16.mxu0 0
          %1314 = vmatmul.mubr.bf16.gmra.mrb[0].mxu0 %v956
          %v1315 = vpop.f32.mrb[0].mxu0
          %v1316 = vadd.f32 %v1171, %v1315
          %v1317 = vpop.f32.mrb[0].mxu0
          %v1318 = vpop.f32.mrb[0].mxu0
          %v1319 = vadd.f32 %v1174, %v1318
          %v1320 = vpop.f32.mrb[0].mxu0
          %1321 = vmatprep.mubr.bf16.mxu0 0
          %1322 = vmatmul.mubr.bf16.gmra.mrb[0].mxu0 %v957
          %v1323 = vpop.f32.mrb[0].mxu0
          %v1324 = vadd.f32 %v1179, %v1323
          %v1325 = vpop.f32.mrb[0].mxu0
          %v1326 = vpop.f32.mrb[0].mxu0
          %v1327 = vadd.f32 %v1182, %v1326
          %v1328 = vpop.f32.mrb[0].mxu0
          %1329 = vmatprep.mubr.bf16.mxu0 0
          %1330 = vmatmul.mubr.bf16.gmra.mrb[0].mxu0 %v958
          %v1331 = vpop.f32.mrb[0].mxu0
          %v1332 = vadd.f32 %v1187, %v1331
          %v1333 = vpop.f32.mrb[0].mxu0
          %v1334 = vpop.f32.mrb[0].mxu0
          %v1335 = vadd.f32 %v1190, %v1334
          %v1336 = vpop.f32.mrb[0].mxu0
          %1337 = vmatprep.mubr.bf16.mxu0 0
          %1338 = vmatmul.mubr.bf16.gmra.mrb[0].mxu0 %v959
          %v1339 = vpop.f32.mrb[0].mxu0
          %v1340 = vadd.f32 %v1195, %v1339
          %v1341 = vpop.f32.mrb[0].mxu0
          %v1342 = vpop.f32.mrb[0].mxu0
          %v1343 = vadd.f32 %v1198, %v1342
          %v1344 = vpop.f32.mrb[0].mxu0
          %1345 = vdwg.mxu0
          %v1346 = vld [vmem:[%s6] sm:$0x1]
          %v1348 = vlaneseq
          %v1349 = vshrl.u32 %v1348, 7
          %v1350 = vsub.s32 0, %v1349
          %v1351 = vrot.slane %v1346, %v1350
          %v1353 = vadd.f32 %v1284, %v1351
          %v1354 = vadd.f32 %v1287, %v1351
          %v1355 = vadd.f32 %v1292, %v1351
          %v1356 = vadd.f32 %v1295, %v1351
          %v1357 = vadd.f32 %v1300, %v1351
          %v1358 = vadd.f32 %v1303, %v1351
          %v1359 = vadd.f32 %v1308, %v1351
          %v1360 = vadd.f32 %v1311, %v1351
          %v1361 = vadd.f32 %v1316, %v1351
          %v1362 = vadd.f32 %v1319, %v1351
          %v1363 = vadd.f32 %v1324, %v1351
          %v1364 = vadd.f32 %v1327, %v1351
          %v1365 = vadd.f32 %v1332, %v1351
          %v1366 = vadd.f32 %v1335, %v1351
          %v1367 = vadd.f32 %v1340, %v1351
          %v1368 = vadd.f32 %v1343, %v1351
          %1369 = vst [vmem:[%s399] sm:$0xff] %v1353
          %1370 = vst [vmem:[%s399 + $0x8] sm:$0xff] %v1354
          %1371 = vst [vmem:[%s399 + $0x10] sm:$0xff] %v1355
          %1372 = vst [vmem:[%s399 + $0x18] sm:$0xff] %v1356
          %1373 = vst [vmem:[%s399 + $0x20] sm:$0xff] %v1357
          %1374 = vst [vmem:[%s399 + $0x28] sm:$0xff] %v1358
          %1375 = vst [vmem:[%s399 + $0x30] sm:$0xff] %v1359
          %1376 = vst [vmem:[%s399 + $0x38] sm:$0xff] %v1360
          %1377 = vst [vmem:[%s399 + $0x40] sm:$0xff] %v1361
          %1378 = vst [vmem:[%s399 + $0x48] sm:$0xff] %v1362
          %1379 = vst [vmem:[%s399 + $0x50] sm:$0xff] %v1363
          %1380 = vst [vmem:[%s399 + $0x58] sm:$0xff] %v1364
          %1381 = vst [vmem:[%s399 + $0x60] sm:$0xff] %v1365
          %1382 = vst [vmem:[%s399 + $0x68] sm:$0xff] %v1366
          %1383 = vst [vmem:[%s399 + $0x70] sm:$0xff] %v1367
          %1384 = vst [vmem:[%s399 + $0x78] sm:$0xff] %v1368
        $region64: #{emma_sage_forward.5} parent=55 // pred_fallthru
          _
        %s1385 = sand.u32 %s254, 1
        %s1386 = scalar_lea.sflag [#allocation4], %s1385
        %s1387 = sand.u32 %s254, 1
        %s1388 = smul.addr %s1387, 128
        %s1389 = scalar_lea.vmem [#allocation3], %s1388
        // Predicated region
        $region65: #{emma_sage_forward.5} parent=55 // pred_check
          %p1390 = pneg %p264
        $region66: #{emma_sage_forward.5} parent=55 // pred_check_branch
          %1392 = sbr.rel (%p1390) target = $region68
        $region67: #{emma_sage_forward.5} parent=55 // pred_region
          %s1393 = smul.u32 16, %s27
          %s1395 = ssub.s32 2048, 2048
          %1396 = vsyncadd %s1386, %s1395
          %s1397 = smul.addr %s1393, 128
          %s1398 = scalar_lea.hbm %s9, %s1397
          %s1399 = sshll.u32 %s1389, 4
          %s1400 = int_to_ptr.vmem [resolvable:$true] %s1399
          %1405 = dma.vmem_to_hbm [thread:$0]  %s1400, 2048, %s1398, %s1386, 128, 128, 8
        $region68: #{emma_sage_forward.5} parent=55 // pred_fallthru
          _
      $region56: #{emma_sage_forward.5} parent=5 // pred_fallthru
        _
      %p1406 = scmp.le.s32.totalorder 2, %s18
      // Predicated region
      $region69: #{emma_sage_forward.5} parent=5 // pred_check
        %p1407 = pneg %p1406
      $region70: #{emma_sage_forward.5} parent=5 // pred_check_branch
        %1409 = sbr.rel (%p1407) target = $region72
      $region71: #{emma_sage_forward.5} parent=5 // pred_region
        %s1410 = ssub.s32 %s18, 2
        // Predicated region
        $region73: #{emma_sage_forward.5} parent=71 // pred_check
          %p1411 = pneg %p270
        $region74: #{emma_sage_forward.5} parent=71 // pred_check_branch
          %1413 = sbr.rel (%p1411) target = $region76
        $region75: #{emma_sage_forward.5} parent=71 // pred_region
          %s1414 = sand.u32 %s255, 1
          %s1415 = scalar_lea.sflag [#allocation4], %s1414
          %s1416 = sand.u32 %s255, 1
          %s1417 = smul.addr %s1416, 128
          %s1418 = scalar_lea.vmem [#allocation3], %s1417
          %1419 = dma.done %s1415, 2048
        $region76: #{emma_sage_forward.5} parent=71 // pred_fallthru
          _
      $region72: #{emma_sage_forward.5} parent=5 // pred_fallthru
        _
    $region6: #{emma_sage_forward.5} parent=1 // loop_footer
      %s22 = sadd.s32 1, %s18
    $region7: #{emma_sage_forward.5} parent=1 // loop_footer_branch
      %17 = sbr.rel target = $region3
    $region8: #{emma_sage_forward.5} parent=1 // loop_exit
      _
    %1420 = vsyncpa [#allocation4], 1
    %s1421 = scalar_lea.sflag [#allocation4], 1
    %1422 = vsyncpa %s1421, 1

// kernel: emma_sage_forward.4
$region0: #{emma_sage_forward.4}
  #allocation0 [shape = 'u32[]', space=smem, size = 0x4, offset = 0x4, fixed_abs, tag = 'smem constant byte address 0x4 - core index']
  #allocation1 [shape = 'u32[144,128]{1,0:T(1,128)}', space=vmem, size = 0x12000, scoped, tag = 'internal scratch']
  #allocation2 [shape = 'f32[128,128]{1,0:T(8,128)}', space=vmem, size = 0x10000, scoped, tag = 'scratch operand']
  %s0 = inlined_call_operand.vmem [shape: bf16[256,256], index: 0, kind: input, shape index: {}]
  %s1 = inlined_call_operand.vmem [shape: bf16[256,128], index: 1, kind: input, shape index: {}, may-alias: {1,2}]
  %s2 = inlined_call_operand.vmem [shape: bf16[256,128], index: 2, kind: input, shape index: {}, may-alias: {1,2}]
  %s3 = inlined_call_operand.vmem [shape: f32[256,1], index: 3, kind: input, shape index: {}]
  %s4 = inlined_call_operand.vmem [shape: bf16[128,128], index: 4, kind: input, shape index: {}]
  %s5 = inlined_call_operand.vmem [shape: bf16[128,128], index: 5, kind: input, shape index: {}]
  %s6 = inlined_call_operand.vmem [shape: f32[1,128], index: 6, kind: input, shape index: {}]
  %s7 = inlined_call_operand.vmem [shape: f32[1,128], index: 7, kind: input, shape index: {}]
  %s8 = inlined_call_operand.vmem [shape: f32[1,128], index: 8, kind: input, shape index: {}]
  %s9 = inlined_call_operand.vmem [shape: bf16[256,128], index: 9, kind: output, shape index: {}]
  %s10 = sld [smem:[#allocation0]]
  $region77: #{emma_sage_forward.4} parent=0
    _
  %s12 = ssub.s32 1, %s10
  %s13 = scalar_select 0, %s12, %s10
  loop: start=0, step=1, limit=4
  $region2: #{emma_sage_forward.4} parent=0 // loop_pre_header
    _
  $region3: #{emma_sage_forward.4} parent=0 // loop_header
    %s15 = sphi 0, %s19
    %p16 = scmp.ge.s32.totalorder %s15, 4
    %s22 = sphi 0, %s34
    %s23 = sphi 0, %s30
    %s24 = sphi 0, %s22
    %s25 = sphi 0, %s23
    %s26 = sphi 0, %s24
    %s27 = sphi 0, %s25
    %s39 = sphi 0, %s41
    %s42 = sphi 0, %s39
    %s43 = sphi 0, %s42
    %s59 = sphi 0, %s43
    %s65 = sphi 0, %s67
    %s68 = sphi 0, %s65
    %s69 = sphi 0, %s68
    %s85 = sphi 0, %s69
    %s91 = sphi 0, %s93
    %s94 = sphi 0, %s91
    %s95 = sphi 0, %s94
    %s111 = sphi 0, %s95
    %s117 = sphi 0, %s119
    %s120 = sphi 0, %s117
    %s121 = sphi 0, %s120
    %s137 = sphi 0, %s121
    %s141 = sphi 0, %s141
    %s143 = sphi 0, %s141
    %s144 = sphi 0, %s143
    %s158 = sphi 0, %s144
    %s162 = sphi 0, %s162
    %s164 = sphi 0, %s162
    %s165 = sphi 0, %s164
    %s179 = sphi 0, %s165
    %s183 = sphi 0, %s183
    %s185 = sphi 0, %s183
    %s186 = sphi 0, %s185
    %s200 = sphi 0, %s186
    %s204 = sphi 0, %s204
    %s206 = sphi 0, %s204
    %s207 = sphi 0, %s206
    %s221 = sphi 0, %s207
    %s225 = sphi 0, %s225
    %s227 = sphi 0, %s225
    %s228 = sphi 0, %s227
    %s242 = sphi 0, %s228
    %s248 = sphi 0, %s250
    %s251 = sphi 0, %s248
    %s252 = sphi 0, %s251
    %s268 = sphi 0, %s252
  $region4: #{emma_sage_forward.4} parent=0 // loop_header_branch
    %18 = sbr.rel (%p16) target = $region8
  $region5: #{emma_sage_forward.4} parent=0 // loop_body
    %s20 = ssub.s32 %s15, 1
    %s21 = ssub.s32 %s15, 2
    %s28 = sadd.s32 1, %s23
    %p29 = scmp.ge.s32.totalorder %s28, 1
    %s30 = scalar_select %p29, 0, %s28
    %s31 = sadd.s32 1, %s22
    %s32 = scalar_select %p29, %s31, %s22
    %p33 = scmp.ge.s32.totalorder %s32, 2
    %s34 = scalar_select %p33, 0, %s32
    %s35 = ssub.s32 %s22, %s34
    %s36 = ssub.s32 %s23, %s30
    %s37 = sor.u32 %s35, %s36
    %p38 = scmp.eq.s32.totalorder %s37, 0
    %s40 = sadd.s32 %s39, 1
    %s41 = scalar_select %p38, %s39, %s40
    %p44 = pneg %p38
    %p45 = scmp.eq.s32.totalorder %s15, 1
    %p46 = por %p44, %p45
    %p47 = scmp.ne.s32.totalorder %s39, %s42
    %p48 = scmp.eq.s32.totalorder %s15, 0
    %p49 = por %p47, %p48
    %p50 = scmp.ne.s32.totalorder %s39, %s42
    %p51 = scmp.eq.s32.totalorder %s20, 1
    %p52 = por %p50, %p51
    %p53 = scmp.ne.s32.totalorder %s42, %s43
    %p54 = scmp.eq.s32.totalorder %s20, 0
    %p55 = por %p53, %p54
    %p56 = scmp.ne.s32.totalorder %s42, %s43
    %p57 = scmp.eq.s32.totalorder %s21, 1
    %p58 = por %p56, %p57
    %p60 = scmp.ne.s32.totalorder %s43, %s59
    %p61 = scmp.eq.s32.totalorder %s21, 0
    %p62 = por %p60, %p61
    %s63 = ssub.s32 %s23, %s30
    %p64 = scmp.eq.s32.totalorder %s63, 0
    %s66 = sadd.s32 %s65, 1
    %s67 = scalar_select %p64, %s65, %s66
    %p70 = pneg %p64
    %p71 = scmp.eq.s32.totalorder %s15, 1
    %p72 = por %p70, %p71
    %p73 = scmp.ne.s32.totalorder %s65, %s68
    %p74 = scmp.eq.s32.totalorder %s15, 0
    %p75 = por %p73, %p74
    %p76 = scmp.ne.s32.totalorder %s65, %s68
    %p77 = scmp.eq.s32.totalorder %s20, 1
    %p78 = por %p76, %p77
    %p79 = scmp.ne.s32.totalorder %s68, %s69
    %p80 = scmp.eq.s32.totalorder %s20, 0
    %p81 = por %p79, %p80
    %p82 = scmp.ne.s32.totalorder %s68, %s69
    %p83 = scmp.eq.s32.totalorder %s21, 1
    %p84 = por %p82, %p83
    %p86 = scmp.ne.s32.totalorder %s69, %s85
    %p87 = scmp.eq.s32.totalorder %s21, 0
    %p88 = por %p86, %p87
    %s89 = ssub.s32 %s22, %s34
    %p90 = scmp.eq.s32.totalorder %s89, 0
    %s92 = sadd.s32 %s91, 1
    %s93 = scalar_select %p90, %s91, %s92
    %p96 = pneg %p90
    %p97 = scmp.eq.s32.totalorder %s15, 1
    %p98 = por %p96, %p97
    %p99 = scmp.ne.s32.totalorder %s91, %s94
    %p100 = scmp.eq.s32.totalorder %s15, 0
    %p101 = por %p99, %p100
    %p102 = scmp.ne.s32.totalorder %s91, %s94
    %p103 = scmp.eq.s32.totalorder %s20, 1
    %p104 = por %p102, %p103
    %p105 = scmp.ne.s32.totalorder %s94, %s95
    %p106 = scmp.eq.s32.totalorder %s20, 0
    %p107 = por %p105, %p106
    %p108 = scmp.ne.s32.totalorder %s94, %s95
    %p109 = scmp.eq.s32.totalorder %s21, 1
    %p110 = por %p108, %p109
    %p112 = scmp.ne.s32.totalorder %s95, %s111
    %p113 = scmp.eq.s32.totalorder %s21, 0
    %p114 = por %p112, %p113
    %s115 = ssub.s32 %s22, %s34
    %p116 = scmp.eq.s32.totalorder %s115, 0
    %s118 = sadd.s32 %s117, 1
    %s119 = scalar_select %p116, %s117, %s118
    %p122 = pneg %p116
    %p123 = scmp.eq.s32.totalorder %s15, 1
    %p124 = por %p122, %p123
    %p125 = scmp.ne.s32.totalorder %s117, %s120
    %p126 = scmp.eq.s32.totalorder %s15, 0
    %p127 = por %p125, %p126
    %p128 = scmp.ne.s32.totalorder %s117, %s120
    %p129 = scmp.eq.s32.totalorder %s20, 1
    %p130 = por %p128, %p129
    %p131 = scmp.ne.s32.totalorder %s120, %s121
    %p132 = scmp.eq.s32.totalorder %s20, 0
    %p133 = por %p131, %p132
    %p134 = scmp.ne.s32.totalorder %s120, %s121
    %p135 = scmp.eq.s32.totalorder %s21, 1
    %p136 = por %p134, %p135
    %p138 = scmp.ne.s32.totalorder %s121, %s137
    %p139 = scmp.eq.s32.totalorder %s21, 0
    %p140 = por %p138, %p139
    %s142 = sadd.s32 %s141, 1
    %p145 = scmp.eq.s32.totalorder %s15, 1
    %p146 = scmp.ne.s32.totalorder %s141, %s143
    %p147 = scmp.eq.s32.totalorder %s15, 0
    %p148 = por %p146, %p147
    %p149 = scmp.ne.s32.totalorder %s141, %s143
    %p150 = scmp.eq.s32.totalorder %s20, 1
    %p151 = por %p149, %p150
    %p152 = scmp.ne.s32.totalorder %s143, %s144
    %p153 = scmp.eq.s32.totalorder %s20, 0
    %p154 = por %p152, %p153
    %p155 = scmp.ne.s32.totalorder %s143, %s144
    %p156 = scmp.eq.s32.totalorder %s21, 1
    %p157 = por %p155, %p156
    %p159 = scmp.ne.s32.totalorder %s144, %s158
    %p160 = scmp.eq.s32.totalorder %s21, 0
    %p161 = por %p159, %p160
    %s163 = sadd.s32 %s162, 1
    %p166 = scmp.eq.s32.totalorder %s15, 1
    %p167 = scmp.ne.s32.totalorder %s162, %s164
    %p168 = scmp.eq.s32.totalorder %s15, 0
    %p169 = por %p167, %p168
    %p170 = scmp.ne.s32.totalorder %s162, %s164
    %p171 = scmp.eq.s32.totalorder %s20, 1
    %p172 = por %p170, %p171
    %p173 = scmp.ne.s32.totalorder %s164, %s165
    %p174 = scmp.eq.s32.totalorder %s20, 0
    %p175 = por %p173, %p174
    %p176 = scmp.ne.s32.totalorder %s164, %s165
    %p177 = scmp.eq.s32.totalorder %s21, 1
    %p178 = por %p176, %p177
    %p180 = scmp.ne.s32.totalorder %s165, %s179
    %p181 = scmp.eq.s32.totalorder %s21, 0
    %p182 = por %p180, %p181
    %s184 = sadd.s32 %s183, 1
    %p187 = scmp.eq.s32.totalorder %s15, 1
    %p188 = scmp.ne.s32.totalorder %s183, %s185
    %p189 = scmp.eq.s32.totalorder %s15, 0
    %p190 = por %p188, %p189
    %p191 = scmp.ne.s32.totalorder %s183, %s185
    %p192 = scmp.eq.s32.totalorder %s20, 1
    %p193 = por %p191, %p192
    %p194 = scmp.ne.s32.totalorder %s185, %s186
    %p195 = scmp.eq.s32.totalorder %s20, 0
    %p196 = por %p194, %p195
    %p197 = scmp.ne.s32.totalorder %s185, %s186
    %p198 = scmp.eq.s32.totalorder %s21, 1
    %p199 = por %p197, %p198
    %p201 = scmp.ne.s32.totalorder %s186, %s200
    %p202 = scmp.eq.s32.totalorder %s21, 0
    %p203 = por %p201, %p202
    %s205 = sadd.s32 %s204, 1
    %p208 = scmp.eq.s32.totalorder %s15, 1
    %p209 = scmp.ne.s32.totalorder %s204, %s206
    %p210 = scmp.eq.s32.totalorder %s15, 0
    %p211 = por %p209, %p210
    %p212 = scmp.ne.s32.totalorder %s204, %s206
    %p213 = scmp.eq.s32.totalorder %s20, 1
    %p214 = por %p212, %p213
    %p215 = scmp.ne.s32.totalorder %s206, %s207
    %p216 = scmp.eq.s32.totalorder %s20, 0
    %p217 = por %p215, %p216
    %p218 = scmp.ne.s32.totalorder %s206, %s207
    %p219 = scmp.eq.s32.totalorder %s21, 1
    %p220 = por %p218, %p219
    %p222 = scmp.ne.s32.totalorder %s207, %s221
    %p223 = scmp.eq.s32.totalorder %s21, 0
    %p224 = por %p222, %p223
    %s226 = sadd.s32 %s225, 1
    %p229 = scmp.eq.s32.totalorder %s15, 1
    %p230 = scmp.ne.s32.totalorder %s225, %s227
    %p231 = scmp.eq.s32.totalorder %s15, 0
    %p232 = por %p230, %p231
    %p233 = scmp.ne.s32.totalorder %s225, %s227
    %p234 = scmp.eq.s32.totalorder %s20, 1
    %p235 = por %p233, %p234
    %p236 = scmp.ne.s32.totalorder %s227, %s228
    %p237 = scmp.eq.s32.totalorder %s20, 0
    %p238 = por %p236, %p237
    %p239 = scmp.ne.s32.totalorder %s227, %s228
    %p240 = scmp.eq.s32.totalorder %s21, 1
    %p241 = por %p239, %p240
    %p243 = scmp.ne.s32.totalorder %s228, %s242
    %p244 = scmp.eq.s32.totalorder %s21, 0
    %p245 = por %p243, %p244
    %s246 = ssub.s32 %s22, %s34
    %p247 = scmp.eq.s32.totalorder %s246, 0
    %s249 = sadd.s32 %s248, 1
    %s250 = scalar_select %p247, %s248, %s249
    %p253 = pneg %p247
    %p254 = scmp.eq.s32.totalorder %s15, 1
    %p255 = por %p253, %p254
    %p256 = scmp.ne.s32.totalorder %s248, %s251
    %p257 = scmp.eq.s32.totalorder %s15, 0
    %p258 = por %p256, %p257
    %p259 = scmp.ne.s32.totalorder %s248, %s251
    %p260 = scmp.eq.s32.totalorder %s20, 1
    %p261 = por %p259, %p260
    %p262 = scmp.ne.s32.totalorder %s251, %s252
    %p263 = scmp.eq.s32.totalorder %s20, 0
    %p264 = por %p262, %p263
    %p265 = scmp.ne.s32.totalorder %s251, %s252
    %p266 = scmp.eq.s32.totalorder %s21, 1
    %p267 = por %p265, %p266
    %p269 = scmp.ne.s32.totalorder %s252, %s268
    %p270 = scmp.eq.s32.totalorder %s21, 0
    %p271 = por %p269, %p270
    %p272 = scmp.le.s32.totalorder 1, %s15
    %p273 = scmp.lt.s32.totalorder %s15, 3
    %p274 = pnand %p272, %p273
    %p275 = pneg %p274
    // Predicated region
    $region9: #{emma_sage_forward.4} parent=5 // pred_check
      _
    $region10: #{emma_sage_forward.4} parent=5 // pred_check_branch
      %277 = sbr.rel (%p274) target = $region12
    $region11: #{emma_sage_forward.4} parent=5 // pred_region
      %s278 = ssub.s32 %s15, 1
      // Predicated region
      $region13: #{emma_sage_forward.4} parent=11 // pred_check
        %p279 = pneg %p81
      $region14: #{emma_sage_forward.4} parent=11 // pred_check_branch
        %281 = sbr.rel (%p279) target = $region16
      $region15: #{emma_sage_forward.4} parent=11 // pred_region
        %s282 = smul.u32 32, %s25
        %p283 = scmp.lt.s32.totalorder %s282, 31
        %s284 = scalar_select %p283, %s282, 31
        %s285 = smul.addr %s284, 4
        %s286 = scalar_lea.vmem %s1, %s285
        %s287 = smul.u32 32, %s25
      $region16: #{emma_sage_forward.4} parent=11 // pred_fallthru
        _
      // Predicated region
      $region17: #{emma_sage_forward.4} parent=11 // pred_check
        %p288 = pneg %p154
      $region18: #{emma_sage_forward.4} parent=11 // pred_check_branch
        %290 = sbr.rel (%p288) target = $region20
      $region19: #{emma_sage_forward.4} parent=11 // pred_region
        _
      $region20: #{emma_sage_forward.4} parent=11 // pred_fallthru
        _
      // Predicated region
      $region21: #{emma_sage_forward.4} parent=11 // pred_check
        %p291 = pneg %p175
      $region22: #{emma_sage_forward.4} parent=11 // pred_check_branch
        %293 = sbr.rel (%p291) target = $region24
      $region23: #{emma_sage_forward.4} parent=11 // pred_region
        _
      $region24: #{emma_sage_forward.4} parent=11 // pred_fallthru
        _
      // Predicated region
      $region25: #{emma_sage_forward.4} parent=11 // pred_check
        %p294 = pneg %p196
      $region26: #{emma_sage_forward.4} parent=11 // pred_check_branch
        %296 = sbr.rel (%p294) target = $region28
      $region27: #{emma_sage_forward.4} parent=11 // pred_region
        _
      $region28: #{emma_sage_forward.4} parent=11 // pred_fallthru
        _
      // Predicated region
      $region29: #{emma_sage_forward.4} parent=11 // pred_check
        %p297 = pneg %p217
      $region30: #{emma_sage_forward.4} parent=11 // pred_check_branch
        %299 = sbr.rel (%p297) target = $region32
      $region31: #{emma_sage_forward.4} parent=11 // pred_region
        _
      $region32: #{emma_sage_forward.4} parent=11 // pred_fallthru
        _
      // Predicated region
      $region33: #{emma_sage_forward.4} parent=11 // pred_check
        %p300 = pneg %p238
      $region34: #{emma_sage_forward.4} parent=11 // pred_check_branch
        %302 = sbr.rel (%p300) target = $region36
      $region35: #{emma_sage_forward.4} parent=11 // pred_region
        _
      $region36: #{emma_sage_forward.4} parent=11 // pred_fallthru
        _
    $region12: #{emma_sage_forward.4} parent=5 // pred_fallthru
      _
    %p303 = scmp.lt.s32.totalorder %s15, 2
    // Predicated region
    $region37: #{emma_sage_forward.4} parent=5 // pred_check
      %p304 = pneg %p303
    $region38: #{emma_sage_forward.4} parent=5 // pred_check_branch
      %306 = sbr.rel (%p304) target = $region40
    $region39: #{emma_sage_forward.4} parent=5 // pred_region
      // Predicated region
      $region41: #{emma_sage_forward.4} parent=39 // pred_check
        %p307 = pneg %p49
      $region42: #{emma_sage_forward.4} parent=39 // pred_check_branch
        %309 = sbr.rel (%p307) target = $region44
      $region43: #{emma_sage_forward.4} parent=39 // pred_region
        %s310 = smul.u32 16, %s22
        %s311 = smul.u32 2, %s23
        %p312 = scmp.lt.s32.totalorder %s310, 31
        %s313 = scalar_select %p312, %s310, 31
        %p314 = scmp.lt.s32.totalorder %s311, 1
        %s315 = scalar_select %p314, %s311, 1
        %s316 = smul.addr %s313, 2
        %s317 = sadd.s32 %s315, %s316
        %s318 = smul.addr %s317, 4
        %s319 = scalar_lea.vmem %s0, %s318
        %s320 = smul.u32 16, %s22
        %s321 = smul.u32 2, %s23
      $region44: #{emma_sage_forward.4} parent=39 // pred_fallthru
        _
      // Predicated region
      $region45: #{emma_sage_forward.4} parent=39 // pred_check
        %p322 = pneg %p101
      $region46: #{emma_sage_forward.4} parent=39 // pred_check_branch
        %324 = sbr.rel (%p322) target = $region48
      $region47: #{emma_sage_forward.4} parent=39 // pred_region
        %s325 = smul.u32 16, %s22
        %p326 = scmp.lt.s32.totalorder %s325, 31
        %s327 = scalar_select %p326, %s325, 31
        %s328 = smul.addr %s327, 4
        %s329 = scalar_lea.vmem %s2, %s328
        %s330 = smul.u32 16, %s22
      $region48: #{emma_sage_forward.4} parent=39 // pred_fallthru
        _
      // Predicated region
      $region49: #{emma_sage_forward.4} parent=39 // pred_check
        %p331 = pneg %p127
      $region50: #{emma_sage_forward.4} parent=39 // pred_check_branch
        %333 = sbr.rel (%p331) target = $region52
      $region51: #{emma_sage_forward.4} parent=39 // pred_region
        %s334 = smul.u32 16, %s22
        %p335 = scmp.lt.s32.totalorder %s334, 31
        %s336 = scalar_select %p335, %s334, 31
        %s337 = smul.addr %s336, 8
        %s338 = scalar_lea.vmem %s3, %s337
        %s339 = smul.u32 16, %s22
      $region52: #{emma_sage_forward.4} parent=39 // pred_fallthru
        _
    $region40: #{emma_sage_forward.4} parent=5 // pred_fallthru
      _
    %p340 = scmp.le.s32.totalorder 1, %s15
    %p341 = scmp.lt.s32.totalorder %s15, 3
    %p342 = pnand %p340, %p341
    %p343 = pneg %p342
    // Predicated region
    $region53: #{emma_sage_forward.4} parent=5 // pred_check
      _
    $region54: #{emma_sage_forward.4} parent=5 // pred_check_branch
      %345 = sbr.rel (%p342) target = $region56
    $region55: #{emma_sage_forward.4} parent=5 // pred_region
      %s346 = ssub.s32 %s15, 1
      %s347 = smul.u32 16, %s24
      %s348 = smul.u32 2, %s25
      %p349 = scmp.lt.s32.totalorder %s347, 31
      %s350 = scalar_select %p349, %s347, 31
      %p351 = scmp.lt.s32.totalorder %s348, 1
      %s352 = scalar_select %p351, %s348, 1
      %s353 = smul.addr %s350, 2
      %s354 = sadd.s32 %s352, %s353
      %s355 = smul.addr %s354, 4
      %s356 = scalar_lea.vmem %s0, %s355
      %p357 = pneg %p55
      %p358 = pneg %p52
      %s359 = smul.u32 32, %s25
      %p360 = scmp.lt.s32.totalorder %s359, 31
      %s361 = scalar_select %p360, %s359, 31
      %s362 = smul.addr %s361, 4
      %s363 = scalar_lea.vmem %s1, %s362
      %p364 = pneg %p81
      %p365 = pneg %p78
      %s366 = smul.u32 16, %s24
      %p367 = scmp.lt.s32.totalorder %s366, 31
      %s368 = scalar_select %p367, %s366, 31
      %s369 = smul.addr %s368, 4
      %s370 = scalar_lea.vmem %s2, %s369
      %p371 = pneg %p107
      %p372 = pneg %p104
      %s373 = smul.u32 16, %s24
      %p374 = scmp.lt.s32.totalorder %s373, 31
      %s375 = scalar_select %p374, %s373, 31
      %s376 = smul.addr %s375, 8
      %s377 = scalar_lea.vmem %s3, %s376
      %p378 = pneg %p133
      %p379 = pneg %p130
      %p380 = pneg %p154
      %p381 = pneg %p151
      %p382 = pneg %p175
      %p383 = pneg %p172
      %p384 = pneg %p196
      %p385 = pneg %p193
      %p386 = pneg %p217
      %p387 = pneg %p214
      %p388 = pneg %p238
      %p389 = pneg %p235
      %p390 = pneg %p264
      %p391 = pneg %p261
      %s392 = smul.u32 16, %s24
      %p393 = scmp.lt.s32.totalorder %s392, 31
      %s394 = scalar_select %p393, %s392, 31
      %s395 = smul.addr %s394, 4
      %s396 = scalar_lea.vmem %s9, %s395
      %s397 = smul.u32 16, %s24
      %s398 = smul.u32 2, %s25
      %p399 = scmp.lt.s32.totalorder %s397, 31
      %s400 = scalar_select %p399, %s397, 31
      %p401 = scmp.lt.s32.totalorder %s398, 1
      %s402 = scalar_select %p401, %s398, 1
      %s403 = smul.addr %s400, 2
      %s404 = sadd.s32 %s402, %s403
      %s405 = smul.addr %s404, 4
      %s406 = scalar_lea.vmem %s0, %s405
      %s407 = smul.u32 16, %s24
      %s408 = smul.u32 2, %s25
      %s409 = smul.u32 32, %s25
      %p410 = scmp.lt.s32.totalorder %s409, 31
      %s411 = scalar_select %p410, %s409, 31
      %s412 = smul.addr %s411, 4
      %s413 = scalar_lea.vmem %s1, %s412
      %s414 = smul.u32 32, %s25
      %s415 = smul.u32 16, %s24
      %p416 = scmp.lt.s32.totalorder %s415, 31
      %s417 = scalar_select %p416, %s415, 31
      %s418 = smul.addr %s417, 4
      %s419 = scalar_lea.vmem %s2, %s418
      %s420 = smul.u32 16, %s24
      %s421 = smul.u32 16, %s24
      %p422 = scmp.lt.s32.totalorder %s421, 31
      %s423 = scalar_select %p422, %s421, 31
      %s424 = smul.addr %s423, 8
      %s425 = scalar_lea.vmem %s3, %s424
      %s426 = smul.u32 16, %s24
      %s427 = smul.u32 16, %s24
      %p428 = scmp.lt.s32.totalorder %s427, 31
      %s429 = scalar_select %p428, %s427, 31
      %s430 = smul.addr %s429, 4
      %s431 = scalar_lea.vmem %s9, %s430
      %s432 = smul.u32 16, %s24
      %p434 = scmp.eq.s32.totalorder %s25, 0
      // Predicated region
      $region57: #{emma_sage_forward.4} parent=55 // pred_check
        %p435 = pneg %p434
      $region58: #{emma_sage_forward.4} parent=55 // pred_check_branch
        %437 = sbr.rel (%p435) target = $region60
      $region59: #{emma_sage_forward.4} parent=55 // pred_region
        %438 = vst [vmem:[#allocation2] sm:$0xff] 0.0
        %439 = vst [vmem:[#allocation2 + $0x8] sm:$0xff] 0.0
        %440 = vst [vmem:[#allocation2 + $0x10] sm:$0xff] 0.0
        %441 = vst [vmem:[#allocation2 + $0x18] sm:$0xff] 0.0
        %442 = vst [vmem:[#allocation2 + $0x20] sm:$0xff] 0.0
        %443 = vst [vmem:[#allocation2 + $0x28] sm:$0xff] 0.0
        %444 = vst [vmem:[#allocation2 + $0x30] sm:$0xff] 0.0
        %445 = vst [vmem:[#allocation2 + $0x38] sm:$0xff] 0.0
        %446 = vst [vmem:[#allocation2 + $0x40] sm:$0xff] 0.0
        %447 = vst [vmem:[#allocation2 + $0x48] sm:$0xff] 0.0
        %448 = vst [vmem:[#allocation2 + $0x50] sm:$0xff] 0.0
        %449 = vst [vmem:[#allocation2 + $0x58] sm:$0xff] 0.0
        %450 = vst [vmem:[#allocation2 + $0x60] sm:$0xff] 0.0
        %451 = vst [vmem:[#allocation2 + $0x68] sm:$0xff] 0.0
        %452 = vst [vmem:[#allocation2 + $0x70] sm:$0xff] 0.0
        %453 = vst [vmem:[#allocation2 + $0x78] sm:$0xff] 0.0
      $region60: #{emma_sage_forward.4} parent=55 // pred_fallthru
        _
      %v454 = vld [vmem:[#allocation2] sm:$0xff]
      %v455 = vld [vmem:[#allocation2 + $0x8] sm:$0xff]
      %v456 = vld [vmem:[#allocation2 + $0x10] sm:$0xff]
      %v457 = vld [vmem:[#allocation2 + $0x18] sm:$0xff]
      %v458 = vld [vmem:[#allocation2 + $0x20] sm:$0xff]
      %v459 = vld [vmem:[#allocation2 + $0x28] sm:$0xff]
      %v460 = vld [vmem:[#allocation2 + $0x30] sm:$0xff]
      %v461 = vld [vmem:[#allocation2 + $0x38] sm:$0xff]
      %v462 = vld [vmem:[#allocation2 + $0x40] sm:$0xff]
      %v463 = vld [vmem:[#allocation2 + $0x48] sm:$0xff]
      %v464 = vld [vmem:[#allocation2 + $0x50] sm:$0xff]
      %v465 = vld [vmem:[#allocation2 + $0x58] sm:$0xff]
      %v466 = vld [vmem:[#allocation2 + $0x60] sm:$0xff]
      %v467 = vld [vmem:[#allocation2 + $0x68] sm:$0xff]
      %v468 = vld [vmem:[#allocation2 + $0x70] sm:$0xff]
      %v469 = vld [vmem:[#allocation2 + $0x78] sm:$0xff]
      %v470 = vld [vmem:[%s406] sm:$0xff]
      %v471 = vld [vmem:[%s406 + $0x8] sm:$0xff]
      %v472 = vld [vmem:[%s406 + $0x10] sm:$0xff]
      %v473 = vld [vmem:[%s406 + $0x18] sm:$0xff]
      %v474 = vld [vmem:[%s406 + $0x20] sm:$0xff]
      %v475 = vld [vmem:[%s406 + $0x28] sm:$0xff]
      %v476 = vld [vmem:[%s406 + $0x30] sm:$0xff]
      %v477 = vld [vmem:[%s406 + $0x38] sm:$0xff]
      %v478 = vld [vmem:[%s406 + $0x40] sm:$0xff]
      %v479 = vld [vmem:[%s406 + $0x48] sm:$0xff]
      %v480 = vld [vmem:[%s406 + $0x50] sm:$0xff]
      %v481 = vld [vmem:[%s406 + $0x58] sm:$0xff]
      %v482 = vld [vmem:[%s406 + $0x60] sm:$0xff]
      %v483 = vld [vmem:[%s406 + $0x68] sm:$0xff]
      %v484 = vld [vmem:[%s406 + $0x70] sm:$0xff]
      %v485 = vld [vmem:[%s406 + $0x78] sm:$0xff]
      %v486 = vld [vmem:[%s413] sm:$0xf]
      %v487 = vld [vmem:[%s413 + $0x4] sm:$0xf]
      %v488 = vld [vmem:[%s413 + $0x8] sm:$0xf]
      %v489 = vld [vmem:[%s413 + $0xc] sm:$0xf]
      %v490 = vld [vmem:[%s413 + $0x10] sm:$0xf]
      %v491 = vld [vmem:[%s413 + $0x14] sm:$0xf]
      %v492 = vld [vmem:[%s413 + $0x18] sm:$0xf]
      %v493 = vld [vmem:[%s413 + $0x1c] sm:$0xf]
      %v494 = vld [vmem:[%s413 + $0x20] sm:$0xf]
      %v495 = vld [vmem:[%s413 + $0x24] sm:$0xf]
      %v496 = vld [vmem:[%s413 + $0x28] sm:$0xf]
      %v497 = vld [vmem:[%s413 + $0x2c] sm:$0xf]
      %v498 = vld [vmem:[%s413 + $0x30] sm:$0xf]
      %v499 = vld [vmem:[%s413 + $0x34] sm:$0xf]
      %v500 = vld [vmem:[%s413 + $0x38] sm:$0xf]
      %v501 = vld [vmem:[%s413 + $0x3c] sm:$0xf]
      %v502 = vld [vmem:[%s413 + $0x40] sm:$0xf]
      %v503 = vld [vmem:[%s413 + $0x44] sm:$0xf]
      %v504 = vld [vmem:[%s413 + $0x48] sm:$0xf]
      %v505 = vld [vmem:[%s413 + $0x4c] sm:$0xf]
      %v506 = vld [vmem:[%s413 + $0x50] sm:$0xf]
      %v507 = vld [vmem:[%s413 + $0x54] sm:$0xf]
      %v508 = vld [vmem:[%s413 + $0x58] sm:$0xf]
      %v509 = vld [vmem:[%s413 + $0x5c] sm:$0xf]
      %v510 = vld [vmem:[%s413 + $0x60] sm:$0xf]
      %v511 = vld [vmem:[%s413 + $0x64] sm:$0xf]
      %v512 = vld [vmem:[%s413 + $0x68] sm:$0xf]
      %v513 = vld [vmem:[%s413 + $0x6c] sm:$0xf]
      %v514 = vld [vmem:[%s413 + $0x70] sm:$0xf]
      %v515 = vld [vmem:[%s413 + $0x74] sm:$0xf]
      %v516 = vld [vmem:[%s413 + $0x78] sm:$0xf]
      %v517 = vld [vmem:[%s413 + $0x7c] sm:$0xf]
      %v534 = vunpack.c.l.b16 %v470
      %v535 = vunpack.c.h.b16 %v470
      %v536 = vunpack.c.l.b16 %v471
      %v537 = vunpack.c.h.b16 %v471
      %v538 = vunpack.c.l.b16 %v472
      %v539 = vunpack.c.h.b16 %v472
      %v540 = vunpack.c.l.b16 %v473
      %v541 = vunpack.c.h.b16 %v473
      %v542 = vunpack.c.l.b16 %v474
      %v543 = vunpack.c.h.b16 %v474
      %v544 = vunpack.c.l.b16 %v475
      %v545 = vunpack.c.h.b16 %v475
      %v546 = vunpack.c.l.b16 %v476
      %v547 = vunpack.c.h.b16 %v476
      %v548 = vunpack.c.l.b16 %v477
      %v549 = vunpack.c.h.b16 %v477
      %v550 = vunpack.c.l.b16 %v478
      %v551 = vunpack.c.h.b16 %v478
      %v552 = vunpack.c.l.b16 %v479
      %v553 = vunpack.c.h.b16 %v479
      %v554 = vunpack.c.l.b16 %v480
      %v555 = vunpack.c.h.b16 %v480
      %v556 = vunpack.c.l.b16 %v481
      %v557 = vunpack.c.h.b16 %v481
      %v558 = vunpack.c.l.b16 %v482
      %v559 = vunpack.c.h.b16 %v482
      %v560 = vunpack.c.l.b16 %v483
      %v561 = vunpack.c.h.b16 %v483
      %v562 = vunpack.c.l.b16 %v484
      %v563 = vunpack.c.h.b16 %v484
      %v564 = vunpack.c.l.b16 %v485
      %v565 = vunpack.c.h.b16 %v485
      %v566 = vpack.c.b16 %v536, %v534
      %v567 = vpack.c.b16 %v537, %v535
      %v568 = vpack.c.b16 %v540, %v538
      %v569 = vpack.c.b16 %v541, %v539
      %v570 = vpack.c.b16 %v544, %v542
      %v571 = vpack.c.b16 %v545, %v543
      %v572 = vpack.c.b16 %v548, %v546
      %v573 = vpack.c.b16 %v549, %v547
      %v574 = vpack.c.b16 %v552, %v550
      %v575 = vpack.c.b16 %v553, %v551
      %v576 = vpack.c.b16 %v556, %v554
      %v577 = vpack.c.b16 %v557, %v555
      %v578 = vpack.c.b16 %v560, %v558
      %v579 = vpack.c.b16 %v561, %v559
      %v580 = vpack.c.b16 %v564, %v562
      %v581 = vpack.c.b16 %v565, %v563
      %v630 = vunpack.c.l.b16 %v486
      %v631 = vunpack.c.l.b16 %v487
      %v632 = vunpack.c.l.b16 %v488
      %v633 = vunpack.c.l.b16 %v489
      %v634 = vunpack.c.l.b16 %v490
      %v635 = vunpack.c.l.b16 %v491
      %v636 = vunpack.c.l.b16 %v492
      %v637 = vunpack.c.l.b16 %v493
      %v638 = vunpack.c.l.b16 %v494
      %v639 = vunpack.c.l.b16 %v495
      %v640 = vunpack.c.l.b16 %v496
      %v641 = vunpack.c.l.b16 %v497
      %v642 = vunpack.c.l.b16 %v498
      %v643 = vunpack.c.l.b16 %v499
      %v644 = vunpack.c.l.b16 %v500
      %v645 = vunpack.c.l.b16 %v501
      %v646 = vunpack.c.l.b16 %v502
      %v647 = vunpack.c.l.b16 %v503
      %v648 = vunpack.c.l.b16 %v504
      %v649 = vunpack.c.l.b16 %v505
      %v650 = vunpack.c.l.b16 %v506
      %v651 = vunpack.c.l.b16 %v507
      %v652 = vunpack.c.l.b16 %v508
      %v653 = vunpack.c.l.b16 %v509
      %v654 = vunpack.c.l.b16 %v510
      %v655 = vunpack.c.l.b16 %v511
      %v656 = vunpack.c.l.b16 %v512
      %v657 = vunpack.c.l.b16 %v513
      %v658 = vunpack.c.l.b16 %v514
      %v659 = vunpack.c.l.b16 %v515
      %v660 = vunpack.c.l.b16 %v516
      %v661 = vunpack.c.l.b16 %v517
      %v662 = vpack.c.b16 %v631, %v630
      %v663 = vpack.c.b16 %v633, %v632
      %v664 = vpack.c.b16 %v635, %v634
      %v665 = vpack.c.b16 %v637, %v636
      %v666 = vpack.c.b16 %v639, %v638
      %v667 = vpack.c.b16 %v641, %v640
      %v668 = vpack.c.b16 %v643, %v642
      %v669 = vpack.c.b16 %v645, %v644
      %v670 = vpack.c.b16 %v647, %v646
      %v671 = vpack.c.b16 %v649, %v648
      %v672 = vpack.c.b16 %v651, %v650
      %v673 = vpack.c.b16 %v653, %v652
      %v674 = vpack.c.b16 %v655, %v654
      %v675 = vpack.c.b16 %v657, %v656
      %v676 = vpack.c.b16 %v659, %v658
      %v677 = vpack.c.b16 %v661, %v660
      %694 = vmatprep.subr.bf16.mxu0 0
      %695 = vmatpush1.bf16.msra.mxu0 %v662
      %696 = vmatprep.subr.bf16.mxu0 0
      %697 = vmatpush1.bf16.msra.mxu0 %v663
      %698 = vmatprep.subr.bf16.mxu0 0
      %699 = vmatpush1.bf16.msra.mxu0 %v664
      %700 = vmatprep.subr.bf16.mxu0 0
      %701 = vmatpush1.bf16.msra.mxu0 %v665
      %702 = vmatprep.subr.bf16.mxu0 0
      %703 = vmatpush1.bf16.msra.mxu0 %v666
      %704 = vmatprep.subr.bf16.mxu0 0
      %705 = vmatpush1.bf16.msra.mxu0 %v667
      %706 = vmatprep.subr.bf16.mxu0 0
      %707 = vmatpush1.bf16.msra.mxu0 %v668
      %708 = vmatprep.subr.bf16.mxu0 0
      %709 = vmatpush1.bf16.msra.mxu0 %v669
      %710 = vmatprep.subr.bf16.mxu0 0
      %711 = vmatpush1.bf16.msra.mxu0 %v670
      %712 = vmatprep.subr.bf16.mxu0 0
      %713 = vmatpush1.bf16.msra.mxu0 %v671
      %714 = vmatprep.subr.bf16.mxu0 0
      %715 = vmatpush1.bf16.msra.mxu0 %v672
      %716 = vmatprep.subr.bf16.mxu0 0
      %717 = vmatpush1.bf16.msra.mxu0 %v673
      %718 = vmatprep.subr.bf16.mxu0 0
      %719 = vmatpush1.bf16.msra.mxu0 %v674
      %720 = vmatprep.subr.bf16.mxu0 0
      %721 = vmatpush1.bf16.msra.mxu0 %v675
      %722 = vmatprep.subr.bf16.mxu0 0
      %723 = vmatpush1.bf16.msra.mxu0 %v676
      %724 = vmatprep.subr.bf16.mxu0 0
      %725 = vmatpush1.bf16.msra.mxu0 %v677
      %726 = vmatprep.mubr.bf16.mxu0 %v567
      %727 = vmatmul.mubr.bf16.gmra.mrb[0].mxu0 %v566
      %v728 = vpop.f32.mrb[0].mxu0
      %v729 = vadd.f32 0.0, %v728
      %v730 = vpop.f32.mrb[0].mxu0
      %v731 = vpop.f32.mrb[0].mxu0
      %v732 = vadd.f32 0.0, %v731
      %v733 = vpop.f32.mrb[0].mxu0
      %734 = vmatprep.mubr.bf16.mxu0 %v569
      %735 = vmatmul.mubr.bf16.gmra.mrb[0].mxu0 %v568
      %v736 = vpop.f32.mrb[0].mxu0
      %v737 = vadd.f32 0.0, %v736
      %v738 = vpop.f32.mrb[0].mxu0
      %v739 = vpop.f32.mrb[0].mxu0
      %v740 = vadd.f32 0.0, %v739
      %v741 = vpop.f32.mrb[0].mxu0
      %742 = vmatprep.mubr.bf16.mxu0 %v571
      %743 = vmatmul.mubr.bf16.gmra.mrb[0].mxu0 %v570
      %v744 = vpop.f32.mrb[0].mxu0
      %v745 = vadd.f32 0.0, %v744
      %v746 = vpop.f32.mrb[0].mxu0
      %v747 = vpop.f32.mrb[0].mxu0
      %v748 = vadd.f32 0.0, %v747
      %v749 = vpop.f32.mrb[0].mxu0
      %750 = vmatprep.mubr.bf16.mxu0 %v573
      %751 = vmatmul.mubr.bf16.gmra.mrb[0].mxu0 %v572
      %v752 = vpop.f32.mrb[0].mxu0
      %v753 = vadd.f32 0.0, %v752
      %v754 = vpop.f32.mrb[0].mxu0
      %v755 = vpop.f32.mrb[0].mxu0
      %v756 = vadd.f32 0.0, %v755
      %v757 = vpop.f32.mrb[0].mxu0
      %758 = vmatprep.mubr.bf16.mxu0 %v575
      %759 = vmatmul.mubr.bf16.gmra.mrb[0].mxu0 %v574
      %v760 = vpop.f32.mrb[0].mxu0
      %v761 = vadd.f32 0.0, %v760
      %v762 = vpop.f32.mrb[0].mxu0
      %v763 = vpop.f32.mrb[0].mxu0
      %v764 = vadd.f32 0.0, %v763
      %v765 = vpop.f32.mrb[0].mxu0
      %766 = vmatprep.mubr.bf16.mxu0 %v577
      %767 = vmatmul.mubr.bf16.gmra.mrb[0].mxu0 %v576
      %v768 = vpop.f32.mrb[0].mxu0
      %v769 = vadd.f32 0.0, %v768
      %v770 = vpop.f32.mrb[0].mxu0
      %v771 = vpop.f32.mrb[0].mxu0
      %v772 = vadd.f32 0.0, %v771
      %v773 = vpop.f32.mrb[0].mxu0
      %774 = vmatprep.mubr.bf16.mxu0 %v579
      %775 = vmatmul.mubr.bf16.gmra.mrb[0].mxu0 %v578
      %v776 = vpop.f32.mrb[0].mxu0
      %v777 = vadd.f32 0.0, %v776
      %v778 = vpop.f32.mrb[0].mxu0
      %v779 = vpop.f32.mrb[0].mxu0
      %v780 = vadd.f32 0.0, %v779
      %v781 = vpop.f32.mrb[0].mxu0
      %782 = vmatprep.mubr.bf16.mxu0 %v581
      %783 = vmatmul.mubr.bf16.gmra.mrb[0].mxu0 %v580
      %v784 = vpop.f32.mrb[0].mxu0
      %v785 = vadd.f32 0.0, %v784
      %v786 = vpop.f32.mrb[0].mxu0
      %v787 = vpop.f32.mrb[0].mxu0
      %v788 = vadd.f32 0.0, %v787
      %v789 = vpop.f32.mrb[0].mxu0
      %790 = vdwg.mxu0
      %v791 = vadd.f32 %v454, %v729
      %v792 = vadd.f32 %v455, %v732
      %v793 = vadd.f32 %v456, %v737
      %v794 = vadd.f32 %v457, %v740
      %v795 = vadd.f32 %v458, %v745
      %v796 = vadd.f32 %v459, %v748
      %v797 = vadd.f32 %v460, %v753
      %v798 = vadd.f32 %v461, %v756
      %v799 = vadd.f32 %v462, %v761
      %v800 = vadd.f32 %v463, %v764
      %v801 = vadd.f32 %v464, %v769
      %v802 = vadd.f32 %v465, %v772
      %v803 = vadd.f32 %v466, %v777
      %v804 = vadd.f32 %v467, %v780
      %v805 = vadd.f32 %v468, %v785
      %v806 = vadd.f32 %v469, %v788
      %807 = vst [vmem:[#allocation2] sm:$0xff] %v791
      %808 = vst [vmem:[#allocation2 + $0x8] sm:$0xff] %v792
      %809 = vst [vmem:[#allocation2 + $0x10] sm:$0xff] %v793
      %810 = vst [vmem:[#allocation2 + $0x18] sm:$0xff] %v794
      %811 = vst [vmem:[#allocation2 + $0x20] sm:$0xff] %v795
      %812 = vst [vmem:[#allocation2 + $0x28] sm:$0xff] %v796
      %813 = vst [vmem:[#allocation2 + $0x30] sm:$0xff] %v797
      %814 = vst [vmem:[#allocation2 + $0x38] sm:$0xff] %v798
      %815 = vst [vmem:[#allocation2 + $0x40] sm:$0xff] %v799
      %816 = vst [vmem:[#allocation2 + $0x48] sm:$0xff] %v800
      %817 = vst [vmem:[#allocation2 + $0x50] sm:$0xff] %v801
      %818 = vst [vmem:[#allocation2 + $0x58] sm:$0xff] %v802
      %819 = vst [vmem:[#allocation2 + $0x60] sm:$0xff] %v803
      %820 = vst [vmem:[#allocation2 + $0x68] sm:$0xff] %v804
      %821 = vst [vmem:[#allocation2 + $0x70] sm:$0xff] %v805
      %822 = vst [vmem:[#allocation2 + $0x78] sm:$0xff] %v806
      // Predicated region
      $region61: #{emma_sage_forward.4} parent=55 // pred_check
        %p823 = pneg %p434
      $region62: #{emma_sage_forward.4} parent=55 // pred_check_branch
        %825 = sbr.rel (%p823) target = $region64
      $region63: #{emma_sage_forward.4} parent=55 // pred_region
        %v826 = vld [vmem:[#allocation2] sm:$0xff]
        %v827 = vld [vmem:[#allocation2 + $0x8] sm:$0xff]
        %v828 = vld [vmem:[#allocation2 + $0x10] sm:$0xff]
        %v829 = vld [vmem:[#allocation2 + $0x18] sm:$0xff]
        %v830 = vld [vmem:[#allocation2 + $0x20] sm:$0xff]
        %v831 = vld [vmem:[#allocation2 + $0x28] sm:$0xff]
        %v832 = vld [vmem:[#allocation2 + $0x30] sm:$0xff]
        %v833 = vld [vmem:[#allocation2 + $0x38] sm:$0xff]
        %v834 = vld [vmem:[#allocation2 + $0x40] sm:$0xff]
        %v835 = vld [vmem:[#allocation2 + $0x48] sm:$0xff]
        %v836 = vld [vmem:[#allocation2 + $0x50] sm:$0xff]
        %v837 = vld [vmem:[#allocation2 + $0x58] sm:$0xff]
        %v838 = vld [vmem:[#allocation2 + $0x60] sm:$0xff]
        %v839 = vld [vmem:[#allocation2 + $0x68] sm:$0xff]
        %v840 = vld [vmem:[#allocation2 + $0x70] sm:$0xff]
        %v841 = vld [vmem:[#allocation2 + $0x78] sm:$0xff]
        %v842 = vld [vmem:[%s425] sm:$0xff]
        %v843 = vld [vmem:[%s425 + $0x8] sm:$0xff]
        %v844 = vld [vmem:[%s425 + $0x10] sm:$0xff]
        %v845 = vld [vmem:[%s425 + $0x18] sm:$0xff]
        %v846 = vld [vmem:[%s425 + $0x20] sm:$0xff]
        %v847 = vld [vmem:[%s425 + $0x28] sm:$0xff]
        %v848 = vld [vmem:[%s425 + $0x30] sm:$0xff]
        %v849 = vld [vmem:[%s425 + $0x38] sm:$0xff]
        %v850 = vld [vmem:[%s425 + $0x40] sm:$0xff]
        %v851 = vld [vmem:[%s425 + $0x48] sm:$0xff]
        %v852 = vld [vmem:[%s425 + $0x50] sm:$0xff]
        %v853 = vld [vmem:[%s425 + $0x58] sm:$0xff]
        %v854 = vld [vmem:[%s425 + $0x60] sm:$0xff]
        %v855 = vld [vmem:[%s425 + $0x68] sm:$0xff]
        %v856 = vld [vmem:[%s425 + $0x70] sm:$0xff]
        %v857 = vld [vmem:[%s425 + $0x78] sm:$0xff]
        %859 = vset.pattern.permute.xlu0 0
        %860 = vperm.xlu0 %859, %v842
        %v861 = vpop.permute.xlu0 %860
        %864 = vset.pattern.permute.xlu0 0
        %865 = vperm.xlu0 %864, %v843
        %v866 = vpop.permute.xlu0 %865
        %869 = vset.pattern.permute.xlu0 0
        %870 = vperm.xlu0 %869, %v844
        %v871 = vpop.permute.xlu0 %870
        %874 = vset.pattern.permute.xlu0 0
        %875 = vperm.xlu0 %874, %v845
        %v876 = vpop.permute.xlu0 %875
        %879 = vset.pattern.permute.xlu0 0
        %880 = vperm.xlu0 %879, %v846
        %v881 = vpop.permute.xlu0 %880
        %884 = vset.pattern.permute.xlu0 0
        %885 = vperm.xlu0 %884, %v847
        %v886 = vpop.permute.xlu0 %885
        %889 = vset.pattern.permute.xlu0 0
        %890 = vperm.xlu0 %889, %v848
        %v891 = vpop.permute.xlu0 %890
        %894 = vset.pattern.permute.xlu0 0
        %895 = vperm.xlu0 %894, %v849
        %v896 = vpop.permute.xlu0 %895
        %899 = vset.pattern.permute.xlu0 0
        %900 = vperm.xlu0 %899, %v850
        %v901 = vpop.permute.xlu0 %900
        %904 = vset.pattern.permute.xlu0 0
        %905 = vperm.xlu0 %904, %v851
        %v906 = vpop.permute.xlu0 %905
        %909 = vset.pattern.permute.xlu0 0
        %910 = vperm.xlu0 %909, %v852
        %v911 = vpop.permute.xlu0 %910
        %914 = vset.pattern.permute.xlu0 0
        %915 = vperm.xlu0 %914, %v853
        %v916 = vpop.permute.xlu0 %915
        %919 = vset.pattern.permute.xlu0 0
        %920 = vperm.xlu0 %919, %v854
        %v921 = vpop.permute.xlu0 %920
        %924 = vset.pattern.permute.xlu0 0
        %925 = vperm.xlu0 %924, %v855
        %v926 = vpop.permute.xlu0 %925
        %929 = vset.pattern.permute.xlu0 0
        %930 = vperm.xlu0 %929, %v856
        %v931 = vpop.permute.xlu0 %930
        %934 = vset.pattern.permute.xlu0 0
        %935 = vperm.xlu0 %934, %v857
        %v936 = vpop.permute.xlu0 %935
        %v938 = vmul.f32 %v826, %v861
        %v939 = vmul.f32 %v827, %v866
        %v940 = vmul.f32 %v828, %v871
        %v941 = vmul.f32 %v829, %v876
        %v942 = vmul.f32 %v830, %v881
        %v943 = vmul.f32 %v831, %v886
        %v944 = vmul.f32 %v832, %v891
        %v945 = vmul.f32 %v833, %v896
        %v946 = vmul.f32 %v834, %v901
        %v947 = vmul.f32 %v835, %v906
        %v948 = vmul.f32 %v836, %v911
        %v949 = vmul.f32 %v837, %v916
        %v950 = vmul.f32 %v838, %v921
        %v951 = vmul.f32 %v839, %v926
        %v952 = vmul.f32 %v840, %v931
        %v953 = vmul.f32 %v841, %v936
        %v954 = vpack.c.bf16 %v939, %v938
        %v955 = vpack.c.bf16 %v941, %v940
        %v956 = vpack.c.bf16 %v943, %v942
        %v957 = vpack.c.bf16 %v945, %v944
        %v958 = vpack.c.bf16 %v947, %v946
        %v959 = vpack.c.bf16 %v949, %v948
        %v960 = vpack.c.bf16 %v951, %v950
        %v961 = vpack.c.bf16 %v953, %v952
        %v962 = vld [vmem:[%s4] sm:$0xf]
        %v963 = vld [vmem:[%s4 + $0x4] sm:$0xf]
        %v964 = vld [vmem:[%s4 + $0x8] sm:$0xf]
        %v965 = vld [vmem:[%s4 + $0xc] sm:$0xf]
        %v966 = vld [vmem:[%s4 + $0x10] sm:$0xf]
        %v967 = vld [vmem:[%s4 + $0x14] sm:$0xf]
        %v968 = vld [vmem:[%s4 + $0x18] sm:$0xf]
        %v969 = vld [vmem:[%s4 + $0x1c] sm:$0xf]
        %v970 = vld [vmem:[%s4 + $0x20] sm:$0xf]
        %v971 = vld [vmem:[%s4 + $0x24] sm:$0xf]
        %v972 = vld [vmem:[%s4 + $0x28] sm:$0xf]
        %v973 = vld [vmem:[%s4 + $0x2c] sm:$0xf]
        %v974 = vld [vmem:[%s4 + $0x30] sm:$0xf]
        %v975 = vld [vmem:[%s4 + $0x34] sm:$0xf]
        %v976 = vld [vmem:[%s4 + $0x38] sm:$0xf]
        %v977 = vld [vmem:[%s4 + $0x3c] sm:$0xf]
        %v978 = vld [vmem:[%s419] sm:$0xf]
        %v979 = vld [vmem:[%s419 + $0x4] sm:$0xf]
        %v980 = vld [vmem:[%s419 + $0x8] sm:$0xf]
        %v981 = vld [vmem:[%s419 + $0xc] sm:$0xf]
        %v982 = vld [vmem:[%s419 + $0x10] sm:$0xf]
        %v983 = vld [vmem:[%s419 + $0x14] sm:$0xf]
        %v984 = vld [vmem:[%s419 + $0x18] sm:$0xf]
        %v985 = vld [vmem:[%s419 + $0x1c] sm:$0xf]
        %v986 = vld [vmem:[%s419 + $0x20] sm:$0xf]
        %v987 = vld [vmem:[%s419 + $0x24] sm:$0xf]
        %v988 = vld [vmem:[%s419 + $0x28] sm:$0xf]
        %v989 = vld [vmem:[%s419 + $0x2c] sm:$0xf]
        %v990 = vld [vmem:[%s419 + $0x30] sm:$0xf]
        %v991 = vld [vmem:[%s419 + $0x34] sm:$0xf]
        %v992 = vld [vmem:[%s419 + $0x38] sm:$0xf]
        %v993 = vld [vmem:[%s419 + $0x3c] sm:$0xf]
        %v994 = vld [vmem:[%s5] sm:$0xf]
        %v995 = vld [vmem:[%s5 + $0x4] sm:$0xf]
        %v996 = vld [vmem:[%s5 + $0x8] sm:$0xf]
        %v997 = vld [vmem:[%s5 + $0xc] sm:$0xf]
        %v998 = vld [vmem:[%s5 + $0x10] sm:$0xf]
        %v999 = vld [vmem:[%s5 + $0x14] sm:$0xf]
        %v1000 = vld [vmem:[%s5 + $0x18] sm:$0xf]
        %v1001 = vld [vmem:[%s5 + $0x1c] sm:$0xf]
        %v1002 = vld [vmem:[%s5 + $0x20] sm:$0xf]
        %v1003 = vld [vmem:[%s5 + $0x24] sm:$0xf]
        %v1004 = vld [vmem:[%s5 + $0x28] sm:$0xf]
        %v1005 = vld [vmem:[%s5 + $0x2c] sm:$0xf]
        %v1006 = vld [vmem:[%s5 + $0x30] sm:$0xf]
        %v1007 = vld [vmem:[%s5 + $0x34] sm:$0xf]
        %v1008 = vld [vmem:[%s5 + $0x38] sm:$0xf]
        %v1009 = vld [vmem:[%s5 + $0x3c] sm:$0xf]
        %v1026 = vunpack.c.l.b16 %v978
        %v1027 = vunpack.c.l.b16 %v979
        %v1028 = vunpack.c.l.b16 %v980
        %v1029 = vunpack.c.l.b16 %v981
        %v1030 = vunpack.c.l.b16 %v982
        %v1031 = vunpack.c.l.b16 %v983
        %v1032 = vunpack.c.l.b16 %v984
        %v1033 = vunpack.c.l.b16 %v985
        %v1034 = vunpack.c.l.b16 %v986
        %v1035 = vunpack.c.l.b16 %v987
        %v1036 = vunpack.c.l.b16 %v988
        %v1037 = vunpack.c.l.b16 %v989
        %v1038 = vunpack.c.l.b16 %v990
        %v1039 = vunpack.c.l.b16 %v991
        %v1040 = vunpack.c.l.b16 %v992
        %v1041 = vunpack.c.l.b16 %v993
        %v1042 = vpack.c.b16 %v1027, %v1026
        %v1043 = vpack.c.b16 %v1029, %v1028
        %v1044 = vpack.c.b16 %v1031, %v1030
        %v1045 = vpack.c.b16 %v1033, %v1032
        %v1046 = vpack.c.b16 %v1035, %v1034
        %v1047 = vpack.c.b16 %v1037, %v1036
        %v1048 = vpack.c.b16 %v1039, %v1038
        %v1049 = vpack.c.b16 %v1041, %v1040
        %v1074 = vunpack.c.l.b16 %v994
        %v1075 = vunpack.c.l.b16 %v995
        %v1076 = vunpack.c.l.b16 %v996
        %v1077 = vunpack.c.l.b16 %v997
        %v1078 = vunpack.c.l.b16 %v998
        %v1079 = vunpack.c.l.b16 %v999
        %v1080 = vunpack.c.l.b16 %v1000
        %v1081 = vunpack.c.l.b16 %v1001
        %v1082 = vunpack.c.l.b16 %v1002
        %v1083 = vunpack.c.l.b16 %v1003
        %v1084 = vunpack.c.l.b16 %v1004
        %v1085 = vunpack.c.l.b16 %v1005
        %v1086 = vunpack.c.l.b16 %v1006
        %v1087 = vunpack.c.l.b16 %v1007
        %v1088 = vunpack.c.l.b16 %v1008
        %v1089 = vunpack.c.l.b16 %v1009
        %v1090 = vpack.c.b16 %v1075, %v1074
        %v1091 = vpack.c.b16 %v1077, %v1076
        %v1092 = vpack.c.b16 %v1079, %v1078
        %v1093 = vpack.c.b16 %v1081, %v1080
        %v1094 = vpack.c.b16 %v1083, %v1082
        %v1095 = vpack.c.b16 %v1085, %v1084
        %v1096 = vpack.c.b16 %v1087, %v1086
        %v1097 = vpack.c.b16 %v1089, %v1088
        %1106 = vmatprep.subr.bf16.mxu0 0
        %1107 = vmatpush1.bf16.msra.mxu0 %v1090
        %1108 = vmatprep.subr.bf16.mxu0 0
        %1109 = vmatpush1.bf16.msra.mxu0 %v1091
        %1110 = vmatprep.subr.bf16.mxu0 0
        %1111 = vmatpush1.bf16.msra.mxu0 %v1092
        %1112 = vmatprep.subr.bf16.mxu0 0
        %1113 = vmatpush1.bf16.msra.mxu0 %v1093
        %1114 = vmatprep.subr.bf16.mxu0 0
        %1115 = vmatpush1.bf16.msra.mxu0 %v1094
        %1116 = vmatprep.subr.bf16.mxu0 0
        %1117 = vmatpush1.bf16.msra.mxu0 %v1095
        %1118 = vmatprep.subr.bf16.mxu0 0
        %1119 = vmatpush1.bf16.msra.mxu0 %v1096
        %1120 = vmatprep.subr.bf16.mxu0 0
        %1121 = vmatpush1.bf16.msra.mxu0 %v1097
        %1122 = vmatprep.subr.bf16.mxu0 0
        %1123 = vmatpush1.bf16.msra.mxu0 0
        %1124 = vmatprep.subr.bf16.mxu0 0
        %1125 = vmatpush1.bf16.msra.mxu0 0
        %1126 = vmatprep.subr.bf16.mxu0 0
        %1127 = vmatpush1.bf16.msra.mxu0 0
        %1128 = vmatprep.subr.bf16.mxu0 0
        %1129 = vmatpush1.bf16.msra.mxu0 0
        %1130 = vmatprep.subr.bf16.mxu0 0
        %1131 = vmatpush1.bf16.msra.mxu0 0
        %1132 = vmatprep.subr.bf16.mxu0 0
        %1133 = vmatpush1.bf16.msra.mxu0 0
        %1134 = vmatprep.subr.bf16.mxu0 0
        %1135 = vmatpush1.bf16.msra.mxu0 0
        %1136 = vmatprep.subr.bf16.mxu0 0
        %1137 = vmatpush1.bf16.msra.mxu0 0
        %1138 = vmatprep.mubr.bf16.mxu0 0
        %1139 = vmatmul.mubr.bf16.gmra.mrb[0].mxu0 %v1042
        %v1140 = vpop.f32.mrb[0].mxu0
        %v1141 = vadd.f32 0.0, %v1140
        %v1142 = vpop.f32.mrb[0].mxu0
        %v1143 = vpop.f32.mrb[0].mxu0
        %v1144 = vadd.f32 0.0, %v1143
        %v1145 = vpop.f32.mrb[0].mxu0
        %1146 = vmatprep.mubr.bf16.mxu0 0
        %1147 = vmatmul.mubr.bf16.gmra.mrb[0].mxu0 %v1043
        %v1148 = vpop.f32.mrb[0].mxu0
        %v1149 = vadd.f32 0.0, %v1148
        %v1150 = vpop.f32.mrb[0].mxu0
        %v1151 = vpop.f32.mrb[0].mxu0
        %v1152 = vadd.f32 0.0, %v1151
        %v1153 = vpop.f32.mrb[0].mxu0
        %1154 = vmatprep.mubr.bf16.mxu0 0
        %1155 = vmatmul.mubr.bf16.gmra.mrb[0].mxu0 %v1044
        %v1156 = vpop.f32.mrb[0].mxu0
        %v1157 = vadd.f32 0.0, %v1156
        %v1158 = vpop.f32.mrb[0].mxu0
        %v1159 = vpop.f32.mrb[0].mxu0
        %v1160 = vadd.f32 0.0, %v1159
        %v1161 = vpop.f32.mrb[0].mxu0
        %1162 = vmatprep.mubr.bf16.mxu0 0
        %1163 = vmatmul.mubr.bf16.gmra.mrb[0].mxu0 %v1045
        %v1164 = vpop.f32.mrb[0].mxu0
        %v1165 = vadd.f32 0.0, %v1164
        %v1166 = vpop.f32.mrb[0].mxu0
        %v1167 = vpop.f32.mrb[0].mxu0
        %v1168 = vadd.f32 0.0, %v1167
        %v1169 = vpop.f32.mrb[0].mxu0
        %1170 = vmatprep.mubr.bf16.mxu0 0
        %1171 = vmatmul.mubr.bf16.gmra.mrb[0].mxu0 %v1046
        %v1172 = vpop.f32.mrb[0].mxu0
        %v1173 = vadd.f32 0.0, %v1172
        %v1174 = vpop.f32.mrb[0].mxu0
        %v1175 = vpop.f32.mrb[0].mxu0
        %v1176 = vadd.f32 0.0, %v1175
        %v1177 = vpop.f32.mrb[0].mxu0
        %1178 = vmatprep.mubr.bf16.mxu0 0
        %1179 = vmatmul.mubr.bf16.gmra.mrb[0].mxu0 %v1047
        %v1180 = vpop.f32.mrb[0].mxu0
        %v1181 = vadd.f32 0.0, %v1180
        %v1182 = vpop.f32.mrb[0].mxu0
        %v1183 = vpop.f32.mrb[0].mxu0
        %v1184 = vadd.f32 0.0, %v1183
        %v1185 = vpop.f32.mrb[0].mxu0
        %1186 = vmatprep.mubr.bf16.mxu0 0
        %1187 = vmatmul.mubr.bf16.gmra.mrb[0].mxu0 %v1048
        %v1188 = vpop.f32.mrb[0].mxu0
        %v1189 = vadd.f32 0.0, %v1188
        %v1190 = vpop.f32.mrb[0].mxu0
        %v1191 = vpop.f32.mrb[0].mxu0
        %v1192 = vadd.f32 0.0, %v1191
        %v1193 = vpop.f32.mrb[0].mxu0
        %1194 = vmatprep.mubr.bf16.mxu0 0
        %1195 = vmatmul.mubr.bf16.gmra.mrb[0].mxu0 %v1049
        %v1196 = vpop.f32.mrb[0].mxu0
        %v1197 = vadd.f32 0.0, %v1196
        %v1198 = vpop.f32.mrb[0].mxu0
        %v1199 = vpop.f32.mrb[0].mxu0
        %v1200 = vadd.f32 0.0, %v1199
        %v1201 = vpop.f32.mrb[0].mxu0
        %1202 = vdwg.mxu0
        %v1219 = vunpack.c.l.b16 %v962
        %v1220 = vunpack.c.l.b16 %v963
        %v1221 = vunpack.c.l.b16 %v964
        %v1222 = vunpack.c.l.b16 %v965
        %v1223 = vunpack.c.l.b16 %v966
        %v1224 = vunpack.c.l.b16 %v967
        %v1225 = vunpack.c.l.b16 %v968
        %v1226 = vunpack.c.l.b16 %v969
        %v1227 = vunpack.c.l.b16 %v970
        %v1228 = vunpack.c.l.b16 %v971
        %v1229 = vunpack.c.l.b16 %v972
        %v1230 = vunpack.c.l.b16 %v973
        %v1231 = vunpack.c.l.b16 %v974
        %v1232 = vunpack.c.l.b16 %v975
        %v1233 = vunpack.c.l.b16 %v976
        %v1234 = vunpack.c.l.b16 %v977
        %v1235 = vpack.c.b16 %v1220, %v1219
        %v1236 = vpack.c.b16 %v1222, %v1221
        %v1237 = vpack.c.b16 %v1224, %v1223
        %v1238 = vpack.c.b16 %v1226, %v1225
        %v1239 = vpack.c.b16 %v1228, %v1227
        %v1240 = vpack.c.b16 %v1230, %v1229
        %v1241 = vpack.c.b16 %v1232, %v1231
        %v1242 = vpack.c.b16 %v1234, %v1233
        %1251 = vmatprep.subr.bf16.mxu0 0
        %1252 = vmatpush1.bf16.msra.mxu0 %v1235
        %1253 = vmatprep.subr.bf16.mxu0 0
        %1254 = vmatpush1.bf16.msra.mxu0 %v1236
        %1255 = vmatprep.subr.bf16.mxu0 0
        %1256 = vmatpush1.bf16.msra.mxu0 %v1237
        %1257 = vmatprep.subr.bf16.mxu0 0
        %1258 = vmatpush1.bf16.msra.mxu0 %v1238
        %1259 = vmatprep.subr.bf16.mxu0 0
        %1260 = vmatpush1.bf16.msra.mxu0 %v1239
        %1261 = vmatprep.subr.bf16.mxu0 0
        %1262 = vmatpush1.bf16.msra.mxu0 %v1240
        %1263 = vmatprep.subr.bf16.mxu0 0
        %1264 = vmatpush1.bf16.msra.mxu0 %v1241
        %1265 = vmatprep.subr.bf16.mxu0 0
        %1266 = vmatpush1.bf16.msra.mxu0 %v1242
        %1267 = vmatprep.subr.bf16.mxu0 0
        %1268 = vmatpush1.bf16.msra.mxu0 0
        %1269 = vmatprep.subr.bf16.mxu0 0
        %1270 = vmatpush1.bf16.msra.mxu0 0
        %1271 = vmatprep.subr.bf16.mxu0 0
        %1272 = vmatpush1.bf16.msra.mxu0 0
        %1273 = vmatprep.subr.bf16.mxu0 0
        %1274 = vmatpush1.bf16.msra.mxu0 0
        %1275 = vmatprep.subr.bf16.mxu0 0
        %1276 = vmatpush1.bf16.msra.mxu0 0
        %1277 = vmatprep.subr.bf16.mxu0 0
        %1278 = vmatpush1.bf16.msra.mxu0 0
        %1279 = vmatprep.subr.bf16.mxu0 0
        %1280 = vmatpush1.bf16.msra.mxu0 0
        %1281 = vmatprep.subr.bf16.mxu0 0
        %1282 = vmatpush1.bf16.msra.mxu0 0
        %1283 = vmatprep.mubr.bf16.mxu0 0
        %1284 = vmatmul.mubr.bf16.gmra.mrb[0].mxu0 %v954
        %v1285 = vpop.f32.mrb[0].mxu0
        %v1286 = vadd.f32 %v1141, %v1285
        %v1287 = vpop.f32.mrb[0].mxu0
        %v1288 = vpop.f32.mrb[0].mxu0
        %v1289 = vadd.f32 %v1144, %v1288
        %v1290 = vpop.f32.mrb[0].mxu0
        %1291 = vmatprep.mubr.bf16.mxu0 0
        %1292 = vmatmul.mubr.bf16.gmra.mrb[0].mxu0 %v955
        %v1293 = vpop.f32.mrb[0].mxu0
        %v1294 = vadd.f32 %v1149, %v1293
        %v1295 = vpop.f32.mrb[0].mxu0
        %v1296 = vpop.f32.mrb[0].mxu0
        %v1297 = vadd.f32 %v1152, %v1296
        %v1298 = vpop.f32.mrb[0].mxu0
        %1299 = vmatprep.mubr.bf16.mxu0 0
        %1300 = vmatmul.mubr.bf16.gmra.mrb[0].mxu0 %v956
        %v1301 = vpop.f32.mrb[0].mxu0
        %v1302 = vadd.f32 %v1157, %v1301
        %v1303 = vpop.f32.mrb[0].mxu0
        %v1304 = vpop.f32.mrb[0].mxu0
        %v1305 = vadd.f32 %v1160, %v1304
        %v1306 = vpop.f32.mrb[0].mxu0
        %1307 = vmatprep.mubr.bf16.mxu0 0
        %1308 = vmatmul.mubr.bf16.gmra.mrb[0].mxu0 %v957
        %v1309 = vpop.f32.mrb[0].mxu0
        %v1310 = vadd.f32 %v1165, %v1309
        %v1311 = vpop.f32.mrb[0].mxu0
        %v1312 = vpop.f32.mrb[0].mxu0
        %v1313 = vadd.f32 %v1168, %v1312
        %v1314 = vpop.f32.mrb[0].mxu0
        %1315 = vmatprep.mubr.bf16.mxu0 0
        %1316 = vmatmul.mubr.bf16.gmra.mrb[0].mxu0 %v958
        %v1317 = vpop.f32.mrb[0].mxu0
        %v1318 = vadd.f32 %v1173, %v1317
        %v1319 = vpop.f32.mrb[0].mxu0
        %v1320 = vpop.f32.mrb[0].mxu0
        %v1321 = vadd.f32 %v1176, %v1320
        %v1322 = vpop.f32.mrb[0].mxu0
        %1323 = vmatprep.mubr.bf16.mxu0 0
        %1324 = vmatmul.mubr.bf16.gmra.mrb[0].mxu0 %v959
        %v1325 = vpop.f32.mrb[0].mxu0
        %v1326 = vadd.f32 %v1181, %v1325
        %v1327 = vpop.f32.mrb[0].mxu0
        %v1328 = vpop.f32.mrb[0].mxu0
        %v1329 = vadd.f32 %v1184, %v1328
        %v1330 = vpop.f32.mrb[0].mxu0
        %1331 = vmatprep.mubr.bf16.mxu0 0
        %1332 = vmatmul.mubr.bf16.gmra.mrb[0].mxu0 %v960
        %v1333 = vpop.f32.mrb[0].mxu0
        %v1334 = vadd.f32 %v1189, %v1333
        %v1335 = vpop.f32.mrb[0].mxu0
        %v1336 = vpop.f32.mrb[0].mxu0
        %v1337 = vadd.f32 %v1192, %v1336
        %v1338 = vpop.f32.mrb[0].mxu0
        %1339 = vmatprep.mubr.bf16.mxu0 0
        %1340 = vmatmul.mubr.bf16.gmra.mrb[0].mxu0 %v961
        %v1341 = vpop.f32.mrb[0].mxu0
        %v1342 = vadd.f32 %v1197, %v1341
        %v1343 = vpop.f32.mrb[0].mxu0
        %v1344 = vpop.f32.mrb[0].mxu0
        %v1345 = vadd.f32 %v1200, %v1344
        %v1346 = vpop.f32.mrb[0].mxu0
        %1347 = vdwg.mxu0
        %v1348 = vld [vmem:[%s6] sm:$0x1]
        %v1350 = vlaneseq
        %v1351 = vshrl.u32 %v1350, 7
        %v1352 = vsub.s32 0, %v1351
        %v1353 = vrot.slane %v1348, %v1352
        %v1355 = vadd.f32 %v1286, %v1353
        %v1356 = vadd.f32 %v1289, %v1353
        %v1357 = vadd.f32 %v1294, %v1353
        %v1358 = vadd.f32 %v1297, %v1353
        %v1359 = vadd.f32 %v1302, %v1353
        %v1360 = vadd.f32 %v1305, %v1353
        %v1361 = vadd.f32 %v1310, %v1353
        %v1362 = vadd.f32 %v1313, %v1353
        %v1363 = vadd.f32 %v1318, %v1353
        %v1364 = vadd.f32 %v1321, %v1353
        %v1365 = vadd.f32 %v1326, %v1353
        %v1366 = vadd.f32 %v1329, %v1353
        %v1367 = vadd.f32 %v1334, %v1353
        %v1368 = vadd.f32 %v1337, %v1353
        %v1369 = vadd.f32 %v1342, %v1353
        %v1370 = vadd.f32 %v1345, %v1353
        %1371 = vadd.xlane.f32.xlu0 %v1355
        %v1372 = vpop.xlane.xlu0 %1371
        %1373 = vadd.xlane.f32.xlu0 %v1356
        %v1374 = vpop.xlane.xlu0 %1373
        %1375 = vadd.xlane.f32.xlu0 %v1357
        %v1376 = vpop.xlane.xlu0 %1375
        %1377 = vadd.xlane.f32.xlu0 %v1358
        %v1378 = vpop.xlane.xlu0 %1377
        %1379 = vadd.xlane.f32.xlu0 %v1359
        %v1380 = vpop.xlane.xlu0 %1379
        %1381 = vadd.xlane.f32.xlu0 %v1360
        %v1382 = vpop.xlane.xlu0 %1381
        %1383 = vadd.xlane.f32.xlu0 %v1361
        %v1384 = vpop.xlane.xlu0 %1383
        %1385 = vadd.xlane.f32.xlu0 %v1362
        %v1386 = vpop.xlane.xlu0 %1385
        %1387 = vadd.xlane.f32.xlu0 %v1363
        %v1388 = vpop.xlane.xlu0 %1387
        %1389 = vadd.xlane.f32.xlu0 %v1364
        %v1390 = vpop.xlane.xlu0 %1389
        %1391 = vadd.xlane.f32.xlu0 %v1365
        %v1392 = vpop.xlane.xlu0 %1391
        %1393 = vadd.xlane.f32.xlu0 %v1366
        %v1394 = vpop.xlane.xlu0 %1393
        %1395 = vadd.xlane.f32.xlu0 %v1367
        %v1396 = vpop.xlane.xlu0 %1395
        %1397 = vadd.xlane.f32.xlu0 %v1368
        %v1398 = vpop.xlane.xlu0 %1397
        %1399 = vadd.xlane.f32.xlu0 %v1369
        %v1400 = vpop.xlane.xlu0 %1399
        %1401 = vadd.xlane.f32.xlu0 %v1370
        %v1402 = vpop.xlane.xlu0 %1401
        %v1403 = vrcp.pop 128.0
        %v1404 = vmul.f32 %v1372, %v1403
        %v1405 = vmul.f32 %v1374, %v1403
        %v1406 = vmul.f32 %v1376, %v1403
        %v1407 = vmul.f32 %v1378, %v1403
        %v1408 = vmul.f32 %v1380, %v1403
        %v1409 = vmul.f32 %v1382, %v1403
        %v1410 = vmul.f32 %v1384, %v1403
        %v1411 = vmul.f32 %v1386, %v1403
        %v1412 = vmul.f32 %v1388, %v1403
        %v1413 = vmul.f32 %v1390, %v1403
        %v1414 = vmul.f32 %v1392, %v1403
        %v1415 = vmul.f32 %v1394, %v1403
        %v1416 = vmul.f32 %v1396, %v1403
        %v1417 = vmul.f32 %v1398, %v1403
        %v1418 = vmul.f32 %v1400, %v1403
        %v1419 = vmul.f32 %v1402, %v1403
        %v1420 = vsub.f32 %v1355, %v1404
        %v1421 = vsub.f32 %v1356, %v1405
        %v1422 = vsub.f32 %v1357, %v1406
        %v1423 = vsub.f32 %v1358, %v1407
        %v1424 = vsub.f32 %v1359, %v1408
        %v1425 = vsub.f32 %v1360, %v1409
        %v1426 = vsub.f32 %v1361, %v1410
        %v1427 = vsub.f32 %v1362, %v1411
        %v1428 = vsub.f32 %v1363, %v1412
        %v1429 = vsub.f32 %v1364, %v1413
        %v1430 = vsub.f32 %v1365, %v1414
        %v1431 = vsub.f32 %v1366, %v1415
        %v1432 = vsub.f32 %v1367, %v1416
        %v1433 = vsub.f32 %v1368, %v1417
        %v1434 = vsub.f32 %v1369, %v1418
        %v1435 = vsub.f32 %v1370, %v1419
        %v1436 = vmul.f32 %v1420, %v1420
        %v1437 = vmul.f32 %v1421, %v1421
        %v1438 = vmul.f32 %v1422, %v1422
        %v1439 = vmul.f32 %v1423, %v1423
        %v1440 = vmul.f32 %v1424, %v1424
        %v1441 = vmul.f32 %v1425, %v1425
        %v1442 = vmul.f32 %v1426, %v1426
        %v1443 = vmul.f32 %v1427, %v1427
        %v1444 = vmul.f32 %v1428, %v1428
        %v1445 = vmul.f32 %v1429, %v1429
        %v1446 = vmul.f32 %v1430, %v1430
        %v1447 = vmul.f32 %v1431, %v1431
        %v1448 = vmul.f32 %v1432, %v1432
        %v1449 = vmul.f32 %v1433, %v1433
        %v1450 = vmul.f32 %v1434, %v1434
        %v1451 = vmul.f32 %v1435, %v1435
        %1452 = vadd.xlane.f32.xlu0 %v1436
        %v1453 = vpop.xlane.xlu0 %1452
        %1454 = vadd.xlane.f32.xlu0 %v1437
        %v1455 = vpop.xlane.xlu0 %1454
        %1456 = vadd.xlane.f32.xlu0 %v1438
        %v1457 = vpop.xlane.xlu0 %1456
        %1458 = vadd.xlane.f32.xlu0 %v1439
        %v1459 = vpop.xlane.xlu0 %1458
        %1460 = vadd.xlane.f32.xlu0 %v1440
        %v1461 = vpop.xlane.xlu0 %1460
        %1462 = vadd.xlane.f32.xlu0 %v1441
        %v1463 = vpop.xlane.xlu0 %1462
        %1464 = vadd.xlane.f32.xlu0 %v1442
        %v1465 = vpop.xlane.xlu0 %1464
        %1466 = vadd.xlane.f32.xlu0 %v1443
        %v1467 = vpop.xlane.xlu0 %1466
        %1468 = vadd.xlane.f32.xlu0 %v1444
        %v1469 = vpop.xlane.xlu0 %1468
        %1470 = vadd.xlane.f32.xlu0 %v1445
        %v1471 = vpop.xlane.xlu0 %1470
        %1472 = vadd.xlane.f32.xlu0 %v1446
        %v1473 = vpop.xlane.xlu0 %1472
        %1474 = vadd.xlane.f32.xlu0 %v1447
        %v1475 = vpop.xlane.xlu0 %1474
        %1476 = vadd.xlane.f32.xlu0 %v1448
        %v1477 = vpop.xlane.xlu0 %1476
        %1478 = vadd.xlane.f32.xlu0 %v1449
        %v1479 = vpop.xlane.xlu0 %1478
        %1480 = vadd.xlane.f32.xlu0 %v1450
        %v1481 = vpop.xlane.xlu0 %1480
        %1482 = vadd.xlane.f32.xlu0 %v1451
        %v1483 = vpop.xlane.xlu0 %1482
        %v1484 = vmul.f32 %v1453, %v1403
        %v1485 = vmul.f32 %v1455, %v1403
        %v1486 = vmul.f32 %v1457, %v1403
        %v1487 = vmul.f32 %v1459, %v1403
        %v1488 = vmul.f32 %v1461, %v1403
        %v1489 = vmul.f32 %v1463, %v1403
        %v1490 = vmul.f32 %v1465, %v1403
        %v1491 = vmul.f32 %v1467, %v1403
        %v1492 = vmul.f32 %v1469, %v1403
        %v1493 = vmul.f32 %v1471, %v1403
        %v1494 = vmul.f32 %v1473, %v1403
        %v1495 = vmul.f32 %v1475, %v1403
        %v1496 = vmul.f32 %v1477, %v1403
        %v1497 = vmul.f32 %v1479, %v1403
        %v1498 = vmul.f32 %v1481, %v1403
        %v1499 = vmul.f32 %v1483, %v1403
        %v1500 = vadd.f32 %v1484, 1e-05
        %v1501 = vadd.f32 %v1485, 1e-05
        %v1502 = vadd.f32 %v1486, 1e-05
        %v1503 = vadd.f32 %v1487, 1e-05
        %v1504 = vadd.f32 %v1488, 1e-05
        %v1505 = vadd.f32 %v1489, 1e-05
        %v1506 = vadd.f32 %v1490, 1e-05
        %v1507 = vadd.f32 %v1491, 1e-05
        %v1508 = vadd.f32 %v1492, 1e-05
        %v1509 = vadd.f32 %v1493, 1e-05
        %v1510 = vadd.f32 %v1494, 1e-05
        %v1511 = vadd.f32 %v1495, 1e-05
        %v1512 = vadd.f32 %v1496, 1e-05
        %v1513 = vadd.f32 %v1497, 1e-05
        %v1514 = vadd.f32 %v1498, 1e-05
        %v1515 = vadd.f32 %v1499, 1e-05
        %v1516 = vrsqrt.pop %v1500
        %v1517 = vrsqrt.pop %v1501
        %v1518 = vrsqrt.pop %v1502
        %v1519 = vrsqrt.pop %v1503
        %v1520 = vrsqrt.pop %v1504
        %v1521 = vrsqrt.pop %v1505
        %v1522 = vrsqrt.pop %v1506
        %v1523 = vrsqrt.pop %v1507
        %v1524 = vrsqrt.pop %v1508
        %v1525 = vrsqrt.pop %v1509
        %v1526 = vrsqrt.pop %v1510
        %v1527 = vrsqrt.pop %v1511
        %v1528 = vrsqrt.pop %v1512
        %v1529 = vrsqrt.pop %v1513
        %v1530 = vrsqrt.pop %v1514
        %v1531 = vrsqrt.pop %v1515
        %v1532 = vmul.f32 %v1420, %v1516
        %v1533 = vmul.f32 %v1421, %v1517
        %v1534 = vmul.f32 %v1422, %v1518
        %v1535 = vmul.f32 %v1423, %v1519
        %v1536 = vmul.f32 %v1424, %v1520
        %v1537 = vmul.f32 %v1425, %v1521
        %v1538 = vmul.f32 %v1426, %v1522
        %v1539 = vmul.f32 %v1427, %v1523
        %v1540 = vmul.f32 %v1428, %v1524
        %v1541 = vmul.f32 %v1429, %v1525
        %v1542 = vmul.f32 %v1430, %v1526
        %v1543 = vmul.f32 %v1431, %v1527
        %v1544 = vmul.f32 %v1432, %v1528
        %v1545 = vmul.f32 %v1433, %v1529
        %v1546 = vmul.f32 %v1434, %v1530
        %v1547 = vmul.f32 %v1435, %v1531
        %v1548 = vld [vmem:[%s7] sm:$0x1]
        %v1550 = vlaneseq
        %v1551 = vshrl.u32 %v1550, 7
        %v1552 = vsub.s32 0, %v1551
        %v1553 = vrot.slane %v1548, %v1552
        %v1555 = vmul.f32 %v1532, %v1553
        %v1556 = vmul.f32 %v1533, %v1553
        %v1557 = vmul.f32 %v1534, %v1553
        %v1558 = vmul.f32 %v1535, %v1553
        %v1559 = vmul.f32 %v1536, %v1553
        %v1560 = vmul.f32 %v1537, %v1553
        %v1561 = vmul.f32 %v1538, %v1553
        %v1562 = vmul.f32 %v1539, %v1553
        %v1563 = vmul.f32 %v1540, %v1553
        %v1564 = vmul.f32 %v1541, %v1553
        %v1565 = vmul.f32 %v1542, %v1553
        %v1566 = vmul.f32 %v1543, %v1553
        %v1567 = vmul.f32 %v1544, %v1553
        %v1568 = vmul.f32 %v1545, %v1553
        %v1569 = vmul.f32 %v1546, %v1553
        %v1570 = vmul.f32 %v1547, %v1553
        %v1571 = vld [vmem:[%s8] sm:$0x1]
        %v1573 = vlaneseq
        %v1574 = vshrl.u32 %v1573, 7
        %v1575 = vsub.s32 0, %v1574
        %v1576 = vrot.slane %v1571, %v1575
        %v1578 = vadd.f32 %v1555, %v1576
        %v1579 = vadd.f32 %v1556, %v1576
        %v1580 = vadd.f32 %v1557, %v1576
        %v1581 = vadd.f32 %v1558, %v1576
        %v1582 = vadd.f32 %v1559, %v1576
        %v1583 = vadd.f32 %v1560, %v1576
        %v1584 = vadd.f32 %v1561, %v1576
        %v1585 = vadd.f32 %v1562, %v1576
        %v1586 = vadd.f32 %v1563, %v1576
        %v1587 = vadd.f32 %v1564, %v1576
        %v1588 = vadd.f32 %v1565, %v1576
        %v1589 = vadd.f32 %v1566, %v1576
        %v1590 = vadd.f32 %v1567, %v1576
        %v1591 = vadd.f32 %v1568, %v1576
        %v1592 = vadd.f32 %v1569, %v1576
        %v1593 = vadd.f32 %v1570, %v1576
        %v1594 = vmax.f32 %v1578, 0.0
        %v1595 = vmax.f32 %v1579, 0.0
        %v1596 = vmax.f32 %v1580, 0.0
        %v1597 = vmax.f32 %v1581, 0.0
        %v1598 = vmax.f32 %v1582, 0.0
        %v1599 = vmax.f32 %v1583, 0.0
        %v1600 = vmax.f32 %v1584, 0.0
        %v1601 = vmax.f32 %v1585, 0.0
        %v1602 = vmax.f32 %v1586, 0.0
        %v1603 = vmax.f32 %v1587, 0.0
        %v1604 = vmax.f32 %v1588, 0.0
        %v1605 = vmax.f32 %v1589, 0.0
        %v1606 = vmax.f32 %v1590, 0.0
        %v1607 = vmax.f32 %v1591, 0.0
        %v1608 = vmax.f32 %v1592, 0.0
        %v1609 = vmax.f32 %v1593, 0.0
        %v1610 = vpack.c.bf16 %v1595, %v1594
        %v1611 = vpack.c.bf16 %v1597, %v1596
        %v1612 = vpack.c.bf16 %v1599, %v1598
        %v1613 = vpack.c.bf16 %v1601, %v1600
        %v1614 = vpack.c.bf16 %v1603, %v1602
        %v1615 = vpack.c.bf16 %v1605, %v1604
        %v1616 = vpack.c.bf16 %v1607, %v1606
        %v1617 = vpack.c.bf16 %v1609, %v1608
        %v1626 = vunpack.c.l.b16 %v1610
        %v1627 = vunpack.c.h.b16 %v1610
        %v1628 = vunpack.c.l.b16 %v1611
        %v1629 = vunpack.c.h.b16 %v1611
        %v1630 = vunpack.c.l.b16 %v1612
        %v1631 = vunpack.c.h.b16 %v1612
        %v1632 = vunpack.c.l.b16 %v1613
        %v1633 = vunpack.c.h.b16 %v1613
        %v1634 = vunpack.c.l.b16 %v1614
        %v1635 = vunpack.c.h.b16 %v1614
        %v1636 = vunpack.c.l.b16 %v1615
        %v1637 = vunpack.c.h.b16 %v1615
        %v1638 = vunpack.c.l.b16 %v1616
        %v1639 = vunpack.c.h.b16 %v1616
        %v1640 = vunpack.c.l.b16 %v1617
        %v1641 = vunpack.c.h.b16 %v1617
        %v1642 = vpack.c.b16 %v1626, %v1626
        %v1643 = vpack.c.b16 %v1627, %v1627
        %v1644 = vpack.c.b16 %v1628, %v1628
        %v1645 = vpack.c.b16 %v1629, %v1629
        %v1646 = vpack.c.b16 %v1630, %v1630
        %v1647 = vpack.c.b16 %v1631, %v1631
        %v1648 = vpack.c.b16 %v1632, %v1632
        %v1649 = vpack.c.b16 %v1633, %v1633
        %v1650 = vpack.c.b16 %v1634, %v1634
        %v1651 = vpack.c.b16 %v1635, %v1635
        %v1652 = vpack.c.b16 %v1636, %v1636
        %v1653 = vpack.c.b16 %v1637, %v1637
        %v1654 = vpack.c.b16 %v1638, %v1638
        %v1655 = vpack.c.b16 %v1639, %v1639
        %v1656 = vpack.c.b16 %v1640, %v1640
        %v1657 = vpack.c.b16 %v1641, %v1641
        %1674 = vst [vmem:[%s431] sm:$0xf] %v1642
        %1675 = vst [vmem:[%s431 + $0x4] sm:$0xf] %v1643
        %1676 = vst [vmem:[%s431 + $0x8] sm:$0xf] %v1644
        %1677 = vst [vmem:[%s431 + $0xc] sm:$0xf] %v1645
        %1678 = vst [vmem:[%s431 + $0x10] sm:$0xf] %v1646
        %1679 = vst [vmem:[%s431 + $0x14] sm:$0xf] %v1647
        %1680 = vst [vmem:[%s431 + $0x18] sm:$0xf] %v1648
        %1681 = vst [vmem:[%s431 + $0x1c] sm:$0xf] %v1649
        %1682 = vst [vmem:[%s431 + $0x20] sm:$0xf] %v1650
        %1683 = vst [vmem:[%s431 + $0x24] sm:$0xf] %v1651
        %1684 = vst [vmem:[%s431 + $0x28] sm:$0xf] %v1652
        %1685 = vst [vmem:[%s431 + $0x2c] sm:$0xf] %v1653
        %1686 = vst [vmem:[%s431 + $0x30] sm:$0xf] %v1654
        %1687 = vst [vmem:[%s431 + $0x34] sm:$0xf] %v1655
        %1688 = vst [vmem:[%s431 + $0x38] sm:$0xf] %v1656
        %1689 = vst [vmem:[%s431 + $0x3c] sm:$0xf] %v1657
      $region64: #{emma_sage_forward.4} parent=55 // pred_fallthru
        _
      %s1690 = smul.u32 16, %s24
      %p1691 = scmp.lt.s32.totalorder %s1690, 31
      %s1692 = scalar_select %p1691, %s1690, 31
      %s1693 = smul.addr %s1692, 4
      %s1694 = scalar_lea.vmem %s9, %s1693
      // Predicated region
      $region65: #{emma_sage_forward.4} parent=55 // pred_check
        %p1695 = pneg %p261
      $region66: #{emma_sage_forward.4} parent=55 // pred_check_branch
        %1697 = sbr.rel (%p1695) target = $region68
      $region67: #{emma_sage_forward.4} parent=55 // pred_region
        %s1698 = smul.u32 16, %s24
      $region68: #{emma_sage_forward.4} parent=55 // pred_fallthru
        _
    $region56: #{emma_sage_forward.4} parent=5 // pred_fallthru
      _
    %p1699 = scmp.le.s32.totalorder 2, %s15
    // Predicated region
    $region69: #{emma_sage_forward.4} parent=5 // pred_check
      %p1700 = pneg %p1699
    $region70: #{emma_sage_forward.4} parent=5 // pred_check_branch
      %1702 = sbr.rel (%p1700) target = $region72
    $region71: #{emma_sage_forward.4} parent=5 // pred_region
      %s1703 = ssub.s32 %s15, 2
      // Predicated region
      $region73: #{emma_sage_forward.4} parent=71 // pred_check
        %p1704 = pneg %p267
      $region74: #{emma_sage_forward.4} parent=71 // pred_check_branch
        %1706 = sbr.rel (%p1704) target = $region76
      $region75: #{emma_sage_forward.4} parent=71 // pred_region
        %s1707 = smul.u32 16, %s26
        %p1708 = scmp.lt.s32.totalorder %s1707, 31
        %s1709 = scalar_select %p1708, %s1707, 31
        %s1710 = smul.addr %s1709, 4
        %s1711 = scalar_lea.vmem %s9, %s1710
      $region76: #{emma_sage_forward.4} parent=71 // pred_fallthru
        _
    $region72: #{emma_sage_forward.4} parent=5 // pred_fallthru
      _
  $region6: #{emma_sage_forward.4} parent=0 // loop_footer
    %s19 = sadd.s32 1, %s15
  $region7: #{emma_sage_forward.4} parent=0 // loop_footer_branch
    %14 = sbr.rel target = $region3
  $region8: #{emma_sage_forward.4} parent=0 // loop_exit
    _

// kernel: emma_sage_forward.3
$region0: #{emma_sage_forward.3}
  #allocation0 [shape = 'u32[]', space=smem, size = 0x4, offset = 0x4, fixed_abs, tag = 'smem constant byte address 0x4 - core index']
  #allocation1 [shape = 'u32[144,128]{1,0:T(1,128)}', space=vmem, size = 0x12000, scoped, tag = 'internal scratch']
  #allocation2 [shape = 'f32[128,256]{1,0:T(8,128)}', space=vmem, size = 0x20000, scoped, tag = 'scratch operand']
  %s0 = inlined_call_operand.vmem [shape: bf16[256,256], index: 0, kind: input, shape index: {}]
  %s1 = inlined_call_operand.vmem [shape: bf16[256,256], index: 1, kind: input, shape index: {}, may-alias: {1,2}]
  %s2 = inlined_call_operand.vmem [shape: bf16[256,256], index: 2, kind: input, shape index: {}, may-alias: {1,2}]
  %s3 = inlined_call_operand.vmem [shape: f32[256,1], index: 3, kind: input, shape index: {}]
  %s4 = inlined_call_operand.vmem [shape: bf16[256,128], index: 4, kind: input, shape index: {}]
  %s5 = inlined_call_operand.vmem [shape: bf16[256,128], index: 5, kind: input, shape index: {}]
  %s6 = inlined_call_operand.vmem [shape: f32[1,128], index: 6, kind: input, shape index: {}]
  %s7 = inlined_call_operand.vmem [shape: f32[1,128], index: 7, kind: input, shape index: {}]
  %s8 = inlined_call_operand.vmem [shape: f32[1,128], index: 8, kind: input, shape index: {}]
  %s9 = inlined_call_operand.vmem [shape: bf16[256,128], index: 9, kind: output, shape index: {}]
  %s10 = sld [smem:[#allocation0]]
  $region77: #{emma_sage_forward.3} parent=0
    _
  %s12 = ssub.s32 1, %s10
  %s13 = scalar_select 0, %s12, %s10
  loop: start=0, step=1, limit=4
  $region2: #{emma_sage_forward.3} parent=0 // loop_pre_header
    _
  $region3: #{emma_sage_forward.3} parent=0 // loop_header
    %s15 = sphi 0, %s19
    %p16 = scmp.ge.s32.totalorder %s15, 4
    %s22 = sphi 0, %s34
    %s23 = sphi 0, %s30
    %s24 = sphi 0, %s22
    %s25 = sphi 0, %s23
    %s26 = sphi 0, %s24
    %s27 = sphi 0, %s25
    %s39 = sphi 0, %s41
    %s42 = sphi 0, %s39
    %s43 = sphi 0, %s42
    %s59 = sphi 0, %s43
    %s65 = sphi 0, %s67
    %s68 = sphi 0, %s65
    %s69 = sphi 0, %s68
    %s85 = sphi 0, %s69
    %s91 = sphi 0, %s93
    %s94 = sphi 0, %s91
    %s95 = sphi 0, %s94
    %s111 = sphi 0, %s95
    %s117 = sphi 0, %s119
    %s120 = sphi 0, %s117
    %s121 = sphi 0, %s120
    %s137 = sphi 0, %s121
    %s141 = sphi 0, %s141
    %s143 = sphi 0, %s141
    %s144 = sphi 0, %s143
    %s158 = sphi 0, %s144
    %s162 = sphi 0, %s162
    %s164 = sphi 0, %s162
    %s165 = sphi 0, %s164
    %s179 = sphi 0, %s165
    %s183 = sphi 0, %s183
    %s185 = sphi 0, %s183
    %s186 = sphi 0, %s185
    %s200 = sphi 0, %s186
    %s204 = sphi 0, %s204
    %s206 = sphi 0, %s204
    %s207 = sphi 0, %s206
    %s221 = sphi 0, %s207
    %s225 = sphi 0, %s225
    %s227 = sphi 0, %s225
    %s228 = sphi 0, %s227
    %s242 = sphi 0, %s228
    %s248 = sphi 0, %s250
    %s251 = sphi 0, %s248
    %s252 = sphi 0, %s251
    %s268 = sphi 0, %s252
  $region4: #{emma_sage_forward.3} parent=0 // loop_header_branch
    %18 = sbr.rel (%p16) target = $region8
  $region5: #{emma_sage_forward.3} parent=0 // loop_body
    %s20 = ssub.s32 %s15, 1
    %s21 = ssub.s32 %s15, 2
    %s28 = sadd.s32 1, %s23
    %p29 = scmp.ge.s32.totalorder %s28, 1
    %s30 = scalar_select %p29, 0, %s28
    %s31 = sadd.s32 1, %s22
    %s32 = scalar_select %p29, %s31, %s22
    %p33 = scmp.ge.s32.totalorder %s32, 2
    %s34 = scalar_select %p33, 0, %s32
    %s35 = ssub.s32 %s22, %s34
    %s36 = ssub.s32 %s23, %s30
    %s37 = sor.u32 %s35, %s36
    %p38 = scmp.eq.s32.totalorder %s37, 0
    %s40 = sadd.s32 %s39, 1
    %s41 = scalar_select %p38, %s39, %s40
    %p44 = pneg %p38
    %p45 = scmp.eq.s32.totalorder %s15, 1
    %p46 = por %p44, %p45
    %p47 = scmp.ne.s32.totalorder %s39, %s42
    %p48 = scmp.eq.s32.totalorder %s15, 0
    %p49 = por %p47, %p48
    %p50 = scmp.ne.s32.totalorder %s39, %s42
    %p51 = scmp.eq.s32.totalorder %s20, 1
    %p52 = por %p50, %p51
    %p53 = scmp.ne.s32.totalorder %s42, %s43
    %p54 = scmp.eq.s32.totalorder %s20, 0
    %p55 = por %p53, %p54
    %p56 = scmp.ne.s32.totalorder %s42, %s43
    %p57 = scmp.eq.s32.totalorder %s21, 1
    %p58 = por %p56, %p57
    %p60 = scmp.ne.s32.totalorder %s43, %s59
    %p61 = scmp.eq.s32.totalorder %s21, 0
    %p62 = por %p60, %p61
    %s63 = ssub.s32 %s23, %s30
    %p64 = scmp.eq.s32.totalorder %s63, 0
    %s66 = sadd.s32 %s65, 1
    %s67 = scalar_select %p64, %s65, %s66
    %p70 = pneg %p64
    %p71 = scmp.eq.s32.totalorder %s15, 1
    %p72 = por %p70, %p71
    %p73 = scmp.ne.s32.totalorder %s65, %s68
    %p74 = scmp.eq.s32.totalorder %s15, 0
    %p75 = por %p73, %p74
    %p76 = scmp.ne.s32.totalorder %s65, %s68
    %p77 = scmp.eq.s32.totalorder %s20, 1
    %p78 = por %p76, %p77
    %p79 = scmp.ne.s32.totalorder %s68, %s69
    %p80 = scmp.eq.s32.totalorder %s20, 0
    %p81 = por %p79, %p80
    %p82 = scmp.ne.s32.totalorder %s68, %s69
    %p83 = scmp.eq.s32.totalorder %s21, 1
    %p84 = por %p82, %p83
    %p86 = scmp.ne.s32.totalorder %s69, %s85
    %p87 = scmp.eq.s32.totalorder %s21, 0
    %p88 = por %p86, %p87
    %s89 = ssub.s32 %s22, %s34
    %p90 = scmp.eq.s32.totalorder %s89, 0
    %s92 = sadd.s32 %s91, 1
    %s93 = scalar_select %p90, %s91, %s92
    %p96 = pneg %p90
    %p97 = scmp.eq.s32.totalorder %s15, 1
    %p98 = por %p96, %p97
    %p99 = scmp.ne.s32.totalorder %s91, %s94
    %p100 = scmp.eq.s32.totalorder %s15, 0
    %p101 = por %p99, %p100
    %p102 = scmp.ne.s32.totalorder %s91, %s94
    %p103 = scmp.eq.s32.totalorder %s20, 1
    %p104 = por %p102, %p103
    %p105 = scmp.ne.s32.totalorder %s94, %s95
    %p106 = scmp.eq.s32.totalorder %s20, 0
    %p107 = por %p105, %p106
    %p108 = scmp.ne.s32.totalorder %s94, %s95
    %p109 = scmp.eq.s32.totalorder %s21, 1
    %p110 = por %p108, %p109
    %p112 = scmp.ne.s32.totalorder %s95, %s111
    %p113 = scmp.eq.s32.totalorder %s21, 0
    %p114 = por %p112, %p113
    %s115 = ssub.s32 %s22, %s34
    %p116 = scmp.eq.s32.totalorder %s115, 0
    %s118 = sadd.s32 %s117, 1
    %s119 = scalar_select %p116, %s117, %s118
    %p122 = pneg %p116
    %p123 = scmp.eq.s32.totalorder %s15, 1
    %p124 = por %p122, %p123
    %p125 = scmp.ne.s32.totalorder %s117, %s120
    %p126 = scmp.eq.s32.totalorder %s15, 0
    %p127 = por %p125, %p126
    %p128 = scmp.ne.s32.totalorder %s117, %s120
    %p129 = scmp.eq.s32.totalorder %s20, 1
    %p130 = por %p128, %p129
    %p131 = scmp.ne.s32.totalorder %s120, %s121
    %p132 = scmp.eq.s32.totalorder %s20, 0
    %p133 = por %p131, %p132
    %p134 = scmp.ne.s32.totalorder %s120, %s121
    %p135 = scmp.eq.s32.totalorder %s21, 1
    %p136 = por %p134, %p135
    %p138 = scmp.ne.s32.totalorder %s121, %s137
    %p139 = scmp.eq.s32.totalorder %s21, 0
    %p140 = por %p138, %p139
    %s142 = sadd.s32 %s141, 1
    %p145 = scmp.eq.s32.totalorder %s15, 1
    %p146 = scmp.ne.s32.totalorder %s141, %s143
    %p147 = scmp.eq.s32.totalorder %s15, 0
    %p148 = por %p146, %p147
    %p149 = scmp.ne.s32.totalorder %s141, %s143
    %p150 = scmp.eq.s32.totalorder %s20, 1
    %p151 = por %p149, %p150
    %p152 = scmp.ne.s32.totalorder %s143, %s144
    %p153 = scmp.eq.s32.totalorder %s20, 0
    %p154 = por %p152, %p153
    %p155 = scmp.ne.s32.totalorder %s143, %s144
    %p156 = scmp.eq.s32.totalorder %s21, 1
    %p157 = por %p155, %p156
    %p159 = scmp.ne.s32.totalorder %s144, %s158
    %p160 = scmp.eq.s32.totalorder %s21, 0
    %p161 = por %p159, %p160
    %s163 = sadd.s32 %s162, 1
    %p166 = scmp.eq.s32.totalorder %s15, 1
    %p167 = scmp.ne.s32.totalorder %s162, %s164
    %p168 = scmp.eq.s32.totalorder %s15, 0
    %p169 = por %p167, %p168
    %p170 = scmp.ne.s32.totalorder %s162, %s164
    %p171 = scmp.eq.s32.totalorder %s20, 1
    %p172 = por %p170, %p171
    %p173 = scmp.ne.s32.totalorder %s164, %s165
    %p174 = scmp.eq.s32.totalorder %s20, 0
    %p175 = por %p173, %p174
    %p176 = scmp.ne.s32.totalorder %s164, %s165
    %p177 = scmp.eq.s32.totalorder %s21, 1
    %p178 = por %p176, %p177
    %p180 = scmp.ne.s32.totalorder %s165, %s179
    %p181 = scmp.eq.s32.totalorder %s21, 0
    %p182 = por %p180, %p181
    %s184 = sadd.s32 %s183, 1
    %p187 = scmp.eq.s32.totalorder %s15, 1
    %p188 = scmp.ne.s32.totalorder %s183, %s185
    %p189 = scmp.eq.s32.totalorder %s15, 0
    %p190 = por %p188, %p189
    %p191 = scmp.ne.s32.totalorder %s183, %s185
    %p192 = scmp.eq.s32.totalorder %s20, 1
    %p193 = por %p191, %p192
    %p194 = scmp.ne.s32.totalorder %s185, %s186
    %p195 = scmp.eq.s32.totalorder %s20, 0
    %p196 = por %p194, %p195
    %p197 = scmp.ne.s32.totalorder %s185, %s186
    %p198 = scmp.eq.s32.totalorder %s21, 1
    %p199 = por %p197, %p198
    %p201 = scmp.ne.s32.totalorder %s186, %s200
    %p202 = scmp.eq.s32.totalorder %s21, 0
    %p203 = por %p201, %p202
    %s205 = sadd.s32 %s204, 1
    %p208 = scmp.eq.s32.totalorder %s15, 1
    %p209 = scmp.ne.s32.totalorder %s204, %s206
    %p210 = scmp.eq.s32.totalorder %s15, 0
    %p211 = por %p209, %p210
    %p212 = scmp.ne.s32.totalorder %s204, %s206
    %p213 = scmp.eq.s32.totalorder %s20, 1
    %p214 = por %p212, %p213
    %p215 = scmp.ne.s32.totalorder %s206, %s207
    %p216 = scmp.eq.s32.totalorder %s20, 0
    %p217 = por %p215, %p216
    %p218 = scmp.ne.s32.totalorder %s206, %s207
    %p219 = scmp.eq.s32.totalorder %s21, 1
    %p220 = por %p218, %p219
    %p222 = scmp.ne.s32.totalorder %s207, %s221
    %p223 = scmp.eq.s32.totalorder %s21, 0
    %p224 = por %p222, %p223
    %s226 = sadd.s32 %s225, 1
    %p229 = scmp.eq.s32.totalorder %s15, 1
    %p230 = scmp.ne.s32.totalorder %s225, %s227
    %p231 = scmp.eq.s32.totalorder %s15, 0
    %p232 = por %p230, %p231
    %p233 = scmp.ne.s32.totalorder %s225, %s227
    %p234 = scmp.eq.s32.totalorder %s20, 1
    %p235 = por %p233, %p234
    %p236 = scmp.ne.s32.totalorder %s227, %s228
    %p237 = scmp.eq.s32.totalorder %s20, 0
    %p238 = por %p236, %p237
    %p239 = scmp.ne.s32.totalorder %s227, %s228
    %p240 = scmp.eq.s32.totalorder %s21, 1
    %p241 = por %p239, %p240
    %p243 = scmp.ne.s32.totalorder %s228, %s242
    %p244 = scmp.eq.s32.totalorder %s21, 0
    %p245 = por %p243, %p244
    %s246 = ssub.s32 %s22, %s34
    %p247 = scmp.eq.s32.totalorder %s246, 0
    %s249 = sadd.s32 %s248, 1
    %s250 = scalar_select %p247, %s248, %s249
    %p253 = pneg %p247
    %p254 = scmp.eq.s32.totalorder %s15, 1
    %p255 = por %p253, %p254
    %p256 = scmp.ne.s32.totalorder %s248, %s251
    %p257 = scmp.eq.s32.totalorder %s15, 0
    %p258 = por %p256, %p257
    %p259 = scmp.ne.s32.totalorder %s248, %s251
    %p260 = scmp.eq.s32.totalorder %s20, 1
    %p261 = por %p259, %p260
    %p262 = scmp.ne.s32.totalorder %s251, %s252
    %p263 = scmp.eq.s32.totalorder %s20, 0
    %p264 = por %p262, %p263
    %p265 = scmp.ne.s32.totalorder %s251, %s252
    %p266 = scmp.eq.s32.totalorder %s21, 1
    %p267 = por %p265, %p266
    %p269 = scmp.ne.s32.totalorder %s252, %s268
    %p270 = scmp.eq.s32.totalorder %s21, 0
    %p271 = por %p269, %p270
    %p272 = scmp.le.s32.totalorder 1, %s15
    %p273 = scmp.lt.s32.totalorder %s15, 3
    %p274 = pnand %p272, %p273
    %p275 = pneg %p274
    // Predicated region
    $region9: #{emma_sage_forward.3} parent=5 // pred_check
      _
    $region10: #{emma_sage_forward.3} parent=5 // pred_check_branch
      %277 = sbr.rel (%p274) target = $region12
    $region11: #{emma_sage_forward.3} parent=5 // pred_region
      %s278 = ssub.s32 %s15, 1
      // Predicated region
      $region13: #{emma_sage_forward.3} parent=11 // pred_check
        %p279 = pneg %p81
      $region14: #{emma_sage_forward.3} parent=11 // pred_check_branch
        %281 = sbr.rel (%p279) target = $region16
      $region15: #{emma_sage_forward.3} parent=11 // pred_region
        %s282 = smul.u32 32, %s25
        %p283 = scmp.lt.s32.totalorder %s282, 31
        %s284 = scalar_select %p283, %s282, 31
        %s285 = smul.addr %s284, 2
        %s286 = smul.addr %s285, 4
        %s287 = scalar_lea.vmem %s1, %s286
        %s288 = smul.u32 32, %s25
      $region16: #{emma_sage_forward.3} parent=11 // pred_fallthru
        _
      // Predicated region
      $region17: #{emma_sage_forward.3} parent=11 // pred_check
        %p289 = pneg %p154
      $region18: #{emma_sage_forward.3} parent=11 // pred_check_branch
        %291 = sbr.rel (%p289) target = $region20
      $region19: #{emma_sage_forward.3} parent=11 // pred_region
        _
      $region20: #{emma_sage_forward.3} parent=11 // pred_fallthru
        _
      // Predicated region
      $region21: #{emma_sage_forward.3} parent=11 // pred_check
        %p292 = pneg %p175
      $region22: #{emma_sage_forward.3} parent=11 // pred_check_branch
        %294 = sbr.rel (%p292) target = $region24
      $region23: #{emma_sage_forward.3} parent=11 // pred_region
        _
      $region24: #{emma_sage_forward.3} parent=11 // pred_fallthru
        _
      // Predicated region
      $region25: #{emma_sage_forward.3} parent=11 // pred_check
        %p295 = pneg %p196
      $region26: #{emma_sage_forward.3} parent=11 // pred_check_branch
        %297 = sbr.rel (%p295) target = $region28
      $region27: #{emma_sage_forward.3} parent=11 // pred_region
        _
      $region28: #{emma_sage_forward.3} parent=11 // pred_fallthru
        _
      // Predicated region
      $region29: #{emma_sage_forward.3} parent=11 // pred_check
        %p298 = pneg %p217
      $region30: #{emma_sage_forward.3} parent=11 // pred_check_branch
        %300 = sbr.rel (%p298) target = $region32
      $region31: #{emma_sage_forward.3} parent=11 // pred_region
        _
      $region32: #{emma_sage_forward.3} parent=11 // pred_fallthru
        _
      // Predicated region
      $region33: #{emma_sage_forward.3} parent=11 // pred_check
        %p301 = pneg %p238
      $region34: #{emma_sage_forward.3} parent=11 // pred_check_branch
        %303 = sbr.rel (%p301) target = $region36
      $region35: #{emma_sage_forward.3} parent=11 // pred_region
        _
      $region36: #{emma_sage_forward.3} parent=11 // pred_fallthru
        _
    $region12: #{emma_sage_forward.3} parent=5 // pred_fallthru
      _
    %p304 = scmp.lt.s32.totalorder %s15, 2
    // Predicated region
    $region37: #{emma_sage_forward.3} parent=5 // pred_check
      %p305 = pneg %p304
    $region38: #{emma_sage_forward.3} parent=5 // pred_check_branch
      %307 = sbr.rel (%p305) target = $region40
    $region39: #{emma_sage_forward.3} parent=5 // pred_region
      // Predicated region
      $region41: #{emma_sage_forward.3} parent=39 // pred_check
        %p308 = pneg %p49
      $region42: #{emma_sage_forward.3} parent=39 // pred_check_branch
        %310 = sbr.rel (%p308) target = $region44
      $region43: #{emma_sage_forward.3} parent=39 // pred_region
        %s311 = smul.u32 16, %s22
        %s312 = smul.u32 2, %s23
        %p313 = scmp.lt.s32.totalorder %s311, 31
        %s314 = scalar_select %p313, %s311, 31
        %p315 = scmp.lt.s32.totalorder %s312, 1
        %s316 = scalar_select %p315, %s312, 1
        %s317 = smul.addr %s314, 2
        %s318 = sadd.s32 %s316, %s317
        %s319 = smul.addr %s318, 4
        %s320 = scalar_lea.vmem %s0, %s319
        %s321 = smul.u32 16, %s22
        %s322 = smul.u32 2, %s23
      $region44: #{emma_sage_forward.3} parent=39 // pred_fallthru
        _
      // Predicated region
      $region45: #{emma_sage_forward.3} parent=39 // pred_check
        %p323 = pneg %p101
      $region46: #{emma_sage_forward.3} parent=39 // pred_check_branch
        %325 = sbr.rel (%p323) target = $region48
      $region47: #{emma_sage_forward.3} parent=39 // pred_region
        %s326 = smul.u32 16, %s22
        %p327 = scmp.lt.s32.totalorder %s326, 31
        %s328 = scalar_select %p327, %s326, 31
        %s329 = smul.addr %s328, 2
        %s330 = smul.addr %s329, 4
        %s331 = scalar_lea.vmem %s2, %s330
        %s332 = smul.u32 16, %s22
      $region48: #{emma_sage_forward.3} parent=39 // pred_fallthru
        _
      // Predicated region
      $region49: #{emma_sage_forward.3} parent=39 // pred_check
        %p333 = pneg %p127
      $region50: #{emma_sage_forward.3} parent=39 // pred_check_branch
        %335 = sbr.rel (%p333) target = $region52
      $region51: #{emma_sage_forward.3} parent=39 // pred_region
        %s336 = smul.u32 16, %s22
        %p337 = scmp.lt.s32.totalorder %s336, 31
        %s338 = scalar_select %p337, %s336, 31
        %s339 = smul.addr %s338, 8
        %s340 = scalar_lea.vmem %s3, %s339
        %s341 = smul.u32 16, %s22
      $region52: #{emma_sage_forward.3} parent=39 // pred_fallthru
        _
    $region40: #{emma_sage_forward.3} parent=5 // pred_fallthru
      _
    %p342 = scmp.le.s32.totalorder 1, %s15
    %p343 = scmp.lt.s32.totalorder %s15, 3
    %p344 = pnand %p342, %p343
    %p345 = pneg %p344
    // Predicated region
    $region53: #{emma_sage_forward.3} parent=5 // pred_check
      _
    $region54: #{emma_sage_forward.3} parent=5 // pred_check_branch
      %347 = sbr.rel (%p344) target = $region56
    $region55: #{emma_sage_forward.3} parent=5 // pred_region
      %s348 = ssub.s32 %s15, 1
      %s349 = smul.u32 16, %s24
      %s350 = smul.u32 2, %s25
      %p351 = scmp.lt.s32.totalorder %s349, 31
      %s352 = scalar_select %p351, %s349, 31
      %p353 = scmp.lt.s32.totalorder %s350, 1
      %s354 = scalar_select %p353, %s350, 1
      %s355 = smul.addr %s352, 2
      %s356 = sadd.s32 %s354, %s355
      %s357 = smul.addr %s356, 4
      %s358 = scalar_lea.vmem %s0, %s357
      %p359 = pneg %p55
      %p360 = pneg %p52
      %s361 = smul.u32 32, %s25
      %p362 = scmp.lt.s32.totalorder %s361, 31
      %s363 = scalar_select %p362, %s361, 31
      %s364 = smul.addr %s363, 2
      %s365 = smul.addr %s364, 4
      %s366 = scalar_lea.vmem %s1, %s365
      %p367 = pneg %p81
      %p368 = pneg %p78
      %s369 = smul.u32 16, %s24
      %p370 = scmp.lt.s32.totalorder %s369, 31
      %s371 = scalar_select %p370, %s369, 31
      %s372 = smul.addr %s371, 2
      %s373 = smul.addr %s372, 4
      %s374 = scalar_lea.vmem %s2, %s373
      %p375 = pneg %p107
      %p376 = pneg %p104
      %s377 = smul.u32 16, %s24
      %p378 = scmp.lt.s32.totalorder %s377, 31
      %s379 = scalar_select %p378, %s377, 31
      %s380 = smul.addr %s379, 8
      %s381 = scalar_lea.vmem %s3, %s380
      %p382 = pneg %p133
      %p383 = pneg %p130
      %p384 = pneg %p154
      %p385 = pneg %p151
      %p386 = pneg %p175
      %p387 = pneg %p172
      %p388 = pneg %p196
      %p389 = pneg %p193
      %p390 = pneg %p217
      %p391 = pneg %p214
      %p392 = pneg %p238
      %p393 = pneg %p235
      %p394 = pneg %p264
      %p395 = pneg %p261
      %s396 = smul.u32 16, %s24
      %p397 = scmp.lt.s32.totalorder %s396, 31
      %s398 = scalar_select %p397, %s396, 31
      %s399 = smul.addr %s398, 4
      %s400 = scalar_lea.vmem %s9, %s399
      %s401 = smul.u32 16, %s24
      %s402 = smul.u32 2, %s25
      %p403 = scmp.lt.s32.totalorder %s401, 31
      %s404 = scalar_select %p403, %s401, 31
      %p405 = scmp.lt.s32.totalorder %s402, 1
      %s406 = scalar_select %p405, %s402, 1
      %s407 = smul.addr %s404, 2
      %s408 = sadd.s32 %s406, %s407
      %s409 = smul.addr %s408, 4
      %s410 = scalar_lea.vmem %s0, %s409
      %s411 = smul.u32 16, %s24
      %s412 = smul.u32 2, %s25
      %s413 = smul.u32 32, %s25
      %p414 = scmp.lt.s32.totalorder %s413, 31
      %s415 = scalar_select %p414, %s413, 31
      %s416 = smul.addr %s415, 2
      %s417 = smul.addr %s416, 4
      %s418 = scalar_lea.vmem %s1, %s417
      %s419 = smul.u32 32, %s25
      %s420 = smul.u32 16, %s24
      %p421 = scmp.lt.s32.totalorder %s420, 31
      %s422 = scalar_select %p421, %s420, 31
      %s423 = smul.addr %s422, 2
      %s424 = smul.addr %s423, 4
      %s425 = scalar_lea.vmem %s2, %s424
      %s426 = smul.u32 16, %s24
      %s427 = smul.u32 16, %s24
      %p428 = scmp.lt.s32.totalorder %s427, 31
      %s429 = scalar_select %p428, %s427, 31
      %s430 = smul.addr %s429, 8
      %s431 = scalar_lea.vmem %s3, %s430
      %s432 = smul.u32 16, %s24
      %s433 = smul.u32 16, %s24
      %p434 = scmp.lt.s32.totalorder %s433, 31
      %s435 = scalar_select %p434, %s433, 31
      %s436 = smul.addr %s435, 4
      %s437 = scalar_lea.vmem %s9, %s436
      %s438 = smul.u32 16, %s24
      %p440 = scmp.eq.s32.totalorder %s25, 0
      // Predicated region
      $region57: #{emma_sage_forward.3} parent=55 // pred_check
        %p441 = pneg %p440
      $region58: #{emma_sage_forward.3} parent=55 // pred_check_branch
        %443 = sbr.rel (%p441) target = $region60
      $region59: #{emma_sage_forward.3} parent=55 // pred_region
        %444 = vst [vmem:[#allocation2] sm:$0xff] 0.0
        %445 = vst [vmem:[#allocation2 + $0x8] sm:$0xff] 0.0
        %446 = vst [vmem:[#allocation2 + $0x10] sm:$0xff] 0.0
        %447 = vst [vmem:[#allocation2 + $0x18] sm:$0xff] 0.0
        %448 = vst [vmem:[#allocation2 + $0x20] sm:$0xff] 0.0
        %449 = vst [vmem:[#allocation2 + $0x28] sm:$0xff] 0.0
        %450 = vst [vmem:[#allocation2 + $0x30] sm:$0xff] 0.0
        %451 = vst [vmem:[#allocation2 + $0x38] sm:$0xff] 0.0
        %452 = vst [vmem:[#allocation2 + $0x40] sm:$0xff] 0.0
        %453 = vst [vmem:[#allocation2 + $0x48] sm:$0xff] 0.0
        %454 = vst [vmem:[#allocation2 + $0x50] sm:$0xff] 0.0
        %455 = vst [vmem:[#allocation2 + $0x58] sm:$0xff] 0.0
        %456 = vst [vmem:[#allocation2 + $0x60] sm:$0xff] 0.0
        %457 = vst [vmem:[#allocation2 + $0x68] sm:$0xff] 0.0
        %458 = vst [vmem:[#allocation2 + $0x70] sm:$0xff] 0.0
        %459 = vst [vmem:[#allocation2 + $0x78] sm:$0xff] 0.0
        %460 = vst [vmem:[#allocation2 + $0x80] sm:$0xff] 0.0
        %461 = vst [vmem:[#allocation2 + $0x88] sm:$0xff] 0.0
        %462 = vst [vmem:[#allocation2 + $0x90] sm:$0xff] 0.0
        %463 = vst [vmem:[#allocation2 + $0x98] sm:$0xff] 0.0
        %464 = vst [vmem:[#allocation2 + $0xa0] sm:$0xff] 0.0
        %465 = vst [vmem:[#allocation2 + $0xa8] sm:$0xff] 0.0
        %466 = vst [vmem:[#allocation2 + $0xb0] sm:$0xff] 0.0
        %467 = vst [vmem:[#allocation2 + $0xb8] sm:$0xff] 0.0
        %468 = vst [vmem:[#allocation2 + $0xc0] sm:$0xff] 0.0
        %469 = vst [vmem:[#allocation2 + $0xc8] sm:$0xff] 0.0
        %470 = vst [vmem:[#allocation2 + $0xd0] sm:$0xff] 0.0
        %471 = vst [vmem:[#allocation2 + $0xd8] sm:$0xff] 0.0
        %472 = vst [vmem:[#allocation2 + $0xe0] sm:$0xff] 0.0
        %473 = vst [vmem:[#allocation2 + $0xe8] sm:$0xff] 0.0
        %474 = vst [vmem:[#allocation2 + $0xf0] sm:$0xff] 0.0
        %475 = vst [vmem:[#allocation2 + $0xf8] sm:$0xff] 0.0
      $region60: #{emma_sage_forward.3} parent=55 // pred_fallthru
        _
      %v476 = vld [vmem:[#allocation2] sm:$0xff]
      %v477 = vld [vmem:[#allocation2 + $0x8] sm:$0xff]
      %v478 = vld [vmem:[#allocation2 + $0x10] sm:$0xff]
      %v479 = vld [vmem:[#allocation2 + $0x18] sm:$0xff]
      %v480 = vld [vmem:[#allocation2 + $0x20] sm:$0xff]
      %v481 = vld [vmem:[#allocation2 + $0x28] sm:$0xff]
      %v482 = vld [vmem:[#allocation2 + $0x30] sm:$0xff]
      %v483 = vld [vmem:[#allocation2 + $0x38] sm:$0xff]
      %v484 = vld [vmem:[#allocation2 + $0x40] sm:$0xff]
      %v485 = vld [vmem:[#allocation2 + $0x48] sm:$0xff]
      %v486 = vld [vmem:[#allocation2 + $0x50] sm:$0xff]
      %v487 = vld [vmem:[#allocation2 + $0x58] sm:$0xff]
      %v488 = vld [vmem:[#allocation2 + $0x60] sm:$0xff]
      %v489 = vld [vmem:[#allocation2 + $0x68] sm:$0xff]
      %v490 = vld [vmem:[#allocation2 + $0x70] sm:$0xff]
      %v491 = vld [vmem:[#allocation2 + $0x78] sm:$0xff]
      %v492 = vld [vmem:[#allocation2 + $0x80] sm:$0xff]
      %v493 = vld [vmem:[#allocation2 + $0x88] sm:$0xff]
      %v494 = vld [vmem:[#allocation2 + $0x90] sm:$0xff]
      %v495 = vld [vmem:[#allocation2 + $0x98] sm:$0xff]
      %v496 = vld [vmem:[#allocation2 + $0xa0] sm:$0xff]
      %v497 = vld [vmem:[#allocation2 + $0xa8] sm:$0xff]
      %v498 = vld [vmem:[#allocation2 + $0xb0] sm:$0xff]
      %v499 = vld [vmem:[#allocation2 + $0xb8] sm:$0xff]
      %v500 = vld [vmem:[#allocation2 + $0xc0] sm:$0xff]
      %v501 = vld [vmem:[#allocation2 + $0xc8] sm:$0xff]
      %v502 = vld [vmem:[#allocation2 + $0xd0] sm:$0xff]
      %v503 = vld [vmem:[#allocation2 + $0xd8] sm:$0xff]
      %v504 = vld [vmem:[#allocation2 + $0xe0] sm:$0xff]
      %v505 = vld [vmem:[#allocation2 + $0xe8] sm:$0xff]
      %v506 = vld [vmem:[#allocation2 + $0xf0] sm:$0xff]
      %v507 = vld [vmem:[#allocation2 + $0xf8] sm:$0xff]
      %v508 = vld [vmem:[%s410] sm:$0xff]
      %v509 = vld [vmem:[%s410 + $0x8] sm:$0xff]
      %v510 = vld [vmem:[%s410 + $0x10] sm:$0xff]
      %v511 = vld [vmem:[%s410 + $0x18] sm:$0xff]
      %v512 = vld [vmem:[%s410 + $0x20] sm:$0xff]
      %v513 = vld [vmem:[%s410 + $0x28] sm:$0xff]
      %v514 = vld [vmem:[%s410 + $0x30] sm:$0xff]
      %v515 = vld [vmem:[%s410 + $0x38] sm:$0xff]
      %v516 = vld [vmem:[%s410 + $0x40] sm:$0xff]
      %v517 = vld [vmem:[%s410 + $0x48] sm:$0xff]
      %v518 = vld [vmem:[%s410 + $0x50] sm:$0xff]
      %v519 = vld [vmem:[%s410 + $0x58] sm:$0xff]
      %v520 = vld [vmem:[%s410 + $0x60] sm:$0xff]
      %v521 = vld [vmem:[%s410 + $0x68] sm:$0xff]
      %v522 = vld [vmem:[%s410 + $0x70] sm:$0xff]
      %v523 = vld [vmem:[%s410 + $0x78] sm:$0xff]
      %v524 = vld [vmem:[%s418] sm:$0xff]
      %v525 = vld [vmem:[%s418 + $0x8] sm:$0xff]
      %v526 = vld [vmem:[%s418 + $0x10] sm:$0xff]
      %v527 = vld [vmem:[%s418 + $0x18] sm:$0xff]
      %v528 = vld [vmem:[%s418 + $0x20] sm:$0xff]
      %v529 = vld [vmem:[%s418 + $0x28] sm:$0xff]
      %v530 = vld [vmem:[%s418 + $0x30] sm:$0xff]
      %v531 = vld [vmem:[%s418 + $0x38] sm:$0xff]
      %v532 = vld [vmem:[%s418 + $0x40] sm:$0xff]
      %v533 = vld [vmem:[%s418 + $0x48] sm:$0xff]
      %v534 = vld [vmem:[%s418 + $0x50] sm:$0xff]
      %v535 = vld [vmem:[%s418 + $0x58] sm:$0xff]
      %v536 = vld [vmem:[%s418 + $0x60] sm:$0xff]
      %v537 = vld [vmem:[%s418 + $0x68] sm:$0xff]
      %v538 = vld [vmem:[%s418 + $0x70] sm:$0xff]
      %v539 = vld [vmem:[%s418 + $0x78] sm:$0xff]
      %v540 = vld [vmem:[%s418 + $0x80] sm:$0xff]
      %v541 = vld [vmem:[%s418 + $0x88] sm:$0xff]
      %v542 = vld [vmem:[%s418 + $0x90] sm:$0xff]
      %v543 = vld [vmem:[%s418 + $0x98] sm:$0xff]
      %v544 = vld [vmem:[%s418 + $0xa0] sm:$0xff]
      %v545 = vld [vmem:[%s418 + $0xa8] sm:$0xff]
      %v546 = vld [vmem:[%s418 + $0xb0] sm:$0xff]
      %v547 = vld [vmem:[%s418 + $0xb8] sm:$0xff]
      %v548 = vld [vmem:[%s418 + $0xc0] sm:$0xff]
      %v549 = vld [vmem:[%s418 + $0xc8] sm:$0xff]
      %v550 = vld [vmem:[%s418 + $0xd0] sm:$0xff]
      %v551 = vld [vmem:[%s418 + $0xd8] sm:$0xff]
      %v552 = vld [vmem:[%s418 + $0xe0] sm:$0xff]
      %v553 = vld [vmem:[%s418 + $0xe8] sm:$0xff]
      %v554 = vld [vmem:[%s418 + $0xf0] sm:$0xff]
      %v555 = vld [vmem:[%s418 + $0xf8] sm:$0xff]
      %v572 = vunpack.c.l.b16 %v508
      %v573 = vunpack.c.h.b16 %v508
      %v574 = vunpack.c.l.b16 %v509
      %v575 = vunpack.c.h.b16 %v509
      %v576 = vunpack.c.l.b16 %v510
      %v577 = vunpack.c.h.b16 %v510
      %v578 = vunpack.c.l.b16 %v511
      %v579 = vunpack.c.h.b16 %v511
      %v580 = vunpack.c.l.b16 %v512
      %v581 = vunpack.c.h.b16 %v512
      %v582 = vunpack.c.l.b16 %v513
      %v583 = vunpack.c.h.b16 %v513
      %v584 = vunpack.c.l.b16 %v514
      %v585 = vunpack.c.h.b16 %v514
      %v586 = vunpack.c.l.b16 %v515
      %v587 = vunpack.c.h.b16 %v515
      %v588 = vunpack.c.l.b16 %v516
      %v589 = vunpack.c.h.b16 %v516
      %v590 = vunpack.c.l.b16 %v517
      %v591 = vunpack.c.h.b16 %v517
      %v592 = vunpack.c.l.b16 %v518
      %v593 = vunpack.c.h.b16 %v518
      %v594 = vunpack.c.l.b16 %v519
      %v595 = vunpack.c.h.b16 %v519
      %v596 = vunpack.c.l.b16 %v520
      %v597 = vunpack.c.h.b16 %v520
      %v598 = vunpack.c.l.b16 %v521
      %v599 = vunpack.c.h.b16 %v521
      %v600 = vunpack.c.l.b16 %v522
      %v601 = vunpack.c.h.b16 %v522
      %v602 = vunpack.c.l.b16 %v523
      %v603 = vunpack.c.h.b16 %v523
      %v604 = vpack.c.b16 %v574, %v572
      %v605 = vpack.c.b16 %v575, %v573
      %v606 = vpack.c.b16 %v578, %v576
      %v607 = vpack.c.b16 %v579, %v577
      %v608 = vpack.c.b16 %v582, %v580
      %v609 = vpack.c.b16 %v583, %v581
      %v610 = vpack.c.b16 %v586, %v584
      %v611 = vpack.c.b16 %v587, %v585
      %v612 = vpack.c.b16 %v590, %v588
      %v613 = vpack.c.b16 %v591, %v589
      %v614 = vpack.c.b16 %v594, %v592
      %v615 = vpack.c.b16 %v595, %v593
      %v616 = vpack.c.b16 %v598, %v596
      %v617 = vpack.c.b16 %v599, %v597
      %v618 = vpack.c.b16 %v602, %v600
      %v619 = vpack.c.b16 %v603, %v601
      %v668 = vunpack.c.l.b16 %v524
      %v669 = vunpack.c.h.b16 %v524
      %v670 = vunpack.c.l.b16 %v525
      %v671 = vunpack.c.h.b16 %v525
      %v672 = vunpack.c.l.b16 %v526
      %v673 = vunpack.c.h.b16 %v526
      %v674 = vunpack.c.l.b16 %v527
      %v675 = vunpack.c.h.b16 %v527
      %v676 = vunpack.c.l.b16 %v528
      %v677 = vunpack.c.h.b16 %v528
      %v678 = vunpack.c.l.b16 %v529
      %v679 = vunpack.c.h.b16 %v529
      %v680 = vunpack.c.l.b16 %v530
      %v681 = vunpack.c.h.b16 %v530
      %v682 = vunpack.c.l.b16 %v531
      %v683 = vunpack.c.h.b16 %v531
      %v684 = vunpack.c.l.b16 %v532
      %v685 = vunpack.c.h.b16 %v532
      %v686 = vunpack.c.l.b16 %v533
      %v687 = vunpack.c.h.b16 %v533
      %v688 = vunpack.c.l.b16 %v534
      %v689 = vunpack.c.h.b16 %v534
      %v690 = vunpack.c.l.b16 %v535
      %v691 = vunpack.c.h.b16 %v535
      %v692 = vunpack.c.l.b16 %v536
      %v693 = vunpack.c.h.b16 %v536
      %v694 = vunpack.c.l.b16 %v537
      %v695 = vunpack.c.h.b16 %v537
      %v696 = vunpack.c.l.b16 %v538
      %v697 = vunpack.c.h.b16 %v538
      %v698 = vunpack.c.l.b16 %v539
      %v699 = vunpack.c.h.b16 %v539
      %v700 = vunpack.c.l.b16 %v540
      %v701 = vunpack.c.h.b16 %v540
      %v702 = vunpack.c.l.b16 %v541
      %v703 = vunpack.c.h.b16 %v541
      %v704 = vunpack.c.l.b16 %v542
      %v705 = vunpack.c.h.b16 %v542
      %v706 = vunpack.c.l.b16 %v543
      %v707 = vunpack.c.h.b16 %v543
      %v708 = vunpack.c.l.b16 %v544
      %v709 = vunpack.c.h.b16 %v544
      %v710 = vunpack.c.l.b16 %v545
      %v711 = vunpack.c.h.b16 %v545
      %v712 = vunpack.c.l.b16 %v546
      %v713 = vunpack.c.h.b16 %v546
      %v714 = vunpack.c.l.b16 %v547
      %v715 = vunpack.c.h.b16 %v547
      %v716 = vunpack.c.l.b16 %v548
      %v717 = vunpack.c.h.b16 %v548
      %v718 = vunpack.c.l.b16 %v549
      %v719 = vunpack.c.h.b16 %v549
      %v720 = vunpack.c.l.b16 %v550
      %v721 = vunpack.c.h.b16 %v550
      %v722 = vunpack.c.l.b16 %v551
      %v723 = vunpack.c.h.b16 %v551
      %v724 = vunpack.c.l.b16 %v552
      %v725 = vunpack.c.h.b16 %v552
      %v726 = vunpack.c.l.b16 %v553
      %v727 = vunpack.c.h.b16 %v553
      %v728 = vunpack.c.l.b16 %v554
      %v729 = vunpack.c.h.b16 %v554
      %v730 = vunpack.c.l.b16 %v555
      %v731 = vunpack.c.h.b16 %v555
      %v732 = vpack.c.b16 %v670, %v668
      %v733 = vpack.c.b16 %v671, %v669
      %v734 = vpack.c.b16 %v674, %v672
      %v735 = vpack.c.b16 %v675, %v673
      %v736 = vpack.c.b16 %v678, %v676
      %v737 = vpack.c.b16 %v679, %v677
      %v738 = vpack.c.b16 %v682, %v680
      %v739 = vpack.c.b16 %v683, %v681
      %v740 = vpack.c.b16 %v686, %v684
      %v741 = vpack.c.b16 %v687, %v685
      %v742 = vpack.c.b16 %v690, %v688
      %v743 = vpack.c.b16 %v691, %v689
      %v744 = vpack.c.b16 %v694, %v692
      %v745 = vpack.c.b16 %v695, %v693
      %v746 = vpack.c.b16 %v698, %v696
      %v747 = vpack.c.b16 %v699, %v697
      %v748 = vpack.c.b16 %v702, %v700
      %v749 = vpack.c.b16 %v703, %v701
      %v750 = vpack.c.b16 %v706, %v704
      %v751 = vpack.c.b16 %v707, %v705
      %v752 = vpack.c.b16 %v710, %v708
      %v753 = vpack.c.b16 %v711, %v709
      %v754 = vpack.c.b16 %v714, %v712
      %v755 = vpack.c.b16 %v715, %v713
      %v756 = vpack.c.b16 %v718, %v716
      %v757 = vpack.c.b16 %v719, %v717
      %v758 = vpack.c.b16 %v722, %v720
      %v759 = vpack.c.b16 %v723, %v721
      %v760 = vpack.c.b16 %v726, %v724
      %v761 = vpack.c.b16 %v727, %v725
      %v762 = vpack.c.b16 %v730, %v728
      %v763 = vpack.c.b16 %v731, %v729
      %796 = vmatprep.subr.bf16.mxu0 %v733
      %797 = vmatpush1.bf16.msra.mxu0 %v732
      %798 = vmatprep.subr.bf16.mxu0 %v735
      %799 = vmatpush1.bf16.msra.mxu0 %v734
      %800 = vmatprep.subr.bf16.mxu0 %v737
      %801 = vmatpush1.bf16.msra.mxu0 %v736
      %802 = vmatprep.subr.bf16.mxu0 %v739
      %803 = vmatpush1.bf16.msra.mxu0 %v738
      %804 = vmatprep.subr.bf16.mxu0 %v741
      %805 = vmatpush1.bf16.msra.mxu0 %v740
      %806 = vmatprep.subr.bf16.mxu0 %v743
      %807 = vmatpush1.bf16.msra.mxu0 %v742
      %808 = vmatprep.subr.bf16.mxu0 %v745
      %809 = vmatpush1.bf16.msra.mxu0 %v744
      %810 = vmatprep.subr.bf16.mxu0 %v747
      %811 = vmatpush1.bf16.msra.mxu0 %v746
      %812 = vmatprep.subr.bf16.mxu0 %v749
      %813 = vmatpush1.bf16.msra.mxu0 %v748
      %814 = vmatprep.subr.bf16.mxu0 %v751
      %815 = vmatpush1.bf16.msra.mxu0 %v750
      %816 = vmatprep.subr.bf16.mxu0 %v753
      %817 = vmatpush1.bf16.msra.mxu0 %v752
      %818 = vmatprep.subr.bf16.mxu0 %v755
      %819 = vmatpush1.bf16.msra.mxu0 %v754
      %820 = vmatprep.subr.bf16.mxu0 %v757
      %821 = vmatpush1.bf16.msra.mxu0 %v756
      %822 = vmatprep.subr.bf16.mxu0 %v759
      %823 = vmatpush1.bf16.msra.mxu0 %v758
      %824 = vmatprep.subr.bf16.mxu0 %v761
      %825 = vmatpush1.bf16.msra.mxu0 %v760
      %826 = vmatprep.subr.bf16.mxu0 %v763
      %827 = vmatpush1.bf16.msra.mxu0 %v762
      %828 = vmatprep.mubr.bf16.mxu0 %v605
      %829 = vmatmul.mubr.bf16.gmra.mrb[0].mxu0 %v604
      %v830 = vpop.f32.mrb[0].mxu0
      %v831 = vadd.f32 0.0, %v830
      %v832 = vpop.f32.mrb[0].mxu0
      %v833 = vadd.f32 0.0, %v832
      %v834 = vpop.f32.mrb[0].mxu0
      %v835 = vadd.f32 0.0, %v834
      %v836 = vpop.f32.mrb[0].mxu0
      %v837 = vadd.f32 0.0, %v836
      %838 = vmatprep.mubr.bf16.mxu0 %v607
      %839 = vmatmul.mubr.bf16.gmra.mrb[0].mxu0 %v606
      %v840 = vpop.f32.mrb[0].mxu0
      %v841 = vadd.f32 0.0, %v840
      %v842 = vpop.f32.mrb[0].mxu0
      %v843 = vadd.f32 0.0, %v842
      %v844 = vpop.f32.mrb[0].mxu0
      %v845 = vadd.f32 0.0, %v844
      %v846 = vpop.f32.mrb[0].mxu0
      %v847 = vadd.f32 0.0, %v846
      %848 = vmatprep.mubr.bf16.mxu0 %v609
      %849 = vmatmul.mubr.bf16.gmra.mrb[0].mxu0 %v608
      %v850 = vpop.f32.mrb[0].mxu0
      %v851 = vadd.f32 0.0, %v850
      %v852 = vpop.f32.mrb[0].mxu0
      %v853 = vadd.f32 0.0, %v852
      %v854 = vpop.f32.mrb[0].mxu0
      %v855 = vadd.f32 0.0, %v854
      %v856 = vpop.f32.mrb[0].mxu0
      %v857 = vadd.f32 0.0, %v856
      %858 = vmatprep.mubr.bf16.mxu0 %v611
      %859 = vmatmul.mubr.bf16.gmra.mrb[0].mxu0 %v610
      %v860 = vpop.f32.mrb[0].mxu0
      %v861 = vadd.f32 0.0, %v860
      %v862 = vpop.f32.mrb[0].mxu0
      %v863 = vadd.f32 0.0, %v862
      %v864 = vpop.f32.mrb[0].mxu0
      %v865 = vadd.f32 0.0, %v864
      %v866 = vpop.f32.mrb[0].mxu0
      %v867 = vadd.f32 0.0, %v866
      %868 = vmatprep.mubr.bf16.mxu0 %v613
      %869 = vmatmul.mubr.bf16.gmra.mrb[0].mxu0 %v612
      %v870 = vpop.f32.mrb[0].mxu0
      %v871 = vadd.f32 0.0, %v870
      %v872 = vpop.f32.mrb[0].mxu0
      %v873 = vadd.f32 0.0, %v872
      %v874 = vpop.f32.mrb[0].mxu0
      %v875 = vadd.f32 0.0, %v874
      %v876 = vpop.f32.mrb[0].mxu0
      %v877 = vadd.f32 0.0, %v876
      %878 = vmatprep.mubr.bf16.mxu0 %v615
      %879 = vmatmul.mubr.bf16.gmra.mrb[0].mxu0 %v614
      %v880 = vpop.f32.mrb[0].mxu0
      %v881 = vadd.f32 0.0, %v880
      %v882 = vpop.f32.mrb[0].mxu0
      %v883 = vadd.f32 0.0, %v882
      %v884 = vpop.f32.mrb[0].mxu0
      %v885 = vadd.f32 0.0, %v884
      %v886 = vpop.f32.mrb[0].mxu0
      %v887 = vadd.f32 0.0, %v886
      %888 = vmatprep.mubr.bf16.mxu0 %v617
      %889 = vmatmul.mubr.bf16.gmra.mrb[0].mxu0 %v616
      %v890 = vpop.f32.mrb[0].mxu0
      %v891 = vadd.f32 0.0, %v890
      %v892 = vpop.f32.mrb[0].mxu0
      %v893 = vadd.f32 0.0, %v892
      %v894 = vpop.f32.mrb[0].mxu0
      %v895 = vadd.f32 0.0, %v894
      %v896 = vpop.f32.mrb[0].mxu0
      %v897 = vadd.f32 0.0, %v896
      %898 = vmatprep.mubr.bf16.mxu0 %v619
      %899 = vmatmul.mubr.bf16.gmra.mrb[0].mxu0 %v618
      %v900 = vpop.f32.mrb[0].mxu0
      %v901 = vadd.f32 0.0, %v900
      %v902 = vpop.f32.mrb[0].mxu0
      %v903 = vadd.f32 0.0, %v902
      %v904 = vpop.f32.mrb[0].mxu0
      %v905 = vadd.f32 0.0, %v904
      %v906 = vpop.f32.mrb[0].mxu0
      %v907 = vadd.f32 0.0, %v906
      %908 = vdwg.mxu0
      %v909 = vadd.f32 %v476, %v831
      %v910 = vadd.f32 %v477, %v833
      %v911 = vadd.f32 %v478, %v835
      %v912 = vadd.f32 %v479, %v837
      %v913 = vadd.f32 %v480, %v841
      %v914 = vadd.f32 %v481, %v843
      %v915 = vadd.f32 %v482, %v845
      %v916 = vadd.f32 %v483, %v847
      %v917 = vadd.f32 %v484, %v851
      %v918 = vadd.f32 %v485, %v853
      %v919 = vadd.f32 %v486, %v855
      %v920 = vadd.f32 %v487, %v857
      %v921 = vadd.f32 %v488, %v861
      %v922 = vadd.f32 %v489, %v863
      %v923 = vadd.f32 %v490, %v865
      %v924 = vadd.f32 %v491, %v867
      %v925 = vadd.f32 %v492, %v871
      %v926 = vadd.f32 %v493, %v873
      %v927 = vadd.f32 %v494, %v875
      %v928 = vadd.f32 %v495, %v877
      %v929 = vadd.f32 %v496, %v881
      %v930 = vadd.f32 %v497, %v883
      %v931 = vadd.f32 %v498, %v885
      %v932 = vadd.f32 %v499, %v887
      %v933 = vadd.f32 %v500, %v891
      %v934 = vadd.f32 %v501, %v893
      %v935 = vadd.f32 %v502, %v895
      %v936 = vadd.f32 %v503, %v897
      %v937 = vadd.f32 %v504, %v901
      %v938 = vadd.f32 %v505, %v903
      %v939 = vadd.f32 %v506, %v905
      %v940 = vadd.f32 %v507, %v907
      %941 = vst [vmem:[#allocation2] sm:$0xff] %v909
      %942 = vst [vmem:[#allocation2 + $0x8] sm:$0xff] %v910
      %943 = vst [vmem:[#allocation2 + $0x10] sm:$0xff] %v911
      %944 = vst [vmem:[#allocation2 + $0x18] sm:$0xff] %v912
      %945 = vst [vmem:[#allocation2 + $0x20] sm:$0xff] %v913
      %946 = vst [vmem:[#allocation2 + $0x28] sm:$0xff] %v914
      %947 = vst [vmem:[#allocation2 + $0x30] sm:$0xff] %v915
      %948 = vst [vmem:[#allocation2 + $0x38] sm:$0xff] %v916
      %949 = vst [vmem:[#allocation2 + $0x40] sm:$0xff] %v917
      %950 = vst [vmem:[#allocation2 + $0x48] sm:$0xff] %v918
      %951 = vst [vmem:[#allocation2 + $0x50] sm:$0xff] %v919
      %952 = vst [vmem:[#allocation2 + $0x58] sm:$0xff] %v920
      %953 = vst [vmem:[#allocation2 + $0x60] sm:$0xff] %v921
      %954 = vst [vmem:[#allocation2 + $0x68] sm:$0xff] %v922
      %955 = vst [vmem:[#allocation2 + $0x70] sm:$0xff] %v923
      %956 = vst [vmem:[#allocation2 + $0x78] sm:$0xff] %v924
      %957 = vst [vmem:[#allocation2 + $0x80] sm:$0xff] %v925
      %958 = vst [vmem:[#allocation2 + $0x88] sm:$0xff] %v926
      %959 = vst [vmem:[#allocation2 + $0x90] sm:$0xff] %v927
      %960 = vst [vmem:[#allocation2 + $0x98] sm:$0xff] %v928
      %961 = vst [vmem:[#allocation2 + $0xa0] sm:$0xff] %v929
      %962 = vst [vmem:[#allocation2 + $0xa8] sm:$0xff] %v930
      %963 = vst [vmem:[#allocation2 + $0xb0] sm:$0xff] %v931
      %964 = vst [vmem:[#allocation2 + $0xb8] sm:$0xff] %v932
      %965 = vst [vmem:[#allocation2 + $0xc0] sm:$0xff] %v933
      %966 = vst [vmem:[#allocation2 + $0xc8] sm:$0xff] %v934
      %967 = vst [vmem:[#allocation2 + $0xd0] sm:$0xff] %v935
      %968 = vst [vmem:[#allocation2 + $0xd8] sm:$0xff] %v936
      %969 = vst [vmem:[#allocation2 + $0xe0] sm:$0xff] %v937
      %970 = vst [vmem:[#allocation2 + $0xe8] sm:$0xff] %v938
      %971 = vst [vmem:[#allocation2 + $0xf0] sm:$0xff] %v939
      %972 = vst [vmem:[#allocation2 + $0xf8] sm:$0xff] %v940
      // Predicated region
      $region61: #{emma_sage_forward.3} parent=55 // pred_check
        %p973 = pneg %p440
      $region62: #{emma_sage_forward.3} parent=55 // pred_check_branch
        %975 = sbr.rel (%p973) target = $region64
      $region63: #{emma_sage_forward.3} parent=55 // pred_region
        %v976 = vld [vmem:[#allocation2] sm:$0xff]
        %v977 = vld [vmem:[#allocation2 + $0x8] sm:$0xff]
        %v978 = vld [vmem:[#allocation2 + $0x10] sm:$0xff]
        %v979 = vld [vmem:[#allocation2 + $0x18] sm:$0xff]
        %v980 = vld [vmem:[#allocation2 + $0x20] sm:$0xff]
        %v981 = vld [vmem:[#allocation2 + $0x28] sm:$0xff]
        %v982 = vld [vmem:[#allocation2 + $0x30] sm:$0xff]
        %v983 = vld [vmem:[#allocation2 + $0x38] sm:$0xff]
        %v984 = vld [vmem:[#allocation2 + $0x40] sm:$0xff]
        %v985 = vld [vmem:[#allocation2 + $0x48] sm:$0xff]
        %v986 = vld [vmem:[#allocation2 + $0x50] sm:$0xff]
        %v987 = vld [vmem:[#allocation2 + $0x58] sm:$0xff]
        %v988 = vld [vmem:[#allocation2 + $0x60] sm:$0xff]
        %v989 = vld [vmem:[#allocation2 + $0x68] sm:$0xff]
        %v990 = vld [vmem:[#allocation2 + $0x70] sm:$0xff]
        %v991 = vld [vmem:[#allocation2 + $0x78] sm:$0xff]
        %v992 = vld [vmem:[#allocation2 + $0x80] sm:$0xff]
        %v993 = vld [vmem:[#allocation2 + $0x88] sm:$0xff]
        %v994 = vld [vmem:[#allocation2 + $0x90] sm:$0xff]
        %v995 = vld [vmem:[#allocation2 + $0x98] sm:$0xff]
        %v996 = vld [vmem:[#allocation2 + $0xa0] sm:$0xff]
        %v997 = vld [vmem:[#allocation2 + $0xa8] sm:$0xff]
        %v998 = vld [vmem:[#allocation2 + $0xb0] sm:$0xff]
        %v999 = vld [vmem:[#allocation2 + $0xb8] sm:$0xff]
        %v1000 = vld [vmem:[#allocation2 + $0xc0] sm:$0xff]
        %v1001 = vld [vmem:[#allocation2 + $0xc8] sm:$0xff]
        %v1002 = vld [vmem:[#allocation2 + $0xd0] sm:$0xff]
        %v1003 = vld [vmem:[#allocation2 + $0xd8] sm:$0xff]
        %v1004 = vld [vmem:[#allocation2 + $0xe0] sm:$0xff]
        %v1005 = vld [vmem:[#allocation2 + $0xe8] sm:$0xff]
        %v1006 = vld [vmem:[#allocation2 + $0xf0] sm:$0xff]
        %v1007 = vld [vmem:[#allocation2 + $0xf8] sm:$0xff]
        %v1008 = vld [vmem:[%s431] sm:$0xff]
        %v1009 = vld [vmem:[%s431 + $0x8] sm:$0xff]
        %v1010 = vld [vmem:[%s431 + $0x10] sm:$0xff]
        %v1011 = vld [vmem:[%s431 + $0x18] sm:$0xff]
        %v1012 = vld [vmem:[%s431 + $0x20] sm:$0xff]
        %v1013 = vld [vmem:[%s431 + $0x28] sm:$0xff]
        %v1014 = vld [vmem:[%s431 + $0x30] sm:$0xff]
        %v1015 = vld [vmem:[%s431 + $0x38] sm:$0xff]
        %v1016 = vld [vmem:[%s431 + $0x40] sm:$0xff]
        %v1017 = vld [vmem:[%s431 + $0x48] sm:$0xff]
        %v1018 = vld [vmem:[%s431 + $0x50] sm:$0xff]
        %v1019 = vld [vmem:[%s431 + $0x58] sm:$0xff]
        %v1020 = vld [vmem:[%s431 + $0x60] sm:$0xff]
        %v1021 = vld [vmem:[%s431 + $0x68] sm:$0xff]
        %v1022 = vld [vmem:[%s431 + $0x70] sm:$0xff]
        %v1023 = vld [vmem:[%s431 + $0x78] sm:$0xff]
        %1025 = vset.pattern.permute.xlu0 0
        %1026 = vperm.xlu0 %1025, %v1008
        %v1027 = vpop.permute.xlu0 %1026
        %1030 = vset.pattern.permute.xlu0 0
        %1031 = vperm.xlu0 %1030, %v1009
        %v1032 = vpop.permute.xlu0 %1031
        %1035 = vset.pattern.permute.xlu0 0
        %1036 = vperm.xlu0 %1035, %v1010
        %v1037 = vpop.permute.xlu0 %1036
        %1040 = vset.pattern.permute.xlu0 0
        %1041 = vperm.xlu0 %1040, %v1011
        %v1042 = vpop.permute.xlu0 %1041
        %1045 = vset.pattern.permute.xlu0 0
        %1046 = vperm.xlu0 %1045, %v1012
        %v1047 = vpop.permute.xlu0 %1046
        %1050 = vset.pattern.permute.xlu0 0
        %1051 = vperm.xlu0 %1050, %v1013
        %v1052 = vpop.permute.xlu0 %1051
        %1055 = vset.pattern.permute.xlu0 0
        %1056 = vperm.xlu0 %1055, %v1014
        %v1057 = vpop.permute.xlu0 %1056
        %1060 = vset.pattern.permute.xlu0 0
        %1061 = vperm.xlu0 %1060, %v1015
        %v1062 = vpop.permute.xlu0 %1061
        %1065 = vset.pattern.permute.xlu0 0
        %1066 = vperm.xlu0 %1065, %v1016
        %v1067 = vpop.permute.xlu0 %1066
        %1070 = vset.pattern.permute.xlu0 0
        %1071 = vperm.xlu0 %1070, %v1017
        %v1072 = vpop.permute.xlu0 %1071
        %1075 = vset.pattern.permute.xlu0 0
        %1076 = vperm.xlu0 %1075, %v1018
        %v1077 = vpop.permute.xlu0 %1076
        %1080 = vset.pattern.permute.xlu0 0
        %1081 = vperm.xlu0 %1080, %v1019
        %v1082 = vpop.permute.xlu0 %1081
        %1085 = vset.pattern.permute.xlu0 0
        %1086 = vperm.xlu0 %1085, %v1020
        %v1087 = vpop.permute.xlu0 %1086
        %1090 = vset.pattern.permute.xlu0 0
        %1091 = vperm.xlu0 %1090, %v1021
        %v1092 = vpop.permute.xlu0 %1091
        %1095 = vset.pattern.permute.xlu0 0
        %1096 = vperm.xlu0 %1095, %v1022
        %v1097 = vpop.permute.xlu0 %1096
        %1100 = vset.pattern.permute.xlu0 0
        %1101 = vperm.xlu0 %1100, %v1023
        %v1102 = vpop.permute.xlu0 %1101
        %v1104 = vmul.f32 %v976, %v1027
        %v1105 = vmul.f32 %v977, %v1027
        %v1106 = vmul.f32 %v978, %v1032
        %v1107 = vmul.f32 %v979, %v1032
        %v1108 = vmul.f32 %v980, %v1037
        %v1109 = vmul.f32 %v981, %v1037
        %v1110 = vmul.f32 %v982, %v1042
        %v1111 = vmul.f32 %v983, %v1042
        %v1112 = vmul.f32 %v984, %v1047
        %v1113 = vmul.f32 %v985, %v1047
        %v1114 = vmul.f32 %v986, %v1052
        %v1115 = vmul.f32 %v987, %v1052
        %v1116 = vmul.f32 %v988, %v1057
        %v1117 = vmul.f32 %v989, %v1057
        %v1118 = vmul.f32 %v990, %v1062
        %v1119 = vmul.f32 %v991, %v1062
        %v1120 = vmul.f32 %v992, %v1067
        %v1121 = vmul.f32 %v993, %v1067
        %v1122 = vmul.f32 %v994, %v1072
        %v1123 = vmul.f32 %v995, %v1072
        %v1124 = vmul.f32 %v996, %v1077
        %v1125 = vmul.f32 %v997, %v1077
        %v1126 = vmul.f32 %v998, %v1082
        %v1127 = vmul.f32 %v999, %v1082
        %v1128 = vmul.f32 %v1000, %v1087
        %v1129 = vmul.f32 %v1001, %v1087
        %v1130 = vmul.f32 %v1002, %v1092
        %v1131 = vmul.f32 %v1003, %v1092
        %v1132 = vmul.f32 %v1004, %v1097
        %v1133 = vmul.f32 %v1005, %v1097
        %v1134 = vmul.f32 %v1006, %v1102
        %v1135 = vmul.f32 %v1007, %v1102
        %v1136 = vpack.c.bf16 %v1106, %v1104
        %v1137 = vpack.c.bf16 %v1107, %v1105
        %v1138 = vpack.c.bf16 %v1110, %v1108
        %v1139 = vpack.c.bf16 %v1111, %v1109
        %v1140 = vpack.c.bf16 %v1114, %v1112
        %v1141 = vpack.c.bf16 %v1115, %v1113
        %v1142 = vpack.c.bf16 %v1118, %v1116
        %v1143 = vpack.c.bf16 %v1119, %v1117
        %v1144 = vpack.c.bf16 %v1122, %v1120
        %v1145 = vpack.c.bf16 %v1123, %v1121
        %v1146 = vpack.c.bf16 %v1126, %v1124
        %v1147 = vpack.c.bf16 %v1127, %v1125
        %v1148 = vpack.c.bf16 %v1130, %v1128
        %v1149 = vpack.c.bf16 %v1131, %v1129
        %v1150 = vpack.c.bf16 %v1134, %v1132
        %v1151 = vpack.c.bf16 %v1135, %v1133
        %v1152 = vld [vmem:[%s4] sm:$0xf]
        %v1153 = vld [vmem:[%s4 + $0x4] sm:$0xf]
        %v1154 = vld [vmem:[%s4 + $0x8] sm:$0xf]
        %v1155 = vld [vmem:[%s4 + $0xc] sm:$0xf]
        %v1156 = vld [vmem:[%s4 + $0x10] sm:$0xf]
        %v1157 = vld [vmem:[%s4 + $0x14] sm:$0xf]
        %v1158 = vld [vmem:[%s4 + $0x18] sm:$0xf]
        %v1159 = vld [vmem:[%s4 + $0x1c] sm:$0xf]
        %v1160 = vld [vmem:[%s4 + $0x20] sm:$0xf]
        %v1161 = vld [vmem:[%s4 + $0x24] sm:$0xf]
        %v1162 = vld [vmem:[%s4 + $0x28] sm:$0xf]
        %v1163 = vld [vmem:[%s4 + $0x2c] sm:$0xf]
        %v1164 = vld [vmem:[%s4 + $0x30] sm:$0xf]
        %v1165 = vld [vmem:[%s4 + $0x34] sm:$0xf]
        %v1166 = vld [vmem:[%s4 + $0x38] sm:$0xf]
        %v1167 = vld [vmem:[%s4 + $0x3c] sm:$0xf]
        %v1168 = vld [vmem:[%s4 + $0x40] sm:$0xf]
        %v1169 = vld [vmem:[%s4 + $0x44] sm:$0xf]
        %v1170 = vld [vmem:[%s4 + $0x48] sm:$0xf]
        %v1171 = vld [vmem:[%s4 + $0x4c] sm:$0xf]
        %v1172 = vld [vmem:[%s4 + $0x50] sm:$0xf]
        %v1173 = vld [vmem:[%s4 + $0x54] sm:$0xf]
        %v1174 = vld [vmem:[%s4 + $0x58] sm:$0xf]
        %v1175 = vld [vmem:[%s4 + $0x5c] sm:$0xf]
        %v1176 = vld [vmem:[%s4 + $0x60] sm:$0xf]
        %v1177 = vld [vmem:[%s4 + $0x64] sm:$0xf]
        %v1178 = vld [vmem:[%s4 + $0x68] sm:$0xf]
        %v1179 = vld [vmem:[%s4 + $0x6c] sm:$0xf]
        %v1180 = vld [vmem:[%s4 + $0x70] sm:$0xf]
        %v1181 = vld [vmem:[%s4 + $0x74] sm:$0xf]
        %v1182 = vld [vmem:[%s4 + $0x78] sm:$0xf]
        %v1183 = vld [vmem:[%s4 + $0x7c] sm:$0xf]
        %v1184 = vld [vmem:[%s425] sm:$0xff]
        %v1185 = vld [vmem:[%s425 + $0x8] sm:$0xff]
        %v1186 = vld [vmem:[%s425 + $0x10] sm:$0xff]
        %v1187 = vld [vmem:[%s425 + $0x18] sm:$0xff]
        %v1188 = vld [vmem:[%s425 + $0x20] sm:$0xff]
        %v1189 = vld [vmem:[%s425 + $0x28] sm:$0xff]
        %v1190 = vld [vmem:[%s425 + $0x30] sm:$0xff]
        %v1191 = vld [vmem:[%s425 + $0x38] sm:$0xff]
        %v1192 = vld [vmem:[%s425 + $0x40] sm:$0xff]
        %v1193 = vld [vmem:[%s425 + $0x48] sm:$0xff]
        %v1194 = vld [vmem:[%s425 + $0x50] sm:$0xff]
        %v1195 = vld [vmem:[%s425 + $0x58] sm:$0xff]
        %v1196 = vld [vmem:[%s425 + $0x60] sm:$0xff]
        %v1197 = vld [vmem:[%s425 + $0x68] sm:$0xff]
        %v1198 = vld [vmem:[%s425 + $0x70] sm:$0xff]
        %v1199 = vld [vmem:[%s425 + $0x78] sm:$0xff]
        %v1200 = vld [vmem:[%s5] sm:$0xf]
        %v1201 = vld [vmem:[%s5 + $0x4] sm:$0xf]
        %v1202 = vld [vmem:[%s5 + $0x8] sm:$0xf]
        %v1203 = vld [vmem:[%s5 + $0xc] sm:$0xf]
        %v1204 = vld [vmem:[%s5 + $0x10] sm:$0xf]
        %v1205 = vld [vmem:[%s5 + $0x14] sm:$0xf]
        %v1206 = vld [vmem:[%s5 + $0x18] sm:$0xf]
        %v1207 = vld [vmem:[%s5 + $0x1c] sm:$0xf]
        %v1208 = vld [vmem:[%s5 + $0x20] sm:$0xf]
        %v1209 = vld [vmem:[%s5 + $0x24] sm:$0xf]
        %v1210 = vld [vmem:[%s5 + $0x28] sm:$0xf]
        %v1211 = vld [vmem:[%s5 + $0x2c] sm:$0xf]
        %v1212 = vld [vmem:[%s5 + $0x30] sm:$0xf]
        %v1213 = vld [vmem:[%s5 + $0x34] sm:$0xf]
        %v1214 = vld [vmem:[%s5 + $0x38] sm:$0xf]
        %v1215 = vld [vmem:[%s5 + $0x3c] sm:$0xf]
        %v1216 = vld [vmem:[%s5 + $0x40] sm:$0xf]
        %v1217 = vld [vmem:[%s5 + $0x44] sm:$0xf]
        %v1218 = vld [vmem:[%s5 + $0x48] sm:$0xf]
        %v1219 = vld [vmem:[%s5 + $0x4c] sm:$0xf]
        %v1220 = vld [vmem:[%s5 + $0x50] sm:$0xf]
        %v1221 = vld [vmem:[%s5 + $0x54] sm:$0xf]
        %v1222 = vld [vmem:[%s5 + $0x58] sm:$0xf]
        %v1223 = vld [vmem:[%s5 + $0x5c] sm:$0xf]
        %v1224 = vld [vmem:[%s5 + $0x60] sm:$0xf]
        %v1225 = vld [vmem:[%s5 + $0x64] sm:$0xf]
        %v1226 = vld [vmem:[%s5 + $0x68] sm:$0xf]
        %v1227 = vld [vmem:[%s5 + $0x6c] sm:$0xf]
        %v1228 = vld [vmem:[%s5 + $0x70] sm:$0xf]
        %v1229 = vld [vmem:[%s5 + $0x74] sm:$0xf]
        %v1230 = vld [vmem:[%s5 + $0x78] sm:$0xf]
        %v1231 = vld [vmem:[%s5 + $0x7c] sm:$0xf]
        %v1248 = vunpack.c.l.b16 %v1184
        %v1249 = vunpack.c.h.b16 %v1184
        %v1250 = vunpack.c.l.b16 %v1185
        %v1251 = vunpack.c.h.b16 %v1185
        %v1252 = vunpack.c.l.b16 %v1186
        %v1253 = vunpack.c.h.b16 %v1186
        %v1254 = vunpack.c.l.b16 %v1187
        %v1255 = vunpack.c.h.b16 %v1187
        %v1256 = vunpack.c.l.b16 %v1188
        %v1257 = vunpack.c.h.b16 %v1188
        %v1258 = vunpack.c.l.b16 %v1189
        %v1259 = vunpack.c.h.b16 %v1189
        %v1260 = vunpack.c.l.b16 %v1190
        %v1261 = vunpack.c.h.b16 %v1190
        %v1262 = vunpack.c.l.b16 %v1191
        %v1263 = vunpack.c.h.b16 %v1191
        %v1264 = vunpack.c.l.b16 %v1192
        %v1265 = vunpack.c.h.b16 %v1192
        %v1266 = vunpack.c.l.b16 %v1193
        %v1267 = vunpack.c.h.b16 %v1193
        %v1268 = vunpack.c.l.b16 %v1194
        %v1269 = vunpack.c.h.b16 %v1194
        %v1270 = vunpack.c.l.b16 %v1195
        %v1271 = vunpack.c.h.b16 %v1195
        %v1272 = vunpack.c.l.b16 %v1196
        %v1273 = vunpack.c.h.b16 %v1196
        %v1274 = vunpack.c.l.b16 %v1197
        %v1275 = vunpack.c.h.b16 %v1197
        %v1276 = vunpack.c.l.b16 %v1198
        %v1277 = vunpack.c.h.b16 %v1198
        %v1278 = vunpack.c.l.b16 %v1199
        %v1279 = vunpack.c.h.b16 %v1199
        %v1280 = vpack.c.b16 %v1250, %v1248
        %v1281 = vpack.c.b16 %v1251, %v1249
        %v1282 = vpack.c.b16 %v1254, %v1252
        %v1283 = vpack.c.b16 %v1255, %v1253
        %v1284 = vpack.c.b16 %v1258, %v1256
        %v1285 = vpack.c.b16 %v1259, %v1257
        %v1286 = vpack.c.b16 %v1262, %v1260
        %v1287 = vpack.c.b16 %v1263, %v1261
        %v1288 = vpack.c.b16 %v1266, %v1264
        %v1289 = vpack.c.b16 %v1267, %v1265
        %v1290 = vpack.c.b16 %v1270, %v1268
        %v1291 = vpack.c.b16 %v1271, %v1269
        %v1292 = vpack.c.b16 %v1274, %v1272
        %v1293 = vpack.c.b16 %v1275, %v1273
        %v1294 = vpack.c.b16 %v1278, %v1276
        %v1295 = vpack.c.b16 %v1279, %v1277
        %v1344 = vunpack.c.l.b16 %v1200
        %v1345 = vunpack.c.l.b16 %v1201
        %v1346 = vunpack.c.l.b16 %v1202
        %v1347 = vunpack.c.l.b16 %v1203
        %v1348 = vunpack.c.l.b16 %v1204
        %v1349 = vunpack.c.l.b16 %v1205
        %v1350 = vunpack.c.l.b16 %v1206
        %v1351 = vunpack.c.l.b16 %v1207
        %v1352 = vunpack.c.l.b16 %v1208
        %v1353 = vunpack.c.l.b16 %v1209
        %v1354 = vunpack.c.l.b16 %v1210
        %v1355 = vunpack.c.l.b16 %v1211
        %v1356 = vunpack.c.l.b16 %v1212
        %v1357 = vunpack.c.l.b16 %v1213
        %v1358 = vunpack.c.l.b16 %v1214
        %v1359 = vunpack.c.l.b16 %v1215
        %v1360 = vunpack.c.l.b16 %v1216
        %v1361 = vunpack.c.l.b16 %v1217
        %v1362 = vunpack.c.l.b16 %v1218
        %v1363 = vunpack.c.l.b16 %v1219
        %v1364 = vunpack.c.l.b16 %v1220
        %v1365 = vunpack.c.l.b16 %v1221
        %v1366 = vunpack.c.l.b16 %v1222
        %v1367 = vunpack.c.l.b16 %v1223
        %v1368 = vunpack.c.l.b16 %v1224
        %v1369 = vunpack.c.l.b16 %v1225
        %v1370 = vunpack.c.l.b16 %v1226
        %v1371 = vunpack.c.l.b16 %v1227
        %v1372 = vunpack.c.l.b16 %v1228
        %v1373 = vunpack.c.l.b16 %v1229
        %v1374 = vunpack.c.l.b16 %v1230
        %v1375 = vunpack.c.l.b16 %v1231
        %v1376 = vpack.c.b16 %v1345, %v1344
        %v1377 = vpack.c.b16 %v1347, %v1346
        %v1378 = vpack.c.b16 %v1349, %v1348
        %v1379 = vpack.c.b16 %v1351, %v1350
        %v1380 = vpack.c.b16 %v1353, %v1352
        %v1381 = vpack.c.b16 %v1355, %v1354
        %v1382 = vpack.c.b16 %v1357, %v1356
        %v1383 = vpack.c.b16 %v1359, %v1358
        %v1384 = vpack.c.b16 %v1361, %v1360
        %v1385 = vpack.c.b16 %v1363, %v1362
        %v1386 = vpack.c.b16 %v1365, %v1364
        %v1387 = vpack.c.b16 %v1367, %v1366
        %v1388 = vpack.c.b16 %v1369, %v1368
        %v1389 = vpack.c.b16 %v1371, %v1370
        %v1390 = vpack.c.b16 %v1373, %v1372
        %v1391 = vpack.c.b16 %v1375, %v1374
        %1408 = vmatprep.subr.bf16.mxu0 0
        %1409 = vmatpush1.bf16.msra.mxu0 %v1376
        %1410 = vmatprep.subr.bf16.mxu0 0
        %1411 = vmatpush1.bf16.msra.mxu0 %v1377
        %1412 = vmatprep.subr.bf16.mxu0 0
        %1413 = vmatpush1.bf16.msra.mxu0 %v1378
        %1414 = vmatprep.subr.bf16.mxu0 0
        %1415 = vmatpush1.bf16.msra.mxu0 %v1379
        %1416 = vmatprep.subr.bf16.mxu0 0
        %1417 = vmatpush1.bf16.msra.mxu0 %v1380
        %1418 = vmatprep.subr.bf16.mxu0 0
        %1419 = vmatpush1.bf16.msra.mxu0 %v1381
        %1420 = vmatprep.subr.bf16.mxu0 0
        %1421 = vmatpush1.bf16.msra.mxu0 %v1382
        %1422 = vmatprep.subr.bf16.mxu0 0
        %1423 = vmatpush1.bf16.msra.mxu0 %v1383
        %1424 = vmatprep.subr.bf16.mxu0 0
        %1425 = vmatpush1.bf16.msra.mxu0 %v1384
        %1426 = vmatprep.subr.bf16.mxu0 0
        %1427 = vmatpush1.bf16.msra.mxu0 %v1385
        %1428 = vmatprep.subr.bf16.mxu0 0
        %1429 = vmatpush1.bf16.msra.mxu0 %v1386
        %1430 = vmatprep.subr.bf16.mxu0 0
        %1431 = vmatpush1.bf16.msra.mxu0 %v1387
        %1432 = vmatprep.subr.bf16.mxu0 0
        %1433 = vmatpush1.bf16.msra.mxu0 %v1388
        %1434 = vmatprep.subr.bf16.mxu0 0
        %1435 = vmatpush1.bf16.msra.mxu0 %v1389
        %1436 = vmatprep.subr.bf16.mxu0 0
        %1437 = vmatpush1.bf16.msra.mxu0 %v1390
        %1438 = vmatprep.subr.bf16.mxu0 0
        %1439 = vmatpush1.bf16.msra.mxu0 %v1391
        %1440 = vmatprep.mubr.bf16.mxu0 %v1281
        %1441 = vmatmul.mubr.bf16.gmra.mrb[0].mxu0 %v1280
        %v1442 = vpop.f32.mrb[0].mxu0
        %v1443 = vadd.f32 0.0, %v1442
        %v1444 = vpop.f32.mrb[0].mxu0
        %v1445 = vpop.f32.mrb[0].mxu0
        %v1446 = vadd.f32 0.0, %v1445
        %v1447 = vpop.f32.mrb[0].mxu0
        %1448 = vmatprep.mubr.bf16.mxu0 %v1283
        %1449 = vmatmul.mubr.bf16.gmra.mrb[0].mxu0 %v1282
        %v1450 = vpop.f32.mrb[0].mxu0
        %v1451 = vadd.f32 0.0, %v1450
        %v1452 = vpop.f32.mrb[0].mxu0
        %v1453 = vpop.f32.mrb[0].mxu0
        %v1454 = vadd.f32 0.0, %v1453
        %v1455 = vpop.f32.mrb[0].mxu0
        %1456 = vmatprep.mubr.bf16.mxu0 %v1285
        %1457 = vmatmul.mubr.bf16.gmra.mrb[0].mxu0 %v1284
        %v1458 = vpop.f32.mrb[0].mxu0
        %v1459 = vadd.f32 0.0, %v1458
        %v1460 = vpop.f32.mrb[0].mxu0
        %v1461 = vpop.f32.mrb[0].mxu0
        %v1462 = vadd.f32 0.0, %v1461
        %v1463 = vpop.f32.mrb[0].mxu0
        %1464 = vmatprep.mubr.bf16.mxu0 %v1287
        %1465 = vmatmul.mubr.bf16.gmra.mrb[0].mxu0 %v1286
        %v1466 = vpop.f32.mrb[0].mxu0
        %v1467 = vadd.f32 0.0, %v1466
        %v1468 = vpop.f32.mrb[0].mxu0
        %v1469 = vpop.f32.mrb[0].mxu0
        %v1470 = vadd.f32 0.0, %v1469
        %v1471 = vpop.f32.mrb[0].mxu0
        %1472 = vmatprep.mubr.bf16.mxu0 %v1289
        %1473 = vmatmul.mubr.bf16.gmra.mrb[0].mxu0 %v1288
        %v1474 = vpop.f32.mrb[0].mxu0
        %v1475 = vadd.f32 0.0, %v1474
        %v1476 = vpop.f32.mrb[0].mxu0
        %v1477 = vpop.f32.mrb[0].mxu0
        %v1478 = vadd.f32 0.0, %v1477
        %v1479 = vpop.f32.mrb[0].mxu0
        %1480 = vmatprep.mubr.bf16.mxu0 %v1291
        %1481 = vmatmul.mubr.bf16.gmra.mrb[0].mxu0 %v1290
        %v1482 = vpop.f32.mrb[0].mxu0
        %v1483 = vadd.f32 0.0, %v1482
        %v1484 = vpop.f32.mrb[0].mxu0
        %v1485 = vpop.f32.mrb[0].mxu0
        %v1486 = vadd.f32 0.0, %v1485
        %v1487 = vpop.f32.mrb[0].mxu0
        %1488 = vmatprep.mubr.bf16.mxu0 %v1293
        %1489 = vmatmul.mubr.bf16.gmra.mrb[0].mxu0 %v1292
        %v1490 = vpop.f32.mrb[0].mxu0
        %v1491 = vadd.f32 0.0, %v1490
        %v1492 = vpop.f32.mrb[0].mxu0
        %v1493 = vpop.f32.mrb[0].mxu0
        %v1494 = vadd.f32 0.0, %v1493
        %v1495 = vpop.f32.mrb[0].mxu0
        %1496 = vmatprep.mubr.bf16.mxu0 %v1295
        %1497 = vmatmul.mubr.bf16.gmra.mrb[0].mxu0 %v1294
        %v1498 = vpop.f32.mrb[0].mxu0
        %v1499 = vadd.f32 0.0, %v1498
        %v1500 = vpop.f32.mrb[0].mxu0
        %v1501 = vpop.f32.mrb[0].mxu0
        %v1502 = vadd.f32 0.0, %v1501
        %v1503 = vpop.f32.mrb[0].mxu0
        %1504 = vdwg.mxu0
        %v1537 = vunpack.c.l.b16 %v1152
        %v1538 = vunpack.c.l.b16 %v1153
        %v1539 = vunpack.c.l.b16 %v1154
        %v1540 = vunpack.c.l.b16 %v1155
        %v1541 = vunpack.c.l.b16 %v1156
        %v1542 = vunpack.c.l.b16 %v1157
        %v1543 = vunpack.c.l.b16 %v1158
        %v1544 = vunpack.c.l.b16 %v1159
        %v1545 = vunpack.c.l.b16 %v1160
        %v1546 = vunpack.c.l.b16 %v1161
        %v1547 = vunpack.c.l.b16 %v1162
        %v1548 = vunpack.c.l.b16 %v1163
        %v1549 = vunpack.c.l.b16 %v1164
        %v1550 = vunpack.c.l.b16 %v1165
        %v1551 = vunpack.c.l.b16 %v1166
        %v1552 = vunpack.c.l.b16 %v1167
        %v1553 = vunpack.c.l.b16 %v1168
        %v1554 = vunpack.c.l.b16 %v1169
        %v1555 = vunpack.c.l.b16 %v1170
        %v1556 = vunpack.c.l.b16 %v1171
        %v1557 = vunpack.c.l.b16 %v1172
        %v1558 = vunpack.c.l.b16 %v1173
        %v1559 = vunpack.c.l.b16 %v1174
        %v1560 = vunpack.c.l.b16 %v1175
        %v1561 = vunpack.c.l.b16 %v1176
        %v1562 = vunpack.c.l.b16 %v1177
        %v1563 = vunpack.c.l.b16 %v1178
        %v1564 = vunpack.c.l.b16 %v1179
        %v1565 = vunpack.c.l.b16 %v1180
        %v1566 = vunpack.c.l.b16 %v1181
        %v1567 = vunpack.c.l.b16 %v1182
        %v1568 = vunpack.c.l.b16 %v1183
        %v1569 = vpack.c.b16 %v1538, %v1537
        %v1570 = vpack.c.b16 %v1540, %v1539
        %v1571 = vpack.c.b16 %v1542, %v1541
        %v1572 = vpack.c.b16 %v1544, %v1543
        %v1573 = vpack.c.b16 %v1546, %v1545
        %v1574 = vpack.c.b16 %v1548, %v1547
        %v1575 = vpack.c.b16 %v1550, %v1549
        %v1576 = vpack.c.b16 %v1552, %v1551
        %v1577 = vpack.c.b16 %v1554, %v1553
        %v1578 = vpack.c.b16 %v1556, %v1555
        %v1579 = vpack.c.b16 %v1558, %v1557
        %v1580 = vpack.c.b16 %v1560, %v1559
        %v1581 = vpack.c.b16 %v1562, %v1561
        %v1582 = vpack.c.b16 %v1564, %v1563
        %v1583 = vpack.c.b16 %v1566, %v1565
        %v1584 = vpack.c.b16 %v1568, %v1567
        %1601 = vmatprep.subr.bf16.mxu0 0
        %1602 = vmatpush1.bf16.msra.mxu0 %v1569
        %1603 = vmatprep.subr.bf16.mxu0 0
        %1604 = vmatpush1.bf16.msra.mxu0 %v1570
        %1605 = vmatprep.subr.bf16.mxu0 0
        %1606 = vmatpush1.bf16.msra.mxu0 %v1571
        %1607 = vmatprep.subr.bf16.mxu0 0
        %1608 = vmatpush1.bf16.msra.mxu0 %v1572
        %1609 = vmatprep.subr.bf16.mxu0 0
        %1610 = vmatpush1.bf16.msra.mxu0 %v1573
        %1611 = vmatprep.subr.bf16.mxu0 0
        %1612 = vmatpush1.bf16.msra.mxu0 %v1574
        %1613 = vmatprep.subr.bf16.mxu0 0
        %1614 = vmatpush1.bf16.msra.mxu0 %v1575
        %1615 = vmatprep.subr.bf16.mxu0 0
        %1616 = vmatpush1.bf16.msra.mxu0 %v1576
        %1617 = vmatprep.subr.bf16.mxu0 0
        %1618 = vmatpush1.bf16.msra.mxu0 %v1577
        %1619 = vmatprep.subr.bf16.mxu0 0
        %1620 = vmatpush1.bf16.msra.mxu0 %v1578
        %1621 = vmatprep.subr.bf16.mxu0 0
        %1622 = vmatpush1.bf16.msra.mxu0 %v1579
        %1623 = vmatprep.subr.bf16.mxu0 0
        %1624 = vmatpush1.bf16.msra.mxu0 %v1580
        %1625 = vmatprep.subr.bf16.mxu0 0
        %1626 = vmatpush1.bf16.msra.mxu0 %v1581
        %1627 = vmatprep.subr.bf16.mxu0 0
        %1628 = vmatpush1.bf16.msra.mxu0 %v1582
        %1629 = vmatprep.subr.bf16.mxu0 0
        %1630 = vmatpush1.bf16.msra.mxu0 %v1583
        %1631 = vmatprep.subr.bf16.mxu0 0
        %1632 = vmatpush1.bf16.msra.mxu0 %v1584
        %1633 = vmatprep.mubr.bf16.mxu0 %v1137
        %1634 = vmatmul.mubr.bf16.gmra.mrb[0].mxu0 %v1136
        %v1635 = vpop.f32.mrb[0].mxu0
        %v1636 = vadd.f32 %v1443, %v1635
        %v1637 = vpop.f32.mrb[0].mxu0
        %v1638 = vpop.f32.mrb[0].mxu0
        %v1639 = vadd.f32 %v1446, %v1638
        %v1640 = vpop.f32.mrb[0].mxu0
        %1641 = vmatprep.mubr.bf16.mxu0 %v1139
        %1642 = vmatmul.mubr.bf16.gmra.mrb[0].mxu0 %v1138
        %v1643 = vpop.f32.mrb[0].mxu0
        %v1644 = vadd.f32 %v1451, %v1643
        %v1645 = vpop.f32.mrb[0].mxu0
        %v1646 = vpop.f32.mrb[0].mxu0
        %v1647 = vadd.f32 %v1454, %v1646
        %v1648 = vpop.f32.mrb[0].mxu0
        %1649 = vmatprep.mubr.bf16.mxu0 %v1141
        %1650 = vmatmul.mubr.bf16.gmra.mrb[0].mxu0 %v1140
        %v1651 = vpop.f32.mrb[0].mxu0
        %v1652 = vadd.f32 %v1459, %v1651
        %v1653 = vpop.f32.mrb[0].mxu0
        %v1654 = vpop.f32.mrb[0].mxu0
        %v1655 = vadd.f32 %v1462, %v1654
        %v1656 = vpop.f32.mrb[0].mxu0
        %1657 = vmatprep.mubr.bf16.mxu0 %v1143
        %1658 = vmatmul.mubr.bf16.gmra.mrb[0].mxu0 %v1142
        %v1659 = vpop.f32.mrb[0].mxu0
        %v1660 = vadd.f32 %v1467, %v1659
        %v1661 = vpop.f32.mrb[0].mxu0
        %v1662 = vpop.f32.mrb[0].mxu0
        %v1663 = vadd.f32 %v1470, %v1662
        %v1664 = vpop.f32.mrb[0].mxu0
        %1665 = vmatprep.mubr.bf16.mxu0 %v1145
        %1666 = vmatmul.mubr.bf16.gmra.mrb[0].mxu0 %v1144
        %v1667 = vpop.f32.mrb[0].mxu0
        %v1668 = vadd.f32 %v1475, %v1667
        %v1669 = vpop.f32.mrb[0].mxu0
        %v1670 = vpop.f32.mrb[0].mxu0
        %v1671 = vadd.f32 %v1478, %v1670
        %v1672 = vpop.f32.mrb[0].mxu0
        %1673 = vmatprep.mubr.bf16.mxu0 %v1147
        %1674 = vmatmul.mubr.bf16.gmra.mrb[0].mxu0 %v1146
        %v1675 = vpop.f32.mrb[0].mxu0
        %v1676 = vadd.f32 %v1483, %v1675
        %v1677 = vpop.f32.mrb[0].mxu0
        %v1678 = vpop.f32.mrb[0].mxu0
        %v1679 = vadd.f32 %v1486, %v1678
        %v1680 = vpop.f32.mrb[0].mxu0
        %1681 = vmatprep.mubr.bf16.mxu0 %v1149
        %1682 = vmatmul.mubr.bf16.gmra.mrb[0].mxu0 %v1148
        %v1683 = vpop.f32.mrb[0].mxu0
        %v1684 = vadd.f32 %v1491, %v1683
        %v1685 = vpop.f32.mrb[0].mxu0
        %v1686 = vpop.f32.mrb[0].mxu0
        %v1687 = vadd.f32 %v1494, %v1686
        %v1688 = vpop.f32.mrb[0].mxu0
        %1689 = vmatprep.mubr.bf16.mxu0 %v1151
        %1690 = vmatmul.mubr.bf16.gmra.mrb[0].mxu0 %v1150
        %v1691 = vpop.f32.mrb[0].mxu0
        %v1692 = vadd.f32 %v1499, %v1691
        %v1693 = vpop.f32.mrb[0].mxu0
        %v1694 = vpop.f32.mrb[0].mxu0
        %v1695 = vadd.f32 %v1502, %v1694
        %v1696 = vpop.f32.mrb[0].mxu0
        %1697 = vdwg.mxu0
        %v1698 = vld [vmem:[%s6] sm:$0x1]
        %v1700 = vlaneseq
        %v1701 = vshrl.u32 %v1700, 7
        %v1702 = vsub.s32 0, %v1701
        %v1703 = vrot.slane %v1698, %v1702
        %v1705 = vadd.f32 %v1636, %v1703
        %v1706 = vadd.f32 %v1639, %v1703
        %v1707 = vadd.f32 %v1644, %v1703
        %v1708 = vadd.f32 %v1647, %v1703
        %v1709 = vadd.f32 %v1652, %v1703
        %v1710 = vadd.f32 %v1655, %v1703
        %v1711 = vadd.f32 %v1660, %v1703
        %v1712 = vadd.f32 %v1663, %v1703
        %v1713 = vadd.f32 %v1668, %v1703
        %v1714 = vadd.f32 %v1671, %v1703
        %v1715 = vadd.f32 %v1676, %v1703
        %v1716 = vadd.f32 %v1679, %v1703
        %v1717 = vadd.f32 %v1684, %v1703
        %v1718 = vadd.f32 %v1687, %v1703
        %v1719 = vadd.f32 %v1692, %v1703
        %v1720 = vadd.f32 %v1695, %v1703
        %1721 = vadd.xlane.f32.xlu0 %v1705
        %v1722 = vpop.xlane.xlu0 %1721
        %1723 = vadd.xlane.f32.xlu0 %v1706
        %v1724 = vpop.xlane.xlu0 %1723
        %1725 = vadd.xlane.f32.xlu0 %v1707
        %v1726 = vpop.xlane.xlu0 %1725
        %1727 = vadd.xlane.f32.xlu0 %v1708
        %v1728 = vpop.xlane.xlu0 %1727
        %1729 = vadd.xlane.f32.xlu0 %v1709
        %v1730 = vpop.xlane.xlu0 %1729
        %1731 = vadd.xlane.f32.xlu0 %v1710
        %v1732 = vpop.xlane.xlu0 %1731
        %1733 = vadd.xlane.f32.xlu0 %v1711
        %v1734 = vpop.xlane.xlu0 %1733
        %1735 = vadd.xlane.f32.xlu0 %v1712
        %v1736 = vpop.xlane.xlu0 %1735
        %1737 = vadd.xlane.f32.xlu0 %v1713
        %v1738 = vpop.xlane.xlu0 %1737
        %1739 = vadd.xlane.f32.xlu0 %v1714
        %v1740 = vpop.xlane.xlu0 %1739
        %1741 = vadd.xlane.f32.xlu0 %v1715
        %v1742 = vpop.xlane.xlu0 %1741
        %1743 = vadd.xlane.f32.xlu0 %v1716
        %v1744 = vpop.xlane.xlu0 %1743
        %1745 = vadd.xlane.f32.xlu0 %v1717
        %v1746 = vpop.xlane.xlu0 %1745
        %1747 = vadd.xlane.f32.xlu0 %v1718
        %v1748 = vpop.xlane.xlu0 %1747
        %1749 = vadd.xlane.f32.xlu0 %v1719
        %v1750 = vpop.xlane.xlu0 %1749
        %1751 = vadd.xlane.f32.xlu0 %v1720
        %v1752 = vpop.xlane.xlu0 %1751
        %v1753 = vrcp.pop 128.0
        %v1754 = vmul.f32 %v1722, %v1753
        %v1755 = vmul.f32 %v1724, %v1753
        %v1756 = vmul.f32 %v1726, %v1753
        %v1757 = vmul.f32 %v1728, %v1753
        %v1758 = vmul.f32 %v1730, %v1753
        %v1759 = vmul.f32 %v1732, %v1753
        %v1760 = vmul.f32 %v1734, %v1753
        %v1761 = vmul.f32 %v1736, %v1753
        %v1762 = vmul.f32 %v1738, %v1753
        %v1763 = vmul.f32 %v1740, %v1753
        %v1764 = vmul.f32 %v1742, %v1753
        %v1765 = vmul.f32 %v1744, %v1753
        %v1766 = vmul.f32 %v1746, %v1753
        %v1767 = vmul.f32 %v1748, %v1753
        %v1768 = vmul.f32 %v1750, %v1753
        %v1769 = vmul.f32 %v1752, %v1753
        %v1770 = vsub.f32 %v1705, %v1754
        %v1771 = vsub.f32 %v1706, %v1755
        %v1772 = vsub.f32 %v1707, %v1756
        %v1773 = vsub.f32 %v1708, %v1757
        %v1774 = vsub.f32 %v1709, %v1758
        %v1775 = vsub.f32 %v1710, %v1759
        %v1776 = vsub.f32 %v1711, %v1760
        %v1777 = vsub.f32 %v1712, %v1761
        %v1778 = vsub.f32 %v1713, %v1762
        %v1779 = vsub.f32 %v1714, %v1763
        %v1780 = vsub.f32 %v1715, %v1764
        %v1781 = vsub.f32 %v1716, %v1765
        %v1782 = vsub.f32 %v1717, %v1766
        %v1783 = vsub.f32 %v1718, %v1767
        %v1784 = vsub.f32 %v1719, %v1768
        %v1785 = vsub.f32 %v1720, %v1769
        %v1786 = vmul.f32 %v1770, %v1770
        %v1787 = vmul.f32 %v1771, %v1771
        %v1788 = vmul.f32 %v1772, %v1772
        %v1789 = vmul.f32 %v1773, %v1773
        %v1790 = vmul.f32 %v1774, %v1774
        %v1791 = vmul.f32 %v1775, %v1775
        %v1792 = vmul.f32 %v1776, %v1776
        %v1793 = vmul.f32 %v1777, %v1777
        %v1794 = vmul.f32 %v1778, %v1778
        %v1795 = vmul.f32 %v1779, %v1779
        %v1796 = vmul.f32 %v1780, %v1780
        %v1797 = vmul.f32 %v1781, %v1781
        %v1798 = vmul.f32 %v1782, %v1782
        %v1799 = vmul.f32 %v1783, %v1783
        %v1800 = vmul.f32 %v1784, %v1784
        %v1801 = vmul.f32 %v1785, %v1785
        %1802 = vadd.xlane.f32.xlu0 %v1786
        %v1803 = vpop.xlane.xlu0 %1802
        %1804 = vadd.xlane.f32.xlu0 %v1787
        %v1805 = vpop.xlane.xlu0 %1804
        %1806 = vadd.xlane.f32.xlu0 %v1788
        %v1807 = vpop.xlane.xlu0 %1806
        %1808 = vadd.xlane.f32.xlu0 %v1789
        %v1809 = vpop.xlane.xlu0 %1808
        %1810 = vadd.xlane.f32.xlu0 %v1790
        %v1811 = vpop.xlane.xlu0 %1810
        %1812 = vadd.xlane.f32.xlu0 %v1791
        %v1813 = vpop.xlane.xlu0 %1812
        %1814 = vadd.xlane.f32.xlu0 %v1792
        %v1815 = vpop.xlane.xlu0 %1814
        %1816 = vadd.xlane.f32.xlu0 %v1793
        %v1817 = vpop.xlane.xlu0 %1816
        %1818 = vadd.xlane.f32.xlu0 %v1794
        %v1819 = vpop.xlane.xlu0 %1818
        %1820 = vadd.xlane.f32.xlu0 %v1795
        %v1821 = vpop.xlane.xlu0 %1820
        %1822 = vadd.xlane.f32.xlu0 %v1796
        %v1823 = vpop.xlane.xlu0 %1822
        %1824 = vadd.xlane.f32.xlu0 %v1797
        %v1825 = vpop.xlane.xlu0 %1824
        %1826 = vadd.xlane.f32.xlu0 %v1798
        %v1827 = vpop.xlane.xlu0 %1826
        %1828 = vadd.xlane.f32.xlu0 %v1799
        %v1829 = vpop.xlane.xlu0 %1828
        %1830 = vadd.xlane.f32.xlu0 %v1800
        %v1831 = vpop.xlane.xlu0 %1830
        %1832 = vadd.xlane.f32.xlu0 %v1801
        %v1833 = vpop.xlane.xlu0 %1832
        %v1834 = vmul.f32 %v1803, %v1753
        %v1835 = vmul.f32 %v1805, %v1753
        %v1836 = vmul.f32 %v1807, %v1753
        %v1837 = vmul.f32 %v1809, %v1753
        %v1838 = vmul.f32 %v1811, %v1753
        %v1839 = vmul.f32 %v1813, %v1753
        %v1840 = vmul.f32 %v1815, %v1753
        %v1841 = vmul.f32 %v1817, %v1753
        %v1842 = vmul.f32 %v1819, %v1753
        %v1843 = vmul.f32 %v1821, %v1753
        %v1844 = vmul.f32 %v1823, %v1753
        %v1845 = vmul.f32 %v1825, %v1753
        %v1846 = vmul.f32 %v1827, %v1753
        %v1847 = vmul.f32 %v1829, %v1753
        %v1848 = vmul.f32 %v1831, %v1753
        %v1849 = vmul.f32 %v1833, %v1753
        %v1850 = vadd.f32 %v1834, 1e-05
        %v1851 = vadd.f32 %v1835, 1e-05
        %v1852 = vadd.f32 %v1836, 1e-05
        %v1853 = vadd.f32 %v1837, 1e-05
        %v1854 = vadd.f32 %v1838, 1e-05
        %v1855 = vadd.f32 %v1839, 1e-05
        %v1856 = vadd.f32 %v1840, 1e-05
        %v1857 = vadd.f32 %v1841, 1e-05
        %v1858 = vadd.f32 %v1842, 1e-05
        %v1859 = vadd.f32 %v1843, 1e-05
        %v1860 = vadd.f32 %v1844, 1e-05
        %v1861 = vadd.f32 %v1845, 1e-05
        %v1862 = vadd.f32 %v1846, 1e-05
        %v1863 = vadd.f32 %v1847, 1e-05
        %v1864 = vadd.f32 %v1848, 1e-05
        %v1865 = vadd.f32 %v1849, 1e-05
        %v1866 = vrsqrt.pop %v1850
        %v1867 = vrsqrt.pop %v1851
        %v1868 = vrsqrt.pop %v1852
        %v1869 = vrsqrt.pop %v1853
        %v1870 = vrsqrt.pop %v1854
        %v1871 = vrsqrt.pop %v1855
        %v1872 = vrsqrt.pop %v1856
        %v1873 = vrsqrt.pop %v1857
        %v1874 = vrsqrt.pop %v1858
        %v1875 = vrsqrt.pop %v1859
        %v1876 = vrsqrt.pop %v1860
        %v1877 = vrsqrt.pop %v1861
        %v1878 = vrsqrt.pop %v1862
        %v1879 = vrsqrt.pop %v1863
        %v1880 = vrsqrt.pop %v1864
        %v1881 = vrsqrt.pop %v1865
        %v1882 = vmul.f32 %v1770, %v1866
        %v1883 = vmul.f32 %v1771, %v1867
        %v1884 = vmul.f32 %v1772, %v1868
        %v1885 = vmul.f32 %v1773, %v1869
        %v1886 = vmul.f32 %v1774, %v1870
        %v1887 = vmul.f32 %v1775, %v1871
        %v1888 = vmul.f32 %v1776, %v1872
        %v1889 = vmul.f32 %v1777, %v1873
        %v1890 = vmul.f32 %v1778, %v1874
        %v1891 = vmul.f32 %v1779, %v1875
        %v1892 = vmul.f32 %v1780, %v1876
        %v1893 = vmul.f32 %v1781, %v1877
        %v1894 = vmul.f32 %v1782, %v1878
        %v1895 = vmul.f32 %v1783, %v1879
        %v1896 = vmul.f32 %v1784, %v1880
        %v1897 = vmul.f32 %v1785, %v1881
        %v1898 = vld [vmem:[%s7] sm:$0x1]
        %v1900 = vlaneseq
        %v1901 = vshrl.u32 %v1900, 7
        %v1902 = vsub.s32 0, %v1901
        %v1903 = vrot.slane %v1898, %v1902
        %v1905 = vmul.f32 %v1882, %v1903
        %v1906 = vmul.f32 %v1883, %v1903
        %v1907 = vmul.f32 %v1884, %v1903
        %v1908 = vmul.f32 %v1885, %v1903
        %v1909 = vmul.f32 %v1886, %v1903
        %v1910 = vmul.f32 %v1887, %v1903
        %v1911 = vmul.f32 %v1888, %v1903
        %v1912 = vmul.f32 %v1889, %v1903
        %v1913 = vmul.f32 %v1890, %v1903
        %v1914 = vmul.f32 %v1891, %v1903
        %v1915 = vmul.f32 %v1892, %v1903
        %v1916 = vmul.f32 %v1893, %v1903
        %v1917 = vmul.f32 %v1894, %v1903
        %v1918 = vmul.f32 %v1895, %v1903
        %v1919 = vmul.f32 %v1896, %v1903
        %v1920 = vmul.f32 %v1897, %v1903
        %v1921 = vld [vmem:[%s8] sm:$0x1]
        %v1923 = vlaneseq
        %v1924 = vshrl.u32 %v1923, 7
        %v1925 = vsub.s32 0, %v1924
        %v1926 = vrot.slane %v1921, %v1925
        %v1928 = vadd.f32 %v1905, %v1926
        %v1929 = vadd.f32 %v1906, %v1926
        %v1930 = vadd.f32 %v1907, %v1926
        %v1931 = vadd.f32 %v1908, %v1926
        %v1932 = vadd.f32 %v1909, %v1926
        %v1933 = vadd.f32 %v1910, %v1926
        %v1934 = vadd.f32 %v1911, %v1926
        %v1935 = vadd.f32 %v1912, %v1926
        %v1936 = vadd.f32 %v1913, %v1926
        %v1937 = vadd.f32 %v1914, %v1926
        %v1938 = vadd.f32 %v1915, %v1926
        %v1939 = vadd.f32 %v1916, %v1926
        %v1940 = vadd.f32 %v1917, %v1926
        %v1941 = vadd.f32 %v1918, %v1926
        %v1942 = vadd.f32 %v1919, %v1926
        %v1943 = vadd.f32 %v1920, %v1926
        %v1944 = vmax.f32 %v1928, 0.0
        %v1945 = vmax.f32 %v1929, 0.0
        %v1946 = vmax.f32 %v1930, 0.0
        %v1947 = vmax.f32 %v1931, 0.0
        %v1948 = vmax.f32 %v1932, 0.0
        %v1949 = vmax.f32 %v1933, 0.0
        %v1950 = vmax.f32 %v1934, 0.0
        %v1951 = vmax.f32 %v1935, 0.0
        %v1952 = vmax.f32 %v1936, 0.0
        %v1953 = vmax.f32 %v1937, 0.0
        %v1954 = vmax.f32 %v1938, 0.0
        %v1955 = vmax.f32 %v1939, 0.0
        %v1956 = vmax.f32 %v1940, 0.0
        %v1957 = vmax.f32 %v1941, 0.0
        %v1958 = vmax.f32 %v1942, 0.0
        %v1959 = vmax.f32 %v1943, 0.0
        %v1960 = vpack.c.bf16 %v1945, %v1944
        %v1961 = vpack.c.bf16 %v1947, %v1946
        %v1962 = vpack.c.bf16 %v1949, %v1948
        %v1963 = vpack.c.bf16 %v1951, %v1950
        %v1964 = vpack.c.bf16 %v1953, %v1952
        %v1965 = vpack.c.bf16 %v1955, %v1954
        %v1966 = vpack.c.bf16 %v1957, %v1956
        %v1967 = vpack.c.bf16 %v1959, %v1958
        %v1976 = vunpack.c.l.b16 %v1960
        %v1977 = vunpack.c.h.b16 %v1960
        %v1978 = vunpack.c.l.b16 %v1961
        %v1979 = vunpack.c.h.b16 %v1961
        %v1980 = vunpack.c.l.b16 %v1962
        %v1981 = vunpack.c.h.b16 %v1962
        %v1982 = vunpack.c.l.b16 %v1963
        %v1983 = vunpack.c.h.b16 %v1963
        %v1984 = vunpack.c.l.b16 %v1964
        %v1985 = vunpack.c.h.b16 %v1964
        %v1986 = vunpack.c.l.b16 %v1965
        %v1987 = vunpack.c.h.b16 %v1965
        %v1988 = vunpack.c.l.b16 %v1966
        %v1989 = vunpack.c.h.b16 %v1966
        %v1990 = vunpack.c.l.b16 %v1967
        %v1991 = vunpack.c.h.b16 %v1967
        %v1992 = vpack.c.b16 %v1976, %v1976
        %v1993 = vpack.c.b16 %v1977, %v1977
        %v1994 = vpack.c.b16 %v1978, %v1978
        %v1995 = vpack.c.b16 %v1979, %v1979
        %v1996 = vpack.c.b16 %v1980, %v1980
        %v1997 = vpack.c.b16 %v1981, %v1981
        %v1998 = vpack.c.b16 %v1982, %v1982
        %v1999 = vpack.c.b16 %v1983, %v1983
        %v2000 = vpack.c.b16 %v1984, %v1984
        %v2001 = vpack.c.b16 %v1985, %v1985
        %v2002 = vpack.c.b16 %v1986, %v1986
        %v2003 = vpack.c.b16 %v1987, %v1987
        %v2004 = vpack.c.b16 %v1988, %v1988
        %v2005 = vpack.c.b16 %v1989, %v1989
        %v2006 = vpack.c.b16 %v1990, %v1990
        %v2007 = vpack.c.b16 %v1991, %v1991
        %2024 = vst [vmem:[%s437] sm:$0xf] %v1992
        %2025 = vst [vmem:[%s437 + $0x4] sm:$0xf] %v1993
        %2026 = vst [vmem:[%s437 + $0x8] sm:$0xf] %v1994
        %2027 = vst [vmem:[%s437 + $0xc] sm:$0xf] %v1995
        %2028 = vst [vmem:[%s437 + $0x10] sm:$0xf] %v1996
        %2029 = vst [vmem:[%s437 + $0x14] sm:$0xf] %v1997
        %2030 = vst [vmem:[%s437 + $0x18] sm:$0xf] %v1998
        %2031 = vst [vmem:[%s437 + $0x1c] sm:$0xf] %v1999
        %2032 = vst [vmem:[%s437 + $0x20] sm:$0xf] %v2000
        %2033 = vst [vmem:[%s437 + $0x24] sm:$0xf] %v2001
        %2034 = vst [vmem:[%s437 + $0x28] sm:$0xf] %v2002
        %2035 = vst [vmem:[%s437 + $0x2c] sm:$0xf] %v2003
        %2036 = vst [vmem:[%s437 + $0x30] sm:$0xf] %v2004
        %2037 = vst [vmem:[%s437 + $0x34] sm:$0xf] %v2005
        %2038 = vst [vmem:[%s437 + $0x38] sm:$0xf] %v2006
        %2039 = vst [vmem:[%s437 + $0x3c] sm:$0xf] %v2007
      $region64: #{emma_sage_forward.3} parent=55 // pred_fallthru
        _
      %s2040 = smul.u32 16, %s24
      %p2041 = scmp.lt.s32.totalorder %s2040, 31
      %s2042 = scalar_select %p2041, %s2040, 31
      %s2043 = smul.addr %s2042, 4
      %s2044 = scalar_lea.vmem %s9, %s2043
      // Predicated region
      $region65: #{emma_sage_forward.3} parent=55 // pred_check
        %p2045 = pneg %p261
      $region66: #{emma_sage_forward.3} parent=55 // pred_check_branch
        %2047 = sbr.rel (%p2045) target = $region68
      $region67: #{emma_sage_forward.3} parent=55 // pred_region
        %s2048 = smul.u32 16, %s24
      $region68: #{emma_sage_forward.3} parent=55 // pred_fallthru
        _
    $region56: #{emma_sage_forward.3} parent=5 // pred_fallthru
      _
    %p2049 = scmp.le.s32.totalorder 2, %s15
    // Predicated region
    $region69: #{emma_sage_forward.3} parent=5 // pred_check
      %p2050 = pneg %p2049
    $region70: #{emma_sage_forward.3} parent=5 // pred_check_branch
      %2052 = sbr.rel (%p2050) target = $region72
    $region71: #{emma_sage_forward.3} parent=5 // pred_region
      %s2053 = ssub.s32 %s15, 2
      // Predicated region
      $region73: #{emma_sage_forward.3} parent=71 // pred_check
        %p2054 = pneg %p267
      $region74: #{emma_sage_forward.3} parent=71 // pred_check_branch
        %2056 = sbr.rel (%p2054) target = $region76
      $region75: #{emma_sage_forward.3} parent=71 // pred_region
        %s2057 = smul.u32 16, %s26
        %p2058 = scmp.lt.s32.totalorder %s2057, 31
        %s2059 = scalar_select %p2058, %s2057, 31
        %s2060 = smul.addr %s2059, 4
        %s2061 = scalar_lea.vmem %s9, %s2060
      $region76: #{emma_sage_forward.3} parent=71 // pred_fallthru
        _
    $region72: #{emma_sage_forward.3} parent=5 // pred_fallthru
      _
  $region6: #{emma_sage_forward.3} parent=0 // loop_footer
    %s19 = sadd.s32 1, %s15
  $region7: #{emma_sage_forward.3} parent=0 // loop_footer_branch
    %14 = sbr.rel target = $region3
  $region8: #{emma_sage_forward.3} parent=0 // loop_exit
    _

</llo_original>
